<compile_context>
chip_gen: v7x
topology: tpu7x:2x2x1
jax: 0.10.0
libtpu: 0.0.40
codegen_flags: <defaults>
</compile_context>

<pallas_src>
import functools

import jax
import jax.numpy as jnp
from jax.experimental import pallas as pl
from jax.experimental.pallas import tpu as pltpu


_VMEM_LIMIT = 32 * 1024 * 1024       # explicit scoped-VMEM limit (safe on v5e/v6e/v7x)
_TILE_BUDGET = 16 * 1024 * 1024      # per-tile VMEM budget used when picking row tiles
_BN_EPS = 1e-5
_MM_DTYPE = jnp.bfloat16             # MXU input / intermediate dtype; accum stays f32


def _cdiv(a, b):
    return -(-a // b)


def _pad_cols(ncol, cout):
    """Pad the output-column count to a multiple of 128 that cout still divides."""
    ncol_p = max(128, _cdiv(ncol, 128) * 128)
    while ncol_p % cout:
        ncol_p += 128
    return ncol_p


def _tile_rows(M, per_row_bytes, min_tiles=1):
    """Pick (tm, Mp, T): tm multiple of 8, Mp = T*tm >= M, tile fits the VMEM budget."""
    tm_cap = max(8, (_TILE_BUDGET // max(per_row_bytes, 1)) // 8 * 8)
    T = max(min_tiles, _cdiv(M, tm_cap))
    tm = _cdiv(_cdiv(M, T), 8) * 8
    return tm, T * tm, T


# -----------------------------------------------------------------------------
# Pallas kernels
# -----------------------------------------------------------------------------
def _fused_conv_bn_relu_kernel(*refs, cout, inv_count, masked):
    """Single-tile fused kernel: matmul + masked BN batch-stats + scale/shift + ReLU.

    refs (masked):   a(tm,K) bf16, w(K,ncol_p) bf16, mask(tm,ncol_p) bf16,
                     gamma_w(1,ncol_p) f32, beta_w(1,ncol_p) f32, out(tm,ncol_p) bf16
    refs (unmasked): same without the mask (layer 1: every sub-pixel output is valid).
    The group fold (sub-pixel groups -> per-channel stats) is done with pltpu.roll by
    multiples of `cout`, which also leaves the folded stats already in the wide layout.
    """
    if masked:
        a_ref, w_ref, m_ref, g_ref, b_ref, o_ref = refs
    else:
        a_ref, w_ref, g_ref, b_ref, o_ref = refs

    out = jnp.dot(a_ref[...], w_ref[...], preferred_element_type=jnp.float32)
    om = out * m_ref[...].astype(jnp.float32) if masked else out

    # Lane-dense partial sums over rows (border / pad rows masked to zero).
    s0 = jnp.sum(om, axis=0, keepdims=True)          # (1, ncol_p)
    q0 = jnp.sum(om * out, axis=0, keepdims=True)    # (1, ncol_p)

    # Fold sub-pixel groups into per-channel sums, broadcast back to the wide layout:
    # rolling by multiples of cout cycles over all columns with the same (c % cout).
    ncol_p = out.shape[-1]
    s, q = s0, q0
    for g in range(1, ncol_p // cout):               # static unroll (<=16 steps)
        s = s + pltpu.roll(s0, shift=g * cout, axis=1)
        q = q + pltpu.roll(q0, shift=g * cout, axis=1)

    mean = s * inv_count
    var = jnp.maximum(q * inv_count - mean * mean, 0.0)      # clamp fp cancellation
    scale = g_ref[...] * jax.lax.rsqrt(var + _BN_EPS)         # gamma_w is 0 in pad cols
    shift = b_ref[...] - mean * scale
    o_ref[...] = jnp.maximum(out * scale + shift, 0.0).astype(o_ref.dtype)


def _conv_stats_kernel(a_ref, w_ref, m_ref, o_ref, s_ref, q_ref):
    """Fallback (T>1): matmul tile + lane-dense masked partial sums; bf16 output."""
    out = jnp.dot(a_ref[...], w_ref[...], preferred_element_type=jnp.float32)
    om = out * m_ref[...].astype(jnp.float32)
    s_ref[0] = jnp.sum(om, axis=0, keepdims=True)
    q_ref[0] = jnp.sum(om * out, axis=0, keepdims=True)
    o_ref[...] = out.astype(o_ref.dtype)


def _scale_shift_relu_kernel(x_ref, s_ref, b_ref, o_ref):
    o_ref[...] = jnp.maximum(
        x_ref[...].astype(jnp.float32) * s_ref[...] + b_ref[...], 0.0
    ).astype(o_ref.dtype)


def _matmul_tanh_kernel(a_ref, w_ref, o_ref):
    o_ref[...] = jnp.tanh(jnp.dot(a_ref[...], w_ref[...],
                                  preferred_element_type=jnp.float32))


# -----------------------------------------------------------------------------
# Pallas wrappers
# -----------------------------------------------------------------------------
def pallas_fused_conv_bn_relu(a, w, gamma_w, beta_w, mask=None, *, cout, count):
    """One launch: (Mp,K)@(K,ncol_p) + BN batch-stats + scale/shift + ReLU, bf16 out."""
    Mp, K = a.shape
    ncol_p = w.shape[1]
    kernel = functools.partial(_fused_conv_bn_relu_kernel, cout=cout,
                               inv_count=1.0 / float(count),
                               masked=mask is not None)
    in_specs = [pl.BlockSpec((Mp, K), lambda i: (0, 0)),
                pl.BlockSpec((K, ncol_p), lambda i: (0, 0))]
    args = [a, w]
    if mask is not None:
        in_specs.append(pl.BlockSpec((Mp, ncol_p), lambda i: (0, 0)))
        args.append(mask)
    in_specs += [pl.BlockSpec((1, ncol_p), lambda i: (0, 0)),
                 pl.BlockSpec((1, ncol_p), lambda i: (0, 0))]
    args += [gamma_w, beta_w]
    return pl.pallas_call(
        kernel,
        out_shape=jax.ShapeDtypeStruct((Mp, ncol_p), _MM_DTYPE),
        grid_spec=pltpu.PrefetchScalarGridSpec(
            num_scalar_prefetch=0, grid=(1,),
            in_specs=in_specs,
            out_specs=pl.BlockSpec((Mp, ncol_p), lambda i: (0, 0))),
        compiler_params=pltpu.CompilerParams(
            dimension_semantics=("arbitrary",),
            vmem_limit_bytes=_VMEM_LIMIT),
    )(*args)


def pallas_conv_stats(a, w, mask, *, tm):
    """Fallback conv + lane-dense partial stats (bf16 conv output, f32 partials)."""
    Mp, K = a.shape
    ncol_p = w.shape[1]
    T = Mp // tm
    return pl.pallas_call(
        _conv_stats_kernel,
        out_shape=(jax.ShapeDtypeStruct((Mp, ncol_p), _MM_DTYPE),
                   jax.ShapeDtypeStruct((T, 1, ncol_p), jnp.float32),
                   jax.ShapeDtypeStruct((T, 1, ncol_p), jnp.float32)),
        grid_spec=pltpu.PrefetchScalarGridSpec(
            num_scalar_prefetch=0, grid=(T,),
            in_specs=[pl.BlockSpec((tm, K), lambda i: (i, 0)),
                      pl.BlockSpec((K, ncol_p), lambda i: (0, 0)),
                      pl.BlockSpec((tm, ncol_p), lambda i: (i, 0))],
            out_specs=(pl.BlockSpec((tm, ncol_p), lambda i: (i, 0)),
                       pl.BlockSpec((1, 1, ncol_p), lambda i: (i, 0, 0)),
                       pl.BlockSpec((1, 1, ncol_p), lambda i: (i, 0, 0)))),
        compiler_params=pltpu.CompilerParams(
            dimension_semantics=("parallel",),
            vmem_limit_bytes=_VMEM_LIMIT),
    )(a, w, mask)


def pallas_scale_shift_relu(x, scale, shift, *, tm):
    Mp, C = x.shape
    T = Mp // tm
    return pl.pallas_call(
        _scale_shift_relu_kernel,
        out_shape=jax.ShapeDtypeStruct((Mp, C), _MM_DTYPE),
        grid_spec=pltpu.PrefetchScalarGridSpec(
            num_scalar_prefetch=0, grid=(T,),
            in_specs=[pl.BlockSpec((tm, C), lambda i: (i, 0)),
                      pl.BlockSpec((1, C), lambda i: (0, 0)),
                      pl.BlockSpec((1, C), lambda i: (0, 0))],
            out_specs=pl.BlockSpec((tm, C), lambda i: (i, 0))),
        compiler_params=pltpu.CompilerParams(
            dimension_semantics=("parallel",),
            vmem_limit_bytes=_VMEM_LIMIT),
    )(x, scale, shift)


def pallas_matmul_tanh(a, w, *, tm):
    Mp, K = a.shape
    ncol_p = w.shape[1]
    T = Mp // tm
    return pl.pallas_call(
        _matmul_tanh_kernel,
        out_shape=jax.ShapeDtypeStruct((Mp, ncol_p), jnp.float32),
        grid_spec=pltpu.PrefetchScalarGridSpec(
            num_scalar_prefetch=0, grid=(T,),
            in_specs=[pl.BlockSpec((tm, K), lambda i: (i, 0)),
                      pl.BlockSpec((K, ncol_p), lambda i: (0, 0))],
            out_specs=pl.BlockSpec((tm, ncol_p), lambda i: (i, 0))),
        compiler_params=pltpu.CompilerParams(
            dimension_semantics=("parallel",),
            vmem_limit_bytes=_VMEM_LIMIT),
    )(a, w)


# -----------------------------------------------------------------------------
# Sub-pixel ConvTranspose2d(4, 2, 1) glue (cheap XLA data movement / tiny math)
# -----------------------------------------------------------------------------
# TODO(synk): the 2x2 tap gather could be moved into the kernel (4 shifted loads) so the
# 4x-duplicated patch slab never hits HBM; kept as XLA glue on bf16 for now.
def _extract_patches(x_nhwc):
    """2x2 sub-pixel patches: (N,h,w,C) -> (N*(h+1)*(w+1), 4*C), taps ordered (dh,dw,ci)."""
    N, h, w, C = x_nhwc.shape
    xp = jnp.pad(x_nhwc, ((0, 0), (1, 1), (1, 1), (0, 0)))
    cols = [xp[:, dh:dh + h + 1, dw:dw + w + 1, :] for dh in (0, 1) for dw in (0, 1)]
    p = jnp.concatenate(cols, axis=-1)
    return p.reshape(N * (h + 1) * (w + 1), 4 * C)


def _subpixel_weight(w_pt, ncol_p):
    """PyTorch ConvTranspose2d weight (Cin,Cout,4,4) -> bf16 (4*Cin, ncol_p):
    rows = (dh,dw,ci) patch taps, cols = (rh,rw,co) sub-pixel outputs (zero-padded),
    using kernel tap k = 2 + r - 2*d per spatial axis."""
    cin, cout = w_pt.shape[0], w_pt.shape[1]
    k_idx = jnp.array([[2, 3], [0, 1]])            # [d, r] -> 2 + r - 2*d
    w = w_pt[:, :, k_idx, :]                       # (Cin, Cout, dh, rh, 4)
    w = w[:, :, :, :, k_idx]                       # (Cin, Cout, dh, rh, dw, rw)
    w = jnp.transpose(w, (2, 4, 0, 3, 5, 1))       # (dh, dw, ci, rh, rw, co)
    w = w.reshape(4 * cin, 4 * cout)
    w = jnp.pad(w, ((0, 0), (0, ncol_p - 4 * cout)))
    return w.astype(_MM_DTYPE)


def _valid_mask_wide(N, H, W, M, Mp, cout, ncol_p):
    """bf16 (Mp, ncol_p) mask: 1 where (row, column) survives the pixel-shuffle slice."""
    mh = jnp.arange(H + 1)
    mw = jnp.arange(W + 1)
    vh = jnp.stack([mh > 0, mh < H], axis=1)       # (H+1, 2): rh = 0, 1
    vw = jnp.stack([mw > 0, mw < W], axis=1)       # (W+1, 2): rw = 0, 1
    m = vh[:, None, :, None] & vw[None, :, None, :]            # (H+1, W+1, 2, 2)
    m = jnp.broadcast_to(m[None], (N, H + 1, W + 1, 2, 2)).reshape(M, 4)
    m = jnp.repeat(m, cout, axis=1)                             # group-major wide mask
    m = jnp.pad(m, ((0, Mp - M), (0, ncol_p - 4 * cout)))       # pad rows/cols -> 0
    return m.astype(_MM_DTYPE)


def _pixel_shuffle(flat, N, H, W, C):
    """(N*(H+1)*(W+1), 4*C) sub-pixel matmul output -> (N, 2H, 2W, C) NHWC."""
    y = flat.reshape(N, H + 1, W + 1, 2, 2, C)
    y = y.transpose(0, 1, 3, 2, 4, 5).reshape(N, 2 * (H + 1), 2 * (W + 1), C)
    return y[:, 1:2 * H + 1, 1:2 * W + 1, :]


def _widen_affine(v, ncol, ncol_p):
    """Per-channel (cout,) vector -> wide (1, ncol_p) layout (zero in pad columns)."""
    reps = ncol // v.shape[0]
    return (jnp.pad(jnp.tile(v, reps), (0, ncol_p - ncol))
            .reshape(1, ncol_p).astype(jnp.float32))


def _bn_fold(s_part, q_part, count, gamma, beta, ngroups, cout, ncol_p):
    """Fallback path: fold lane-dense partial sums into wide BN scale/shift rows."""
    s = jnp.sum(s_part, axis=(0, 1))[:ngroups * cout].reshape(ngroups, cout).sum(0)
    q = jnp.sum(q_part, axis=(0, 1))[:ngroups * cout].reshape(ngroups, cout).sum(0)
    mean = s / count
    var = jnp.maximum(q / count - mean * mean, 0.0)
    scale = gamma * jax.lax.rsqrt(var + _BN_EPS)
    shift = beta - mean * scale
    return (_widen_affine(scale, ngroups * cout, ncol_p),
            _widen_affine(shift, ngroups * cout, ncol_p))


# -----------------------------------------------------------------------------
# Generator layers
# -----------------------------------------------------------------------------
def _input_block(z, w1, gamma, beta):
    """ConvTranspose2d(nz, C, 4, 1, 0) on a 1x1 input (== matmul) + BN + ReLU, fused."""
    N, nz = z.shape
    C = w1.shape[1]
    ncol = 16 * C
    ncol_p = _pad_cols(ncol, C)
    wm = jnp.transpose(w1, (0, 2, 3, 1)).reshape(nz, ncol)     # cols = (kh, kw, co)
    wm = jnp.pad(wm, ((0, 0), (0, ncol_p - ncol))).astype(_MM_DTYPE)
    Mp = _cdiv(N, 8) * 8
    a = jnp.pad(z.astype(_MM_DTYPE), ((0, Mp - N), (0, 0)))
    gw = _widen_affine(gamma, ncol, ncol_p)
    bw = _widen_affine(beta, ncol, ncol_p)
    # Every one of the 16 sub-positions of the 4x4 output is valid -> unmasked stats
    # (zero-padded batch rows contribute nothing to the sums).  Single fused launch.
    act = pallas_fused_conv_bn_relu(a, wm, gw, bw, mask=None, cout=C, count=N * 16)
    return act[:N, :ncol].reshape(N, 4, 4, C)                  # NHWC, bf16


def _upsample_block(x, w_pt, gamma, beta):
    """ConvTranspose2d(Cin, Cout, 4, 2, 1) + BN + ReLU in ONE fused sub-pixel matmul."""
    N, H, W, Cin = x.shape
    Cout = w_pt.shape[1]
    ncol = 4 * Cout
    ncol_p = _pad_cols(ncol, Cout)
    patches = _extract_patches(x.astype(_MM_DTYPE))            # bf16 before duplication
    M, K = patches.shape
    count = N * (2 * H) * (2 * W)
    per_row = 4 * K + 20 * ncol_p                              # bf16 in/out + f32 temps
    tm, Mp, T = _tile_rows(M, per_row)
    if Mp > M:
        patches = jnp.pad(patches, ((0, Mp - M), (0, 0)))
    mask_w = _valid_mask_wide(N, H, W, M, Mp, Cout, ncol_p)
    wm = _subpixel_weight(w_pt, ncol_p)
    if T == 1:
        # Preferred path at these sizes: one launch, no f32 activation round trip.
        gw = _widen_affine(gamma, ncol, ncol_p)
        bw = _widen_affine(beta, ncol, ncol_p)
        act = pallas_fused_conv_bn_relu(patches, wm, gw, bw, mask=mask_w,
                                        cout=Cout, count=count)
    else:
        # Fallback for very large slabs: two passes with bf16 intermediates and
        # lane-dense partial stats; 'parallel' grid shards across v7x TensorCores.
        out, s, q = pallas_conv_stats(patches, wm, mask_w, tm=tm)
        sw, bw = _bn_fold(s, q, count, gamma, beta, ngroups=4, cout=Cout, ncol_p=ncol_p)
        act = pallas_scale_shift_relu(out, sw, bw, tm=tm)
    return _pixel_shuffle(act[:M, :ncol], N, H, W, Cout)       # bf16 NHWC


def _output_block(x, w_pt):
    """ConvTranspose2d(Cin, nc, 4, 2, 1) + Tanh (tanh fused into the matmul)."""
    N, H, W, Cin = x.shape
    Cout = w_pt.shape[1]
    ncol = 4 * Cout
    ncol_p = _pad_cols(ncol, Cout)
    patches = _extract_patches(x.astype(_MM_DTYPE))
    M, K = patches.shape
    per_row = 4 * K + 8 * ncol_p + 4 * ncol_p
    # No cross-row stats here, so split into >=2 row tiles when M is large enough:
    # the 'parallel' axis can shard across v7x's two TensorCores and the BlockSpec
    # pipeline gets something to double-buffer.
    tm, Mp, _ = _tile_rows(M, per_row, min_tiles=2 if M >= 1024 else 1)
    if Mp > M:
        patches = jnp.pad(patches, ((0, Mp - M), (0, 0)))
    wm = _subpixel_weight(w_pt, ncol_p)                        # cols padded to 128
    out = pallas_matmul_tanh(patches, wm, tm=tm)
    return _pixel_shuffle(out[:M, :ncol], N, H, W, Cout)       # f32 NHWC


def generator_forward(z_nchw, params):
    """z: (N, nz, 1, 1) -> image (N, nc, 64, 64), matching the PyTorch Generator."""
    # TODO(synk): eval-mode BatchNorm (running statistics) is not implemented; batch
    # statistics are used, matching nn.BatchNorm2d in training mode.
    N, nz = z_nchw.shape[0], z_nchw.shape[1]
    x = _input_block(z_nchw.reshape(N, nz), params["w1"], params["g1"], params["b1"])
    for i in (2, 3, 4):
        x = _upsample_block(x, params[f"w{i}"], params[f"g{i}"], params[f"b{i}"])
    x = _output_block(x, params["w5"])
    return jnp.transpose(x, (0, 3, 1, 2))                      # NHWC -> NCHW


# -----------------------------------------------------------------------------
# Pure-XLA reference (lhs-dilated conv formulation) for a loose sanity check
# -----------------------------------------------------------------------------
def _reference_forward(z_nchw, params):
    def conv_t(x, w, stride, pad):
        xh = jnp.transpose(x, (0, 2, 3, 1))
        w_hwio = jnp.transpose(w[:, :, ::-1, ::-1], (2, 3, 0, 1))
        p = w.shape[2] - 1 - pad
        y = jax.lax.conv_general_dilated(
            xh, w_hwio, window_strides=(1, 1), padding=((p, p), (p, p)),
            lhs_dilation=(stride, stride),
            dimension_numbers=("NHWC", "HWIO", "NHWC"))
        return jnp.transpose(y, (0, 3, 1, 2))

    def bn_relu(x, g, b):
        mean = jnp.mean(x, axis=(0, 2, 3), keepdims=True)
        var = jnp.var(x, axis=(0, 2, 3), keepdims=True)
        y = (x - mean) * jax.lax.rsqrt(var + _BN_EPS)
        return jnp.maximum(y * g.reshape(1, -1, 1, 1) + b.reshape(1, -1, 1, 1), 0.0)

    x = bn_relu(conv_t(z_nchw, params["w1"], 1, 0), params["g1"], params["b1"])
    for i in (2, 3, 4):
        x = bn_relu(conv_t(x, params[f"w{i}"], 2, 1), params[f"g{i}"], params[f"b{i}"])
    return jnp.tanh(conv_t(x, params["w5"], 2, 1))


def init_params(key, nz=16, ngf=8, nc=1):
    """DCGAN-style init; weight layout matches nn.ConvTranspose2d (Cin, Cout, kH, kW)."""
    chans = [nz, ngf * 8, ngf * 4, ngf * 2, ngf, nc]
    params = {}
    keys = jax.random.split(key, 16)
    ki = 0
    for layer in range(1, 6):
        cin, cout = chans[layer - 1], chans[layer]
        params[f"w{layer}"] = 0.02 * jax.random.normal(
            keys[ki], (cin, cout, 4, 4), dtype=jnp.float32)
        ki += 1
        if layer < 5:                                          # BN after first four layers
            params[f"g{layer}"] = 1.0 + 0.02 * jax.random.normal(
                keys[ki], (cout,), dtype=jnp.float32)
            ki += 1
            params[f"b{layer}"] = jnp.zeros((cout,), dtype=jnp.float32)
    return params


if __name__ == "__main__":
    # Small config consistent with the module: nz=16, ngf=8, nc=1, batch=2.
    nz, ngf, nc, batch = 16, 8, 1, 2
    key = jax.random.PRNGKey(0)
    pkey, zkey = jax.random.split(key)
    params = init_params(pkey, nz=nz, ngf=ngf, nc=nc)
    z = jax.random.normal(zkey, (batch, nz, 1, 1), dtype=jnp.float32)

    img = jax.jit(generator_forward)(z, params)
    img = jax.block_until_ready(img)
    assert img.shape == (batch, nc, 64, 64), img.shape
    assert bool(jnp.all(jnp.isfinite(img)))

    # Loose check vs. a pure-XLA reference (bf16 MXU inputs / intermediates => drift).
    ref = jax.jit(_reference_forward)(z, params)
    err = float(jnp.max(jnp.abs(img - ref)))
    assert err < 0.1, f"mismatch vs reference: max abs err {err}"

    print("KERNEL_OK")
</pallas_src>

<mosaic_0001>
module attributes {stable_mosaic.version = 11 : i64} {
  func.func @_fused_conv_bn_relu_kernel(%arg0: i32, %arg1: memref<8x16xbf16, #tpu.memory_space<vmem>>, %arg2: memref<16x1024xbf16, #tpu.memory_space<vmem>>, %arg3: memref<1x1024xf32, #tpu.memory_space<vmem>>, %arg4: memref<1x1024xf32, #tpu.memory_space<vmem>>, %arg5: memref<8x1024xbf16, #tpu.memory_space<vmem>>) attributes {dimension_semantics = [#tpu.dimension_semantics<arbitrary>], iteration_bounds = array<i64: 1>, scalar_prefetch = 0 : i64, scratch_operands = 0 : i64, tpu.core_type = #tpu.core_type<tc>, window_params = [{pipeline_mode = #tpu.pipeline_mode<synchronous>, transform_indices = @transform_0, window_bounds = array<i64: 8, 16>}, {pipeline_mode = #tpu.pipeline_mode<synchronous>, transform_indices = @transform_1, window_bounds = array<i64: 16, 1024>}, {pipeline_mode = #tpu.pipeline_mode<synchronous>, transform_indices = @transform_2, window_bounds = array<i64: 1, 1024>}, {pipeline_mode = #tpu.pipeline_mode<synchronous>, transform_indices = @transform_3, window_bounds = array<i64: 1, 1024>}, {pipeline_mode = #tpu.pipeline_mode<synchronous>, transform_indices = @transform_4, window_bounds = array<i64: 8, 1024>}]} {
    %c0 = arith.constant 0 : index
    %c0_0 = arith.constant 0 : index
    %0 = vector.load %arg1[%c0, %c0_0] : memref<8x16xbf16, #tpu.memory_space<vmem>>, vector<8x16xbf16>
    %c0_1 = arith.constant 0 : index
    %c0_2 = arith.constant 0 : index
    %1 = vector.load %arg2[%c0_1, %c0_2] : memref<16x1024xbf16, #tpu.memory_space<vmem>>, vector<16x1024xbf16>
    %cst = arith.constant dense<0.000000e+00> : vector<8x1024xf32>
    %2 = tpu.matmul %0, %1, %cst {dimension_numbers = #tpu.dot_dimension_numbers<[1], [0], [0], [1], [0, 0, 1, 1], [], []>} : vector<8x16xbf16>, vector<16x1024xbf16>, vector<8x1024xf32> -> vector<8x1024xf32>
    %cst_3 = arith.constant dense<0.000000e+00> : vector<1024xf32>
    %3 = vector.multi_reduction <add>, %2, %cst_3 [0] : vector<8x1024xf32> to vector<1024xf32>
    %4 = vector.shape_cast %3 : vector<1024xf32> to vector<1x1024xf32>
    %5 = arith.mulf %2, %2 : vector<8x1024xf32>
    %cst_4 = arith.constant dense<0.000000e+00> : vector<1024xf32>
    %6 = vector.multi_reduction <add>, %5, %cst_4 [0] : vector<8x1024xf32> to vector<1024xf32>
    %7 = vector.shape_cast %6 : vector<1024xf32> to vector<1x1024xf32>
    %c64_i32 = arith.constant 64 : i32
    %8 = tpu.dynamic_rotate %4 by %c64_i32 dim 1 : vector<1x1024xf32>, i32 -> vector<1x1024xf32>
    %9 = arith.addf %4, %8 : vector<1x1024xf32>
    %c64_i32_5 = arith.constant 64 : i32
    %10 = tpu.dynamic_rotate %7 by %c64_i32_5 dim 1 : vector<1x1024xf32>, i32 -> vector<1x1024xf32>
    %11 = arith.addf %7, %10 : vector<1x1024xf32>
    %c128_i32 = arith.constant 128 : i32
    %12 = tpu.dynamic_rotate %4 by %c128_i32 dim 1 : vector<1x1024xf32>, i32 -> vector<1x1024xf32>
    %13 = arith.addf %9, %12 : vector<1x1024xf32>
    %c128_i32_6 = arith.constant 128 : i32
    %14 = tpu.dynamic_rotate %7 by %c128_i32_6 dim 1 : vector<1x1024xf32>, i32 -> vector<1x1024xf32>
    %15 = arith.addf %11, %14 : vector<1x1024xf32>
    %c192_i32 = arith.constant 192 : i32
    %16 = tpu.dynamic_rotate %4 by %c192_i32 dim 1 : vector<1x1024xf32>, i32 -> vector<1x1024xf32>
    %17 = arith.addf %13, %16 : vector<1x1024xf32>
    %c192_i32_7 = arith.constant 192 : i32
    %18 = tpu.dynamic_rotate %7 by %c192_i32_7 dim 1 : vector<1x1024xf32>, i32 -> vector<1x1024xf32>
    %19 = arith.addf %15, %18 : vector<1x1024xf32>
    %c256_i32 = arith.constant 256 : i32
    %20 = tpu.dynamic_rotate %4 by %c256_i32 dim 1 : vector<1x1024xf32>, i32 -> vector<1x1024xf32>
    %21 = arith.addf %17, %20 : vector<1x1024xf32>
    %c256_i32_8 = arith.constant 256 : i32
    %22 = tpu.dynamic_rotate %7 by %c256_i32_8 dim 1 : vector<1x1024xf32>, i32 -> vector<1x1024xf32>
    %23 = arith.addf %19, %22 : vector<1x1024xf32>
    %c320_i32 = arith.constant 320 : i32
    %24 = tpu.dynamic_rotate %4 by %c320_i32 dim 1 : vector<1x1024xf32>, i32 -> vector<1x1024xf32>
    %25 = arith.addf %21, %24 : vector<1x1024xf32>
    %c320_i32_9 = arith.constant 320 : i32
    %26 = tpu.dynamic_rotate %7 by %c320_i32_9 dim 1 : vector<1x1024xf32>, i32 -> vector<1x1024xf32>
    %27 = arith.addf %23, %26 : vector<1x1024xf32>
    %c384_i32 = arith.constant 384 : i32
    %28 = tpu.dynamic_rotate %4 by %c384_i32 dim 1 : vector<1x1024xf32>, i32 -> vector<1x1024xf32>
    %29 = arith.addf %25, %28 : vector<1x1024xf32>
    %c384_i32_10 = arith.constant 384 : i32
    %30 = tpu.dynamic_rotate %7 by %c384_i32_10 dim 1 : vector<1x1024xf32>, i32 -> vector<1x1024xf32>
    %31 = arith.addf %27, %30 : vector<1x1024xf32>
    %c448_i32 = arith.constant 448 : i32
    %32 = tpu.dynamic_rotate %4 by %c448_i32 dim 1 : vector<1x1024xf32>, i32 -> vector<1x1024xf32>
    %33 = arith.addf %29, %32 : vector<1x1024xf32>
    %c448_i32_11 = arith.constant 448 : i32
    %34 = tpu.dynamic_rotate %7 by %c448_i32_11 dim 1 : vector<1x1024xf32>, i32 -> vector<1x1024xf32>
    %35 = arith.addf %31, %34 : vector<1x1024xf32>
    %c512_i32 = arith.constant 512 : i32
    %36 = tpu.dynamic_rotate %4 by %c512_i32 dim 1 : vector<1x1024xf32>, i32 -> vector<1x1024xf32>
    %37 = arith.addf %33, %36 : vector<1x1024xf32>
    %c512_i32_12 = arith.constant 512 : i32
    %38 = tpu.dynamic_rotate %7 by %c512_i32_12 dim 1 : vector<1x1024xf32>, i32 -> vector<1x1024xf32>
    %39 = arith.addf %35, %38 : vector<1x1024xf32>
    %c576_i32 = arith.constant 576 : i32
    %40 = tpu.dynamic_rotate %4 by %c576_i32 dim 1 : vector<1x1024xf32>, i32 -> vector<1x1024xf32>
    %41 = arith.addf %37, %40 : vector<1x1024xf32>
    %c576_i32_13 = arith.constant 576 : i32
    %42 = tpu.dynamic_rotate %7 by %c576_i32_13 dim 1 : vector<1x1024xf32>, i32 -> vector<1x1024xf32>
    %43 = arith.addf %39, %42 : vector<1x1024xf32>
    %c640_i32 = arith.constant 640 : i32
    %44 = tpu.dynamic_rotate %4 by %c640_i32 dim 1 : vector<1x1024xf32>, i32 -> vector<1x1024xf32>
    %45 = arith.addf %41, %44 : vector<1x1024xf32>
    %c640_i32_14 = arith.constant 640 : i32
    %46 = tpu.dynamic_rotate %7 by %c640_i32_14 dim 1 : vector<1x1024xf32>, i32 -> vector<1x1024xf32>
    %47 = arith.addf %43, %46 : vector<1x1024xf32>
    %c704_i32 = arith.constant 704 : i32
    %48 = tpu.dynamic_rotate %4 by %c704_i32 dim 1 : vector<1x1024xf32>, i32 -> vector<1x1024xf32>
    %49 = arith.addf %45, %48 : vector<1x1024xf32>
    %c704_i32_15 = arith.constant 704 : i32
    %50 = tpu.dynamic_rotate %7 by %c704_i32_15 dim 1 : vector<1x1024xf32>, i32 -> vector<1x1024xf32>
    %51 = arith.addf %47, %50 : vector<1x1024xf32>
    %c768_i32 = arith.constant 768 : i32
    %52 = tpu.dynamic_rotate %4 by %c768_i32 dim 1 : vector<1x1024xf32>, i32 -> vector<1x1024xf32>
    %53 = arith.addf %49, %52 : vector<1x1024xf32>
    %c768_i32_16 = arith.constant 768 : i32
    %54 = tpu.dynamic_rotate %7 by %c768_i32_16 dim 1 : vector<1x1024xf32>, i32 -> vector<1x1024xf32>
    %55 = arith.addf %51, %54 : vector<1x1024xf32>
    %c832_i32 = arith.constant 832 : i32
    %56 = tpu.dynamic_rotate %4 by %c832_i32 dim 1 : vector<1x1024xf32>, i32 -> vector<1x1024xf32>
    %57 = arith.addf %53, %56 : vector<1x1024xf32>
    %c832_i32_17 = arith.constant 832 : i32
    %58 = tpu.dynamic_rotate %7 by %c832_i32_17 dim 1 : vector<1x1024xf32>, i32 -> vector<1x1024xf32>
    %59 = arith.addf %55, %58 : vector<1x1024xf32>
    %c896_i32 = arith.constant 896 : i32
    %60 = tpu.dynamic_rotate %4 by %c896_i32 dim 1 : vector<1x1024xf32>, i32 -> vector<1x1024xf32>
    %61 = arith.addf %57, %60 : vector<1x1024xf32>
    %c896_i32_18 = arith.constant 896 : i32
    %62 = tpu.dynamic_rotate %7 by %c896_i32_18 dim 1 : vector<1x1024xf32>, i32 -> vector<1x1024xf32>
    %63 = arith.addf %59, %62 : vector<1x1024xf32>
    %c960_i32 = arith.constant 960 : i32
    %64 = tpu.dynamic_rotate %4 by %c960_i32 dim 1 : vector<1x1024xf32>, i32 -> vector<1x1024xf32>
    %65 = arith.addf %61, %64 : vector<1x1024xf32>
    %c960_i32_19 = arith.constant 960 : i32
    %66 = tpu.dynamic_rotate %7 by %c960_i32_19 dim 1 : vector<1x1024xf32>, i32 -> vector<1x1024xf32>
    %67 = arith.addf %63, %66 : vector<1x1024xf32>
    %cst_20 = arith.constant 3.125000e-02 : f32
    %68 = vector.broadcast %cst_20 : f32 to vector<1x1024xf32>
    %69 = arith.mulf %65, %68 : vector<1x1024xf32>
    %cst_21 = arith.constant 3.125000e-02 : f32
    %70 = vector.broadcast %cst_21 : f32 to vector<1x1024xf32>
    %71 = arith.mulf %67, %70 : vector<1x1024xf32>
    %72 = arith.mulf %69, %69 : vector<1x1024xf32>
    %73 = arith.subf %71, %72 : vector<1x1024xf32>
    %cst_22 = arith.constant 0.000000e+00 : f32
    %74 = vector.broadcast %cst_22 : f32 to vector<1x1024xf32>
    %75 = arith.maximumf %73, %74 : vector<1x1024xf32>
    %c0_23 = arith.constant 0 : index
    %c0_24 = arith.constant 0 : index
    %76 = vector.load %arg3[%c0_23, %c0_24] : memref<1x1024xf32, #tpu.memory_space<vmem>>, vector<1x1024xf32>
    %cst_25 = arith.constant 9.99999974E-6 : f32
    %77 = vector.broadcast %cst_25 : f32 to vector<1x1024xf32>
    %78 = arith.addf %75, %77 : vector<1x1024xf32>
    %79 = math.rsqrt %78 : vector<1x1024xf32>
    %80 = arith.mulf %76, %79 : vector<1x1024xf32>
    %c0_26 = arith.constant 0 : index
    %c0_27 = arith.constant 0 : index
    %81 = vector.load %arg4[%c0_26, %c0_27] : memref<1x1024xf32, #tpu.memory_space<vmem>>, vector<1x1024xf32>
    %82 = arith.mulf %69, %80 : vector<1x1024xf32>
    %83 = arith.subf %81, %82 : vector<1x1024xf32>
    %84 = vector.broadcast %80 : vector<1x1024xf32> to vector<8x1024xf32>
    %85 = arith.mulf %2, %84 : vector<8x1024xf32>
    %86 = vector.broadcast %83 : vector<1x1024xf32> to vector<8x1024xf32>
    %87 = arith.addf %85, %86 : vector<8x1024xf32>
    %cst_28 = arith.constant 0.000000e+00 : f32
    %88 = vector.broadcast %cst_28 : f32 to vector<8x1024xf32>
    %89 = arith.maximumf %87, %88 : vector<8x1024xf32>
    %90 = arith.truncf %89 : vector<8x1024xf32> to vector<8x1024xbf16>
    %c0_29 = arith.constant 0 : index
    %c0_30 = arith.constant 0 : index
    %91 = vector.load %arg5[%c0_29, %c0_30] : memref<8x1024xbf16, #tpu.memory_space<vmem>>, vector<8x1024xbf16>
    tpu.vector_store %arg5[%c0_29, %c0_30], %90 {strides = array<i32>} : memref<8x1024xbf16, #tpu.memory_space<vmem>>, vector<8x1024xbf16>,
    return
  }
  func.func @transform_0(%arg0: i32) -> (i32, i32) {
    %c0_i32 = arith.constant 0 : i32
    %c0_i32_0 = arith.constant 0 : i32
    %c0_i32_1 = arith.constant 0 : i32
    return %c0_i32, %c0_i32_0 : i32, i32
  }
  func.func @transform_1(%arg0: i32) -> (i32, i32) {
    %c0_i32 = arith.constant 0 : i32
    %c0_i32_0 = arith.constant 0 : i32
    %c0_i32_1 = arith.constant 0 : i32
    return %c0_i32, %c0_i32_0 : i32, i32
  }
  func.func @transform_2(%arg0: i32) -> (i32, i32) {
    %c0_i32 = arith.constant 0 : i32
    %c0_i32_0 = arith.constant 0 : i32
    %c0_i32_1 = arith.constant 0 : i32
    return %c0_i32, %c0_i32_0 : i32, i32
  }
  func.func @transform_3(%arg0: i32) -> (i32, i32) {
    %c0_i32 = arith.constant 0 : i32
    %c0_i32_0 = arith.constant 0 : i32
    %c0_i32_1 = arith.constant 0 : i32
    return %c0_i32, %c0_i32_0 : i32, i32
  }
  func.func @transform_4(%arg0: i32) -> (i32, i32) {
    %c0_i32 = arith.constant 0 : i32
    %c0_i32_0 = arith.constant 0 : i32
    %c0_i32_1 = arith.constant 0 : i32
    return %c0_i32, %c0_i32_0 : i32, i32
  }
}

module attributes {stable_mosaic.version = 11 : i64} {
  func.func @_fused_conv_bn_relu_kernel(%arg0: i32, %arg1: memref<56x256xbf16, #tpu.memory_space<vmem>>, %arg2: memref<256x128xbf16, #tpu.memory_space<vmem>>, %arg3: memref<56x128xbf16, #tpu.memory_space<vmem>>, %arg4: memref<1x128xf32, #tpu.memory_space<vmem>>, %arg5: memref<1x128xf32, #tpu.memory_space<vmem>>, %arg6: memref<56x128xbf16, #tpu.memory_space<vmem>>) attributes {dimension_semantics = [#tpu.dimension_semantics<arbitrary>], iteration_bounds = array<i64: 1>, scalar_prefetch = 0 : i64, scratch_operands = 0 : i64, tpu.core_type = #tpu.core_type<tc>, window_params = [{pipeline_mode = #tpu.pipeline_mode<synchronous>, transform_indices = @transform_0, window_bounds = array<i64: 56, 256>}, {pipeline_mode = #tpu.pipeline_mode<synchronous>, transform_indices = @transform_1, window_bounds = array<i64: 256, 128>}, {pipeline_mode = #tpu.pipeline_mode<synchronous>, transform_indices = @transform_2, window_bounds = array<i64: 56, 128>}, {pipeline_mode = #tpu.pipeline_mode<synchronous>, transform_indices = @transform_3, window_bounds = array<i64: 1, 128>}, {pipeline_mode = #tpu.pipeline_mode<synchronous>, transform_indices = @transform_4, window_bounds = array<i64: 1, 128>}, {pipeline_mode = #tpu.pipeline_mode<synchronous>, transform_indices = @transform_5, window_bounds = array<i64: 56, 128>}]} {
    %c0 = arith.constant 0 : index
    %c0_0 = arith.constant 0 : index
    %0 = vector.load %arg1[%c0, %c0_0] : memref<56x256xbf16, #tpu.memory_space<vmem>>, vector<56x256xbf16>
    %c0_1 = arith.constant 0 : index
    %c0_2 = arith.constant 0 : index
    %1 = vector.load %arg2[%c0_1, %c0_2] : memref<256x128xbf16, #tpu.memory_space<vmem>>, vector<256x128xbf16>
    %cst = arith.constant dense<0.000000e+00> : vector<56x128xf32>
    %2 = tpu.matmul %0, %1, %cst {dimension_numbers = #tpu.dot_dimension_numbers<[1], [0], [0], [1], [0, 0, 1, 1], [], []>} : vector<56x256xbf16>, vector<256x128xbf16>, vector<56x128xf32> -> vector<56x128xf32>
    %c0_3 = arith.constant 0 : index
    %c0_4 = arith.constant 0 : index
    %3 = vector.load %arg3[%c0_3, %c0_4] : memref<56x128xbf16, #tpu.memory_space<vmem>>, vector<56x128xbf16>
    %4 = arith.extf %3 : vector<56x128xbf16> to vector<56x128xf32>
    %5 = arith.mulf %2, %4 : vector<56x128xf32>
    %cst_5 = arith.constant dense<0.000000e+00> : vector<128xf32>
    %6 = vector.multi_reduction <add>, %5, %cst_5 [0] : vector<56x128xf32> to vector<128xf32>
    %7 = vector.shape_cast %6 : vector<128xf32> to vector<1x128xf32>
    %8 = arith.mulf %5, %2 : vector<56x128xf32>
    %cst_6 = arith.constant dense<0.000000e+00> : vector<128xf32>
    %9 = vector.multi_reduction <add>, %8, %cst_6 [0] : vector<56x128xf32> to vector<128xf32>
    %10 = vector.shape_cast %9 : vector<128xf32> to vector<1x128xf32>
    %c32_i32 = arith.constant 32 : i32
    %11 = tpu.dynamic_rotate %7 by %c32_i32 dim 1 : vector<1x128xf32>, i32 -> vector<1x128xf32>
    %12 = arith.addf %7, %11 : vector<1x128xf32>
    %c32_i32_7 = arith.constant 32 : i32
    %13 = tpu.dynamic_rotate %10 by %c32_i32_7 dim 1 : vector<1x128xf32>, i32 -> vector<1x128xf32>
    %14 = arith.addf %10, %13 : vector<1x128xf32>
    %c64_i32 = arith.constant 64 : i32
    %15 = tpu.dynamic_rotate %7 by %c64_i32 dim 1 : vector<1x128xf32>, i32 -> vector<1x128xf32>
    %16 = arith.addf %12, %15 : vector<1x128xf32>
    %c64_i32_8 = arith.constant 64 : i32
    %17 = tpu.dynamic_rotate %10 by %c64_i32_8 dim 1 : vector<1x128xf32>, i32 -> vector<1x128xf32>
    %18 = arith.addf %14, %17 : vector<1x128xf32>
    %c96_i32 = arith.constant 96 : i32
    %19 = tpu.dynamic_rotate %7 by %c96_i32 dim 1 : vector<1x128xf32>, i32 -> vector<1x128xf32>
    %20 = arith.addf %16, %19 : vector<1x128xf32>
    %c96_i32_9 = arith.constant 96 : i32
    %21 = tpu.dynamic_rotate %10 by %c96_i32_9 dim 1 : vector<1x128xf32>, i32 -> vector<1x128xf32>
    %22 = arith.addf %18, %21 : vector<1x128xf32>
    %cst_10 = arith.constant 7.812500e-03 : f32
    %23 = vector.broadcast %cst_10 : f32 to vector<1x128xf32>
    %24 = arith.mulf %20, %23 : vector<1x128xf32>
    %cst_11 = arith.constant 7.812500e-03 : f32
    %25 = vector.broadcast %cst_11 : f32 to vector<1x128xf32>
    %26 = arith.mulf %22, %25 : vector<1x128xf32>
    %27 = arith.mulf %24, %24 : vector<1x128xf32>
    %28 = arith.subf %26, %27 : vector<1x128xf32>
    %cst_12 = arith.constant 0.000000e+00 : f32
    %29 = vector.broadcast %cst_12 : f32 to vector<1x128xf32>
    %30 = arith.maximumf %28, %29 : vector<1x128xf32>
    %c0_13 = arith.constant 0 : index
    %c0_14 = arith.constant 0 : index
    %31 = vector.load %arg4[%c0_13, %c0_14] : memref<1x128xf32, #tpu.memory_space<vmem>>, vector<1x128xf32>
    %cst_15 = arith.constant 9.99999974E-6 : f32
    %32 = vector.broadcast %cst_15 : f32 to vector<1x128xf32>
    %33 = arith.addf %30, %32 : vector<1x128xf32>
    %34 = math.rsqrt %33 : vector<1x128xf32>
    %35 = arith.mulf %31, %34 : vector<1x128xf32>
    %c0_16 = arith.constant 0 : index
    %c0_17 = arith.constant 0 : index
    %36 = vector.load %arg5[%c0_16, %c0_17] : memref<1x128xf32, #tpu.memory_space<vmem>>, vector<1x128xf32>
    %37 = arith.mulf %24, %35 : vector<1x128xf32>
    %38 = arith.subf %36, %37 : vector<1x128xf32>
    %39 = vector.broadcast %35 : vector<1x128xf32> to vector<56x128xf32>
    %40 = arith.mulf %2, %39 : vector<56x128xf32>
    %41 = vector.broadcast %38 : vector<1x128xf32> to vector<56x128xf32>
    %42 = arith.addf %40, %41 : vector<56x128xf32>
    %cst_18 = arith.constant 0.000000e+00 : f32
    %43 = vector.broadcast %cst_18 : f32 to vector<56x128xf32>
    %44 = arith.maximumf %42, %43 : vector<56x128xf32>
    %45 = arith.truncf %44 : vector<56x128xf32> to vector<56x128xbf16>
    %c0_19 = arith.constant 0 : index
    %c0_20 = arith.constant 0 : index
    %46 = vector.load %arg6[%c0_19, %c0_20] : memref<56x128xbf16, #tpu.memory_space<vmem>>, vector<56x128xbf16>
    tpu.vector_store %arg6[%c0_19, %c0_20], %45 {strides = array<i32>} : memref<56x128xbf16, #tpu.memory_space<vmem>>, vector<56x128xbf16>,
    return
  }
  func.func @transform_0(%arg0: i32) -> (i32, i32) {
    %c0_i32 = arith.constant 0 : i32
    %c0_i32_0 = arith.constant 0 : i32
    %c0_i32_1 = arith.constant 0 : i32
    return %c0_i32, %c0_i32_0 : i32, i32
  }
  func.func @transform_1(%arg0: i32) -> (i32, i32) {
    %c0_i32 = arith.constant 0 : i32
    %c0_i32_0 = arith.constant 0 : i32
    %c0_i32_1 = arith.constant 0 : i32
    return %c0_i32, %c0_i32_0 : i32, i32
  }
  func.func @transform_2(%arg0: i32) -> (i32, i32) {
    %c0_i32 = arith.constant 0 : i32
    %c0_i32_0 = arith.constant 0 : i32
    %c0_i32_1 = arith.constant 0 : i32
    return %c0_i32, %c0_i32_0 : i32, i32
  }
  func.func @transform_3(%arg0: i32) -> (i32, i32) {
    %c0_i32 = arith.constant 0 : i32
    %c0_i32_0 = arith.constant 0 : i32
    %c0_i32_1 = arith.constant 0 : i32
    return %c0_i32, %c0_i32_0 : i32, i32
  }
  func.func @transform_4(%arg0: i32) -> (i32, i32) {
    %c0_i32 = arith.constant 0 : i32
    %c0_i32_0 = arith.constant 0 : i32
    %c0_i32_1 = arith.constant 0 : i32
    return %c0_i32, %c0_i32_0 : i32, i32
  }
  func.func @transform_5(%arg0: i32) -> (i32, i32) {
    %c0_i32 = arith.constant 0 : i32
    %c0_i32_0 = arith.constant 0 : i32
    %c0_i32_1 = arith.constant 0 : i32
    return %c0_i32, %c0_i32_0 : i32, i32
  }
}

module attributes {stable_mosaic.version = 11 : i64} {
  func.func @_fused_conv_bn_relu_kernel(%arg0: i32, %arg1: memref<168x128xbf16, #tpu.memory_space<vmem>>, %arg2: memref<128x128xbf16, #tpu.memory_space<vmem>>, %arg3: memref<168x128xbf16, #tpu.memory_space<vmem>>, %arg4: memref<1x128xf32, #tpu.memory_space<vmem>>, %arg5: memref<1x128xf32, #tpu.memory_space<vmem>>, %arg6: memref<168x128xbf16, #tpu.memory_space<vmem>>) attributes {dimension_semantics = [#tpu.dimension_semantics<arbitrary>], iteration_bounds = array<i64: 1>, scalar_prefetch = 0 : i64, scratch_operands = 0 : i64, tpu.core_type = #tpu.core_type<tc>, window_params = [{pipeline_mode = #tpu.pipeline_mode<synchronous>, transform_indices = @transform_0, window_bounds = array<i64: 168, 128>}, {pipeline_mode = #tpu.pipeline_mode<synchronous>, transform_indices = @transform_1, window_bounds = array<i64: 128, 128>}, {pipeline_mode = #tpu.pipeline_mode<synchronous>, transform_indices = @transform_2, window_bounds = array<i64: 168, 128>}, {pipeline_mode = #tpu.pipeline_mode<synchronous>, transform_indices = @transform_3, window_bounds = array<i64: 1, 128>}, {pipeline_mode = #tpu.pipeline_mode<synchronous>, transform_indices = @transform_4, window_bounds = array<i64: 1, 128>}, {pipeline_mode = #tpu.pipeline_mode<synchronous>, transform_indices = @transform_5, window_bounds = array<i64: 168, 128>}]} {
    %c0 = arith.constant 0 : index
    %c0_0 = arith.constant 0 : index
    %0 = vector.load %arg1[%c0, %c0_0] : memref<168x128xbf16, #tpu.memory_space<vmem>>, vector<168x128xbf16>
    %c0_1 = arith.constant 0 : index
    %c0_2 = arith.constant 0 : index
    %1 = vector.load %arg2[%c0_1, %c0_2] : memref<128x128xbf16, #tpu.memory_space<vmem>>, vector<128x128xbf16>
    %cst = arith.constant dense<0.000000e+00> : vector<168x128xf32>
    %2 = tpu.matmul %0, %1, %cst {dimension_numbers = #tpu.dot_dimension_numbers<[1], [0], [0], [1], [0, 0, 1, 1], [], []>} : vector<168x128xbf16>, vector<128x128xbf16>, vector<168x128xf32> -> vector<168x128xf32>
    %c0_3 = arith.constant 0 : index
    %c0_4 = arith.constant 0 : index
    %3 = vector.load %arg3[%c0_3, %c0_4] : memref<168x128xbf16, #tpu.memory_space<vmem>>, vector<168x128xbf16>
    %4 = arith.extf %3 : vector<168x128xbf16> to vector<168x128xf32>
    %5 = arith.mulf %2, %4 : vector<168x128xf32>
    %cst_5 = arith.constant dense<0.000000e+00> : vector<128xf32>
    %6 = vector.multi_reduction <add>, %5, %cst_5 [0] : vector<168x128xf32> to vector<128xf32>
    %7 = vector.shape_cast %6 : vector<128xf32> to vector<1x128xf32>
    %8 = arith.mulf %5, %2 : vector<168x128xf32>
    %cst_6 = arith.constant dense<0.000000e+00> : vector<128xf32>
    %9 = vector.multi_reduction <add>, %8, %cst_6 [0] : vector<168x128xf32> to vector<128xf32>
    %10 = vector.shape_cast %9 : vector<128xf32> to vector<1x128xf32>
    %c16_i32 = arith.constant 16 : i32
    %11 = tpu.dynamic_rotate %7 by %c16_i32 dim 1 : vector<1x128xf32>, i32 -> vector<1x128xf32>
    %12 = arith.addf %7, %11 : vector<1x128xf32>
    %c16_i32_7 = arith.constant 16 : i32
    %13 = tpu.dynamic_rotate %10 by %c16_i32_7 dim 1 : vector<1x128xf32>, i32 -> vector<1x128xf32>
    %14 = arith.addf %10, %13 : vector<1x128xf32>
    %c32_i32 = arith.constant 32 : i32
    %15 = tpu.dynamic_rotate %7 by %c32_i32 dim 1 : vector<1x128xf32>, i32 -> vector<1x128xf32>
    %16 = arith.addf %12, %15 : vector<1x128xf32>
    %c32_i32_8 = arith.constant 32 : i32
    %17 = tpu.dynamic_rotate %10 by %c32_i32_8 dim 1 : vector<1x128xf32>, i32 -> vector<1x128xf32>
    %18 = arith.addf %14, %17 : vector<1x128xf32>
    %c48_i32 = arith.constant 48 : i32
    %19 = tpu.dynamic_rotate %7 by %c48_i32 dim 1 : vector<1x128xf32>, i32 -> vector<1x128xf32>
    %20 = arith.addf %16, %19 : vector<1x128xf32>
    %c48_i32_9 = arith.constant 48 : i32
    %21 = tpu.dynamic_rotate %10 by %c48_i32_9 dim 1 : vector<1x128xf32>, i32 -> vector<1x128xf32>
    %22 = arith.addf %18, %21 : vector<1x128xf32>
    %c64_i32 = arith.constant 64 : i32
    %23 = tpu.dynamic_rotate %7 by %c64_i32 dim 1 : vector<1x128xf32>, i32 -> vector<1x128xf32>
    %24 = arith.addf %20, %23 : vector<1x128xf32>
    %c64_i32_10 = arith.constant 64 : i32
    %25 = tpu.dynamic_rotate %10 by %c64_i32_10 dim 1 : vector<1x128xf32>, i32 -> vector<1x128xf32>
    %26 = arith.addf %22, %25 : vector<1x128xf32>
    %c80_i32 = arith.constant 80 : i32
    %27 = tpu.dynamic_rotate %7 by %c80_i32 dim 1 : vector<1x128xf32>, i32 -> vector<1x128xf32>
    %28 = arith.addf %24, %27 : vector<1x128xf32>
    %c80_i32_11 = arith.constant 80 : i32
    %29 = tpu.dynamic_rotate %10 by %c80_i32_11 dim 1 : vector<1x128xf32>, i32 -> vector<1x128xf32>
    %30 = arith.addf %26, %29 : vector<1x128xf32>
    %c96_i32 = arith.constant 96 : i32
    %31 = tpu.dynamic_rotate %7 by %c96_i32 dim 1 : vector<1x128xf32>, i32 -> vector<1x128xf32>
    %32 = arith.addf %28, %31 : vector<1x128xf32>
    %c96_i32_12 = arith.constant 96 : i32
    %33 = tpu.dynamic_rotate %10 by %c96_i32_12 dim 1 : vector<1x128xf32>, i32 -> vector<1x128xf32>
    %34 = arith.addf %30, %33 : vector<1x128xf32>
    %c112_i32 = arith.constant 112 : i32
    %35 = tpu.dynamic_rotate %7 by %c112_i32 dim 1 : vector<1x128xf32>, i32 -> vector<1x128xf32>
    %36 = arith.addf %32, %35 : vector<1x128xf32>
    %c112_i32_13 = arith.constant 112 : i32
    %37 = tpu.dynamic_rotate %10 by %c112_i32_13 dim 1 : vector<1x128xf32>, i32 -> vector<1x128xf32>
    %38 = arith.addf %34, %37 : vector<1x128xf32>
    %cst_14 = arith.constant 0.001953125 : f32
    %39 = vector.broadcast %cst_14 : f32 to vector<1x128xf32>
    %40 = arith.mulf %36, %39 : vector<1x128xf32>
    %cst_15 = arith.constant 0.001953125 : f32
    %41 = vector.broadcast %cst_15 : f32 to vector<1x128xf32>
    %42 = arith.mulf %38, %41 : vector<1x128xf32>
    %43 = arith.mulf %40, %40 : vector<1x128xf32>
    %44 = arith.subf %42, %43 : vector<1x128xf32>
    %cst_16 = arith.constant 0.000000e+00 : f32
    %45 = vector.broadcast %cst_16 : f32 to vector<1x128xf32>
    %46 = arith.maximumf %44, %45 : vector<1x128xf32>
    %c0_17 = arith.constant 0 : index
    %c0_18 = arith.constant 0 : index
    %47 = vector.load %arg4[%c0_17, %c0_18] : memref<1x128xf32, #tpu.memory_space<vmem>>, vector<1x128xf32>
    %cst_19 = arith.constant 9.99999974E-6 : f32
    %48 = vector.broadcast %cst_19 : f32 to vector<1x128xf32>
    %49 = arith.addf %46, %48 : vector<1x128xf32>
    %50 = math.rsqrt %49 : vector<1x128xf32>
    %51 = arith.mulf %47, %50 : vector<1x128xf32>
    %c0_20 = arith.constant 0 : index
    %c0_21 = arith.constant 0 : index
    %52 = vector.load %arg5[%c0_20, %c0_21] : memref<1x128xf32, #tpu.memory_space<vmem>>, vector<1x128xf32>
    %53 = arith.mulf %40, %51 : vector<1x128xf32>
    %54 = arith.subf %52, %53 : vector<1x128xf32>
    %55 = vector.broadcast %51 : vector<1x128xf32> to vector<168x128xf32>
    %56 = arith.mulf %2, %55 : vector<168x128xf32>
    %57 = vector.broadcast %54 : vector<1x128xf32> to vector<168x128xf32>
    %58 = arith.addf %56, %57 : vector<168x128xf32>
    %cst_22 = arith.constant 0.000000e+00 : f32
    %59 = vector.broadcast %cst_22 : f32 to vector<168x128xf32>
    %60 = arith.maximumf %58, %59 : vector<168x128xf32>
    %61 = arith.truncf %60 : vector<168x128xf32> to vector<168x128xbf16>
    %c0_23 = arith.constant 0 : index
    %c0_24 = arith.constant 0 : index
    %62 = vector.load %arg6[%c0_23, %c0_24] : memref<168x128xbf16, #tpu.memory_space<vmem>>, vector<168x128xbf16>
    tpu.vector_store %arg6[%c0_23, %c0_24], %61 {strides = array<i32>} : memref<168x128xbf16, #tpu.memory_space<vmem>>, vector<168x128xbf16>,
    return
  }
  func.func @transform_0(%arg0: i32) -> (i32, i32) {
    %c0_i32 = arith.constant 0 : i32
    %c0_i32_0 = arith.constant 0 : i32
    %c0_i32_1 = arith.constant 0 : i32
    return %c0_i32, %c0_i32_0 : i32, i32
  }
  func.func @transform_1(%arg0: i32) -> (i32, i32) {
    %c0_i32 = arith.constant 0 : i32
    %c0_i32_0 = arith.constant 0 : i32
    %c0_i32_1 = arith.constant 0 : i32
    return %c0_i32, %c0_i32_0 : i32, i32
  }
  func.func @transform_2(%arg0: i32) -> (i32, i32) {
    %c0_i32 = arith.constant 0 : i32
    %c0_i32_0 = arith.constant 0 : i32
    %c0_i32_1 = arith.constant 0 : i32
    return %c0_i32, %c0_i32_0 : i32, i32
  }
  func.func @transform_3(%arg0: i32) -> (i32, i32) {
    %c0_i32 = arith.constant 0 : i32
    %c0_i32_0 = arith.constant 0 : i32
    %c0_i32_1 = arith.constant 0 : i32
    return %c0_i32, %c0_i32_0 : i32, i32
  }
  func.func @transform_4(%arg0: i32) -> (i32, i32) {
    %c0_i32 = arith.constant 0 : i32
    %c0_i32_0 = arith.constant 0 : i32
    %c0_i32_1 = arith.constant 0 : i32
    return %c0_i32, %c0_i32_0 : i32, i32
  }
  func.func @transform_5(%arg0: i32) -> (i32, i32) {
    %c0_i32 = arith.constant 0 : i32
    %c0_i32_0 = arith.constant 0 : i32
    %c0_i32_1 = arith.constant 0 : i32
    return %c0_i32, %c0_i32_0 : i32, i32
  }
}

module attributes {stable_mosaic.version = 11 : i64} {
  func.func @_fused_conv_bn_relu_kernel(%arg0: i32, %arg1: memref<584x64xbf16, #tpu.memory_space<vmem>>, %arg2: memref<64x128xbf16, #tpu.memory_space<vmem>>, %arg3: memref<584x128xbf16, #tpu.memory_space<vmem>>, %arg4: memref<1x128xf32, #tpu.memory_space<vmem>>, %arg5: memref<1x128xf32, #tpu.memory_space<vmem>>, %arg6: memref<584x128xbf16, #tpu.memory_space<vmem>>) attributes {dimension_semantics = [#tpu.dimension_semantics<arbitrary>], iteration_bounds = array<i64: 1>, scalar_prefetch = 0 : i64, scratch_operands = 0 : i64, tpu.core_type = #tpu.core_type<tc>, window_params = [{pipeline_mode = #tpu.pipeline_mode<synchronous>, transform_indices = @transform_0, window_bounds = array<i64: 584, 64>}, {pipeline_mode = #tpu.pipeline_mode<synchronous>, transform_indices = @transform_1, window_bounds = array<i64: 64, 128>}, {pipeline_mode = #tpu.pipeline_mode<synchronous>, transform_indices = @transform_2, window_bounds = array<i64: 584, 128>}, {pipeline_mode = #tpu.pipeline_mode<synchronous>, transform_indices = @transform_3, window_bounds = array<i64: 1, 128>}, {pipeline_mode = #tpu.pipeline_mode<synchronous>, transform_indices = @transform_4, window_bounds = array<i64: 1, 128>}, {pipeline_mode = #tpu.pipeline_mode<synchronous>, transform_indices = @transform_5, window_bounds = array<i64: 584, 128>}]} {
    %c0 = arith.constant 0 : index
    %c0_0 = arith.constant 0 : index
    %0 = vector.load %arg1[%c0, %c0_0] : memref<584x64xbf16, #tpu.memory_space<vmem>>, vector<584x64xbf16>
    %c0_1 = arith.constant 0 : index
    %c0_2 = arith.constant 0 : index
    %1 = vector.load %arg2[%c0_1, %c0_2] : memref<64x128xbf16, #tpu.memory_space<vmem>>, vector<64x128xbf16>
    %cst = arith.constant dense<0.000000e+00> : vector<584x128xf32>
    %2 = tpu.matmul %0, %1, %cst {dimension_numbers = #tpu.dot_dimension_numbers<[1], [0], [0], [1], [0, 0, 1, 1], [], []>} : vector<584x64xbf16>, vector<64x128xbf16>, vector<584x128xf32> -> vector<584x128xf32>
    %c0_3 = arith.constant 0 : index
    %c0_4 = arith.constant 0 : index
    %3 = vector.load %arg3[%c0_3, %c0_4] : memref<584x128xbf16, #tpu.memory_space<vmem>>, vector<584x128xbf16>
    %4 = arith.extf %3 : vector<584x128xbf16> to vector<584x128xf32>
    %5 = arith.mulf %2, %4 : vector<584x128xf32>
    %cst_5 = arith.constant dense<0.000000e+00> : vector<128xf32>
    %6 = vector.multi_reduction <add>, %5, %cst_5 [0] : vector<584x128xf32> to vector<128xf32>
    %7 = vector.shape_cast %6 : vector<128xf32> to vector<1x128xf32>
    %8 = arith.mulf %5, %2 : vector<584x128xf32>
    %cst_6 = arith.constant dense<0.000000e+00> : vector<128xf32>
    %9 = vector.multi_reduction <add>, %8, %cst_6 [0] : vector<584x128xf32> to vector<128xf32>
    %10 = vector.shape_cast %9 : vector<128xf32> to vector<1x128xf32>
    %c8_i32 = arith.constant 8 : i32
    %11 = tpu.dynamic_rotate %7 by %c8_i32 dim 1 : vector<1x128xf32>, i32 -> vector<1x128xf32>
    %12 = arith.addf %7, %11 : vector<1x128xf32>
    %c8_i32_7 = arith.constant 8 : i32
    %13 = tpu.dynamic_rotate %10 by %c8_i32_7 dim 1 : vector<1x128xf32>, i32 -> vector<1x128xf32>
    %14 = arith.addf %10, %13 : vector<1x128xf32>
    %c16_i32 = arith.constant 16 : i32
    %15 = tpu.dynamic_rotate %7 by %c16_i32 dim 1 : vector<1x128xf32>, i32 -> vector<1x128xf32>
    %16 = arith.addf %12, %15 : vector<1x128xf32>
    %c16_i32_8 = arith.constant 16 : i32
    %17 = tpu.dynamic_rotate %10 by %c16_i32_8 dim 1 : vector<1x128xf32>, i32 -> vector<1x128xf32>
    %18 = arith.addf %14, %17 : vector<1x128xf32>
    %c24_i32 = arith.constant 24 : i32
    %19 = tpu.dynamic_rotate %7 by %c24_i32 dim 1 : vector<1x128xf32>, i32 -> vector<1x128xf32>
    %20 = arith.addf %16, %19 : vector<1x128xf32>
    %c24_i32_9 = arith.constant 24 : i32
    %21 = tpu.dynamic_rotate %10 by %c24_i32_9 dim 1 : vector<1x128xf32>, i32 -> vector<1x128xf32>
    %22 = arith.addf %18, %21 : vector<1x128xf32>
    %c32_i32 = arith.constant 32 : i32
    %23 = tpu.dynamic_rotate %7 by %c32_i32 dim 1 : vector<1x128xf32>, i32 -> vector<1x128xf32>
    %24 = arith.addf %20, %23 : vector<1x128xf32>
    %c32_i32_10 = arith.constant 32 : i32
    %25 = tpu.dynamic_rotate %10 by %c32_i32_10 dim 1 : vector<1x128xf32>, i32 -> vector<1x128xf32>
    %26 = arith.addf %22, %25 : vector<1x128xf32>
    %c40_i32 = arith.constant 40 : i32
    %27 = tpu.dynamic_rotate %7 by %c40_i32 dim 1 : vector<1x128xf32>, i32 -> vector<1x128xf32>
    %28 = arith.addf %24, %27 : vector<1x128xf32>
    %c40_i32_11 = arith.constant 40 : i32
    %29 = tpu.dynamic_rotate %10 by %c40_i32_11 dim 1 : vector<1x128xf32>, i32 -> vector<1x128xf32>
    %30 = arith.addf %26, %29 : vector<1x128xf32>
    %c48_i32 = arith.constant 48 : i32
    %31 = tpu.dynamic_rotate %7 by %c48_i32 dim 1 : vector<1x128xf32>, i32 -> vector<1x128xf32>
    %32 = arith.addf %28, %31 : vector<1x128xf32>
    %c48_i32_12 = arith.constant 48 : i32
    %33 = tpu.dynamic_rotate %10 by %c48_i32_12 dim 1 : vector<1x128xf32>, i32 -> vector<1x128xf32>
    %34 = arith.addf %30, %33 : vector<1x128xf32>
    %c56_i32 = arith.constant 56 : i32
    %35 = tpu.dynamic_rotate %7 by %c56_i32 dim 1 : vector<1x128xf32>, i32 -> vector<1x128xf32>
    %36 = arith.addf %32, %35 : vector<1x128xf32>
    %c56_i32_13 = arith.constant 56 : i32
    %37 = tpu.dynamic_rotate %10 by %c56_i32_13 dim 1 : vector<1x128xf32>, i32 -> vector<1x128xf32>
    %38 = arith.addf %34, %37 : vector<1x128xf32>
    %c64_i32 = arith.constant 64 : i32
    %39 = tpu.dynamic_rotate %7 by %c64_i32 dim 1 : vector<1x128xf32>, i32 -> vector<1x128xf32>
    %40 = arith.addf %36, %39 : vector<1x128xf32>
    %c64_i32_14 = arith.constant 64 : i32
    %41 = tpu.dynamic_rotate %10 by %c64_i32_14 dim 1 : vector<1x128xf32>, i32 -> vector<1x128xf32>
    %42 = arith.addf %38, %41 : vector<1x128xf32>
    %c72_i32 = arith.constant 72 : i32
    %43 = tpu.dynamic_rotate %7 by %c72_i32 dim 1 : vector<1x128xf32>, i32 -> vector<1x128xf32>
    %44 = arith.addf %40, %43 : vector<1x128xf32>
    %c72_i32_15 = arith.constant 72 : i32
    %45 = tpu.dynamic_rotate %10 by %c72_i32_15 dim 1 : vector<1x128xf32>, i32 -> vector<1x128xf32>
    %46 = arith.addf %42, %45 : vector<1x128xf32>
    %c80_i32 = arith.constant 80 : i32
    %47 = tpu.dynamic_rotate %7 by %c80_i32 dim 1 : vector<1x128xf32>, i32 -> vector<1x128xf32>
    %48 = arith.addf %44, %47 : vector<1x128xf32>
    %c80_i32_16 = arith.constant 80 : i32
    %49 = tpu.dynamic_rotate %10 by %c80_i32_16 dim 1 : vector<1x128xf32>, i32 -> vector<1x128xf32>
    %50 = arith.addf %46, %49 : vector<1x128xf32>
    %c88_i32 = arith.constant 88 : i32
    %51 = tpu.dynamic_rotate %7 by %c88_i32 dim 1 : vector<1x128xf32>, i32 -> vector<1x128xf32>
    %52 = arith.addf %48, %51 : vector<1x128xf32>
    %c88_i32_17 = arith.constant 88 : i32
    %53 = tpu.dynamic_rotate %10 by %c88_i32_17 dim 1 : vector<1x128xf32>, i32 -> vector<1x128xf32>
    %54 = arith.addf %50, %53 : vector<1x128xf32>
    %c96_i32 = arith.constant 96 : i32
    %55 = tpu.dynamic_rotate %7 by %c96_i32 dim 1 : vector<1x128xf32>, i32 -> vector<1x128xf32>
    %56 = arith.addf %52, %55 : vector<1x128xf32>
    %c96_i32_18 = arith.constant 96 : i32
    %57 = tpu.dynamic_rotate %10 by %c96_i32_18 dim 1 : vector<1x128xf32>, i32 -> vector<1x128xf32>
    %58 = arith.addf %54, %57 : vector<1x128xf32>
    %c104_i32 = arith.constant 104 : i32
    %59 = tpu.dynamic_rotate %7 by %c104_i32 dim 1 : vector<1x128xf32>, i32 -> vector<1x128xf32>
    %60 = arith.addf %56, %59 : vector<1x128xf32>
    %c104_i32_19 = arith.constant 104 : i32
    %61 = tpu.dynamic_rotate %10 by %c104_i32_19 dim 1 : vector<1x128xf32>, i32 -> vector<1x128xf32>
    %62 = arith.addf %58, %61 : vector<1x128xf32>
    %c112_i32 = arith.constant 112 : i32
    %63 = tpu.dynamic_rotate %7 by %c112_i32 dim 1 : vector<1x128xf32>, i32 -> vector<1x128xf32>
    %64 = arith.addf %60, %63 : vector<1x128xf32>
    %c112_i32_20 = arith.constant 112 : i32
    %65 = tpu.dynamic_rotate %10 by %c112_i32_20 dim 1 : vector<1x128xf32>, i32 -> vector<1x128xf32>
    %66 = arith.addf %62, %65 : vector<1x128xf32>
    %c120_i32 = arith.constant 120 : i32
    %67 = tpu.dynamic_rotate %7 by %c120_i32 dim 1 : vector<1x128xf32>, i32 -> vector<1x128xf32>
    %68 = arith.addf %64, %67 : vector<1x128xf32>
    %c120_i32_21 = arith.constant 120 : i32
    %69 = tpu.dynamic_rotate %10 by %c120_i32_21 dim 1 : vector<1x128xf32>, i32 -> vector<1x128xf32>
    %70 = arith.addf %66, %69 : vector<1x128xf32>
    %cst_22 = arith.constant 4.8828125E-4 : f32
    %71 = vector.broadcast %cst_22 : f32 to vector<1x128xf32>
    %72 = arith.mulf %68, %71 : vector<1x128xf32>
    %cst_23 = arith.constant 4.8828125E-4 : f32
    %73 = vector.broadcast %cst_23 : f32 to vector<1x128xf32>
    %74 = arith.mulf %70, %73 : vector<1x128xf32>
    %75 = arith.mulf %72, %72 : vector<1x128xf32>
    %76 = arith.subf %74, %75 : vector<1x128xf32>
    %cst_24 = arith.constant 0.000000e+00 : f32
    %77 = vector.broadcast %cst_24 : f32 to vector<1x128xf32>
    %78 = arith.maximumf %76, %77 : vector<1x128xf32>
    %c0_25 = arith.constant 0 : index
    %c0_26 = arith.constant 0 : index
    %79 = vector.load %arg4[%c0_25, %c0_26] : memref<1x128xf32, #tpu.memory_space<vmem>>, vector<1x128xf32>
    %cst_27 = arith.constant 9.99999974E-6 : f32
    %80 = vector.broadcast %cst_27 : f32 to vector<1x128xf32>
    %81 = arith.addf %78, %80 : vector<1x128xf32>
    %82 = math.rsqrt %81 : vector<1x128xf32>
    %83 = arith.mulf %79, %82 : vector<1x128xf32>
    %c0_28 = arith.constant 0 : index
    %c0_29 = arith.constant 0 : index
    %84 = vector.load %arg5[%c0_28, %c0_29] : memref<1x128xf32, #tpu.memory_space<vmem>>, vector<1x128xf32>
    %85 = arith.mulf %72, %83 : vector<1x128xf32>
    %86 = arith.subf %84, %85 : vector<1x128xf32>
    %87 = vector.broadcast %83 : vector<1x128xf32> to vector<584x128xf32>
    %88 = arith.mulf %2, %87 : vector<584x128xf32>
    %89 = vector.broadcast %86 : vector<1x128xf32> to vector<584x128xf32>
    %90 = arith.addf %88, %89 : vector<584x128xf32>
    %cst_30 = arith.constant 0.000000e+00 : f32
    %91 = vector.broadcast %cst_30 : f32 to vector<584x128xf32>
    %92 = arith.maximumf %90, %91 : vector<584x128xf32>
    %93 = arith.truncf %92 : vector<584x128xf32> to vector<584x128xbf16>
    %c0_31 = arith.constant 0 : index
    %c0_32 = arith.constant 0 : index
    %94 = vector.load %arg6[%c0_31, %c0_32] : memref<584x128xbf16, #tpu.memory_space<vmem>>, vector<584x128xbf16>
    tpu.vector_store %arg6[%c0_31, %c0_32], %93 {strides = array<i32>} : memref<584x128xbf16, #tpu.memory_space<vmem>>, vector<584x128xbf16>,
    return
  }
  func.func @transform_0(%arg0: i32) -> (i32, i32) {
    %c0_i32 = arith.constant 0 : i32
    %c0_i32_0 = arith.constant 0 : i32
    %c0_i32_1 = arith.constant 0 : i32
    return %c0_i32, %c0_i32_0 : i32, i32
  }
  func.func @transform_1(%arg0: i32) -> (i32, i32) {
    %c0_i32 = arith.constant 0 : i32
    %c0_i32_0 = arith.constant 0 : i32
    %c0_i32_1 = arith.constant 0 : i32
    return %c0_i32, %c0_i32_0 : i32, i32
  }
  func.func @transform_2(%arg0: i32) -> (i32, i32) {
    %c0_i32 = arith.constant 0 : i32
    %c0_i32_0 = arith.constant 0 : i32
    %c0_i32_1 = arith.constant 0 : i32
    return %c0_i32, %c0_i32_0 : i32, i32
  }
  func.func @transform_3(%arg0: i32) -> (i32, i32) {
    %c0_i32 = arith.constant 0 : i32
    %c0_i32_0 = arith.constant 0 : i32
    %c0_i32_1 = arith.constant 0 : i32
    return %c0_i32, %c0_i32_0 : i32, i32
  }
  func.func @transform_4(%arg0: i32) -> (i32, i32) {
    %c0_i32 = arith.constant 0 : i32
    %c0_i32_0 = arith.constant 0 : i32
    %c0_i32_1 = arith.constant 0 : i32
    return %c0_i32, %c0_i32_0 : i32, i32
  }
  func.func @transform_5(%arg0: i32) -> (i32, i32) {
    %c0_i32 = arith.constant 0 : i32
    %c0_i32_0 = arith.constant 0 : i32
    %c0_i32_1 = arith.constant 0 : i32
    return %c0_i32, %c0_i32_0 : i32, i32
  }
}

module attributes {stable_mosaic.version = 11 : i64} {
  func.func @_matmul_tanh_kernel(%arg0: i32, %arg1: memref<1096x32xbf16, #tpu.memory_space<vmem>>, %arg2: memref<32x128xbf16, #tpu.memory_space<vmem>>, %arg3: memref<1096x128xf32, #tpu.memory_space<vmem>>) attributes {dimension_semantics = [#tpu.dimension_semantics<parallel>], iteration_bounds = array<i64: 2>, scalar_prefetch = 0 : i64, scratch_operands = 0 : i64, tpu.core_type = #tpu.core_type<tc>, window_params = [{transform_indices = @transform_0, window_bounds = array<i64: 1096, 32>}, {pipeline_mode = #tpu.pipeline_mode<synchronous>, transform_indices = @transform_1, window_bounds = array<i64: 32, 128>}, {transform_indices = @transform_2, window_bounds = array<i64: 1096, 128>}]} {
    %c0 = arith.constant 0 : index
    %c0_0 = arith.constant 0 : index
    %0 = vector.load %arg1[%c0, %c0_0] : memref<1096x32xbf16, #tpu.memory_space<vmem>>, vector<1096x32xbf16>
    %c0_1 = arith.constant 0 : index
    %c0_2 = arith.constant 0 : index
    %1 = vector.load %arg2[%c0_1, %c0_2] : memref<32x128xbf16, #tpu.memory_space<vmem>>, vector<32x128xbf16>
    %cst = arith.constant dense<0.000000e+00> : vector<1096x128xf32>
    %2 = tpu.matmul %0, %1, %cst {dimension_numbers = #tpu.dot_dimension_numbers<[1], [0], [0], [1], [0, 0, 1, 1], [], []>} : vector<1096x32xbf16>, vector<32x128xbf16>, vector<1096x128xf32> -> vector<1096x128xf32>
    %3 = math.tanh %2 : vector<1096x128xf32>
    %c0_3 = arith.constant 0 : index
    %c0_4 = arith.constant 0 : index
    %4 = vector.load %arg3[%c0_3, %c0_4] : memref<1096x128xf32, #tpu.memory_space<vmem>>, vector<1096x128xf32>
    tpu.vector_store %arg3[%c0_3, %c0_4], %3 {strides = array<i32>} : memref<1096x128xf32, #tpu.memory_space<vmem>>, vector<1096x128xf32>,
    return
  }
  func.func @transform_0(%arg0: i32) -> (i32, i32) {
    %c0_i32 = arith.constant 0 : i32
    %c0_i32_0 = arith.constant 0 : i32
    return %arg0, %c0_i32 : i32, i32
  }
  func.func @transform_1(%arg0: i32) -> (i32, i32) {
    %c0_i32 = arith.constant 0 : i32
    %c0_i32_0 = arith.constant 0 : i32
    %c0_i32_1 = arith.constant 0 : i32
    return %c0_i32, %c0_i32_0 : i32, i32
  }
  func.func @transform_2(%arg0: i32) -> (i32, i32) {
    %c0_i32 = arith.constant 0 : i32
    %c0_i32_0 = arith.constant 0 : i32
    return %arg0, %c0_i32 : i32, i32
  }
}

</mosaic_0001>

<llo_original>
// kernel: tile.58
$region0: #{tile.58}
  #allocation2 [shape = 's32[1]{0}', space=sflag, size = 0x4, scoped, tag = 'scoped memory for tile.58']
  %s0 = inlined_call_operand.hbm [shape: f32[32], index: 0, kind: input, shape index: {}]
  %s1 = inlined_call_operand.vmem [shape: f32[4,32], index: 1, kind: output, shape index: {}]
  $region1: #{tile.58} parent=0
    #allocation0 [shape = 'u8[512]{0}', space=vmem, size = 0x400, scoped, tag = 'operand span for operand 0']
    #allocation1 [shape = 's32[1]{0}', space=sflag, size = 0x4, scoped, tag = 'scoped memory for tile.58']
    %2 = vsyncpa [#allocation1], 0
    // Predicated region
    $region2: #{tile.58} parent=1 // pred_check
      _
    $region3: #{tile.58} parent=1 // pred_check_branch
      %4 = sbr.rel (0) target = $region5
    $region4: #{tile.58} parent=1 // pred_region
      %s6 = ssub.s32 16, 16
      %7 = vsyncadd [#allocation1], %s6
      %s9 = sshll.u32 [#allocation0], 4
      %s10 = int_to_ptr.vmem [resolvable:$true] %s9
      %12 = dma.hbm_to_vmem [thread:$0]  %s0, 16, %s10, [#allocation1]
    $region5: #{tile.58} parent=1 // pred_fallthru
      _
    // Predicated region
    $region6: #{tile.58} parent=1 // pred_check
      _
    $region7: #{tile.58} parent=1 // pred_check_branch
      %14 = sbr.rel (0) target = $region9
    $region8: #{tile.58} parent=1 // pred_region
      %15 = dma.done [#allocation1], 16
    $region9: #{tile.58} parent=1 // pred_fallthru
      _
    %v16 = vld [vmem:[#allocation0] ss:$0 sm:$0xff]
    %17 = vst [vmem:[%s1] sm:$0xf] %v16
    %18 = vsyncpa [#allocation1], 1

// kernel: tile.69
$region0: #{tile.69}
  %s0 = inlined_call_operand.vmem [shape: f32[4,16], index: 0, kind: input, shape index: {}]
  %s1 = inlined_call_operand.vmem [shape: f32[64], index: 1, kind: output, shape index: {}]
  $region1: #{tile.69} parent=0
    #allocation0 [shape = 'u8[4096]{0}', space=vmem, size = 0x1000, scoped, tag = 'scoped mem for output reshape']
    #allocation1 [shape = 'u8[4096]{0}', space=vmem, size = 0x1000, scoped, tag = 'scoped mem for input reshape']
    %s3 = sshllo.u32 0, 4
    %v4 = vld [vmem:[%s0] sm:%s3]
    %5 = vst [vmem:[#allocation1] sm:%s3] %v4
    %v6 = vld [vmem:[#allocation1] sm:$0x1]
    %vm7 = vcmask 130048
    %8 = vst.msk [vmem:[#allocation0] sm:$0x1] %vm7, %v6
    %s9 = scalar_lea.vmem [#allocation1], 3
    %v10 = vld [vmem:[%s9] sm:$0x1]
    %11 = vrot.lane.b32.xlu0 %v10, 48
    %v12 = vpop.permute.xlu0 %11
    %vm13 = vcmask 523648
    %14 = vst.msk [vmem:[#allocation0] sm:$0x1] %vm13, %v12
    %s15 = scalar_lea.vmem [#allocation1], 2
    %v16 = vld [vmem:[%s15] sm:$0x1]
    %17 = vrot.lane.b32.xlu0 %v16, 32
    %v18 = vpop.permute.xlu0 %17
    %vm19 = vcmask 392448
    %20 = vst.msk [vmem:[#allocation0] sm:$0x1] %vm19, %v18
    %s21 = scalar_lea.vmem [#allocation1], 1
    %v22 = vld [vmem:[%s21] sm:$0x1]
    %23 = vrot.lane.b32.xlu0 %v22, 16
    %v24 = vpop.permute.xlu0 %23
    %vm25 = vcmask 261248
    %26 = vst.msk [vmem:[#allocation0] sm:$0x1] %vm25, %v24
    %s28 = sshllo.u32 0, 1
    %v30 = vld [vmem:[#allocation0] sm:%s28]
    %s31 = sshllo.u32 0, 1
    %32 = vst [vmem:[%s1] sm:%s31] %v30

// kernel: tile.68
$region0: #{tile.68}
  #allocation2 [shape = 's32[1]{0}', space=sflag, size = 0x4, scoped, tag = 'scoped memory for tile.68']
  %s0 = inlined_call_operand.hbm [shape: f32[16], index: 0, kind: input, shape index: {}]
  %s1 = inlined_call_operand.vmem [shape: f32[4,16], index: 1, kind: output, shape index: {}]
  $region1: #{tile.68} parent=0
    #allocation0 [shape = 'u8[512]{0}', space=vmem, size = 0x400, scoped, tag = 'operand span for operand 0']
    #allocation1 [shape = 's32[1]{0}', space=sflag, size = 0x4, scoped, tag = 'scoped memory for tile.68']
    %2 = vsyncpa [#allocation1], 0
    // Predicated region
    $region2: #{tile.68} parent=1 // pred_check
      _
    $region3: #{tile.68} parent=1 // pred_check_branch
      %4 = sbr.rel (0) target = $region5
    $region4: #{tile.68} parent=1 // pred_region
      %s6 = ssub.s32 16, 16
      %7 = vsyncadd [#allocation1], %s6
      %s9 = sshll.u32 [#allocation0], 4
      %s10 = int_to_ptr.vmem [resolvable:$true] %s9
      %12 = dma.hbm_to_vmem [thread:$0]  %s0, 16, %s10, [#allocation1]
    $region5: #{tile.68} parent=1 // pred_fallthru
      _
    // Predicated region
    $region6: #{tile.68} parent=1 // pred_check
      _
    $region7: #{tile.68} parent=1 // pred_check_branch
      %14 = sbr.rel (0) target = $region9
    $region8: #{tile.68} parent=1 // pred_region
      %15 = dma.done [#allocation1], 16
    $region9: #{tile.68} parent=1 // pred_fallthru
      _
    %v16 = vld [vmem:[#allocation0] ss:$0 sm:$0xff]
    %17 = vst [vmem:[%s1] sm:$0xf] %v16
    %18 = vsyncpa [#allocation1], 1

// kernel: tile.79
$region0: #{tile.79}
  %s0 = inlined_call_operand.vmem [shape: f32[4,8], index: 0, kind: input, shape index: {}]
  %s1 = inlined_call_operand.vmem [shape: f32[32], index: 1, kind: output, shape index: {}]
  $region1: #{tile.79} parent=0
    #allocation0 [shape = 'u8[4096]{0}', space=vmem, size = 0x1000, scoped, tag = 'scoped mem for output reshape']
    #allocation1 [shape = 'u8[4096]{0}', space=vmem, size = 0x1000, scoped, tag = 'scoped mem for input reshape']
    %s3 = sshllo.u32 0, 4
    %v4 = vld [vmem:[%s0] sm:%s3]
    %5 = vst [vmem:[#allocation1] sm:%s3] %v4
    %v6 = vld [vmem:[#allocation1] sm:$0x1]
    %vm7 = vcmask 64512
    %8 = vst.msk [vmem:[#allocation0] sm:$0x1] %vm7, %v6
    %s9 = scalar_lea.vmem [#allocation1], 3
    %v10 = vld [vmem:[%s9] sm:$0x1]
    %11 = vrot.lane.b32.xlu0 %v10, 24
    %v12 = vpop.permute.xlu0 %11
    %vm13 = vcmask 261312
    %14 = vst.msk [vmem:[#allocation0] sm:$0x1] %vm13, %v12
    %s15 = scalar_lea.vmem [#allocation1], 2
    %v16 = vld [vmem:[%s15] sm:$0x1]
    %17 = vrot.lane.b32.xlu0 %v16, 16
    %v18 = vpop.permute.xlu0 %17
    %vm19 = vcmask 195712
    %20 = vst.msk [vmem:[#allocation0] sm:$0x1] %vm19, %v18
    %s21 = scalar_lea.vmem [#allocation1], 1
    %v22 = vld [vmem:[%s21] sm:$0x1]
    %23 = vrot.lane.b32.xlu0 %v22, 8
    %v24 = vpop.permute.xlu0 %23
    %vm25 = vcmask 130112
    %26 = vst.msk [vmem:[#allocation0] sm:$0x1] %vm25, %v24
    %s28 = sshllo.u32 0, 1
    %v30 = vld [vmem:[#allocation0] sm:%s28]
    %s31 = sshllo.u32 0, 1
    %32 = vst [vmem:[%s1] sm:%s31] %v30

// kernel: tile.78
$region0: #{tile.78}
  #allocation2 [shape = 's32[1]{0}', space=sflag, size = 0x4, scoped, tag = 'scoped memory for tile.78']
  %s0 = inlined_call_operand.hbm [shape: f32[8], index: 0, kind: input, shape index: {}]
  %s1 = inlined_call_operand.vmem [shape: f32[4,8], index: 1, kind: output, shape index: {}]
  $region1: #{tile.78} parent=0
    #allocation0 [shape = 'u8[512]{0}', space=vmem, size = 0x400, scoped, tag = 'operand span for operand 0']
    #allocation1 [shape = 's32[1]{0}', space=sflag, size = 0x4, scoped, tag = 'scoped memory for tile.78']
    %2 = vsyncpa [#allocation1], 0
    // Predicated region
    $region2: #{tile.78} parent=1 // pred_check
      _
    $region3: #{tile.78} parent=1 // pred_check_branch
      %4 = sbr.rel (0) target = $region5
    $region4: #{tile.78} parent=1 // pred_region
      %s6 = ssub.s32 16, 16
      %7 = vsyncadd [#allocation1], %s6
      %s9 = sshll.u32 [#allocation0], 4
      %s10 = int_to_ptr.vmem [resolvable:$true] %s9
      %12 = dma.hbm_to_vmem [thread:$0]  %s0, 16, %s10, [#allocation1]
    $region5: #{tile.78} parent=1 // pred_fallthru
      _
    // Predicated region
    $region6: #{tile.78} parent=1 // pred_check
      _
    $region7: #{tile.78} parent=1 // pred_check_branch
      %14 = sbr.rel (0) target = $region9
    $region8: #{tile.78} parent=1 // pred_region
      %15 = dma.done [#allocation1], 16
    $region9: #{tile.78} parent=1 // pred_fallthru
      _
    %v16 = vld [vmem:[#allocation0] ss:$0 sm:$0xff]
    %17 = vst [vmem:[%s1] sm:$0xf] %v16
    %18 = vsyncpa [#allocation1], 1

// kernel: tile.48
$region0: #{tile.48}
  #allocation2 [shape = 's32[1]{0}', space=sflag, size = 0x4, scoped, tag = 'scoped memory for tile.48']
  %s0 = inlined_call_operand.hbm [shape: f32[64], index: 0, kind: input, shape index: {}]
  %s1 = inlined_call_operand.vmem [shape: f32[16,64], index: 1, kind: output, shape index: {}]
  $region1: #{tile.48} parent=0
    #allocation0 [shape = 'u8[512]{0}', space=vmem, size = 0x400, scoped, tag = 'operand span for operand 0']
    #allocation1 [shape = 's32[1]{0}', space=sflag, size = 0x4, scoped, tag = 'scoped memory for tile.48']
    %2 = vsyncpa [#allocation1], 0
    // Predicated region
    $region2: #{tile.48} parent=1 // pred_check
      _
    $region3: #{tile.48} parent=1 // pred_check_branch
      %4 = sbr.rel (0) target = $region5
    $region4: #{tile.48} parent=1 // pred_region
      %s6 = ssub.s32 16, 16
      %7 = vsyncadd [#allocation1], %s6
      %s9 = sshll.u32 [#allocation0], 4
      %s10 = int_to_ptr.vmem [resolvable:$true] %s9
      %12 = dma.hbm_to_vmem [thread:$0]  %s0, 16, %s10, [#allocation1]
    $region5: #{tile.48} parent=1 // pred_fallthru
      _
    // Predicated region
    $region6: #{tile.48} parent=1 // pred_check
      _
    $region7: #{tile.48} parent=1 // pred_check_branch
      %14 = sbr.rel (0) target = $region9
    $region8: #{tile.48} parent=1 // pred_region
      %15 = dma.done [#allocation1], 16
    $region9: #{tile.48} parent=1 // pred_fallthru
      _
    %v16 = vld [vmem:[#allocation0] ss:$0 sm:$0xff]
    %17 = vst [vmem:[%s1] sm:$0xff] %v16
    %s18 = scalar_lea.vmem %s1, 8
    %19 = vst [vmem:[%s18] sm:$0xff] %v16
    %20 = vsyncpa [#allocation1], 1

// kernel: generator_forward.5
$region0: #{generator_forward.5}
  #allocation0 [shape = 'u32[]', space=smem, size = 0x4, offset = 0x4, fixed_abs, tag = 'smem constant byte address 0x4 - core index']
  #allocation1 [shape = 'u32[144,128]{1,0:T(1,128)}', space=vmem, size = 0x12000, scoped, tag = 'internal scratch']
  %s0 = inlined_call_operand.vmem [shape: bf16[8,16], index: 0, kind: input, shape index: {}]
  %s1 = inlined_call_operand.vmem [shape: bf16[16,1024], index: 1, kind: input, shape index: {}]
  %s2 = inlined_call_operand.vmem [shape: f32[1,1024], index: 2, kind: input, shape index: {}]
  %s3 = inlined_call_operand.vmem [shape: f32[1,1024], index: 3, kind: input, shape index: {}]
  %s4 = inlined_call_operand.vmem [shape: bf16[8,1024], index: 4, kind: output, shape index: {}]
  %s5 = sld [smem:[#allocation0]]
  $region26: #{generator_forward.5} parent=0
    _
  %s7 = ssub.s32 1, %s5
  %s8 = scalar_select 0, %s7, %s5
  // Predicated region
  $region2: #{generator_forward.5} parent=0 // pred_check
    _
  $region3: #{generator_forward.5} parent=0 // pred_check_branch
    %10 = sbr.rel (0) target = $region5
  $region4: #{generator_forward.5} parent=0 // pred_region
    _
  $region5: #{generator_forward.5} parent=0 // pred_fallthru
    _
  // Predicated region
  $region6: #{generator_forward.5} parent=0 // pred_check
    _
  $region7: #{generator_forward.5} parent=0 // pred_check_branch
    %12 = sbr.rel (0) target = $region9
  $region8: #{generator_forward.5} parent=0 // pred_region
    _
  $region9: #{generator_forward.5} parent=0 // pred_fallthru
    _
  // Predicated region
  $region10: #{generator_forward.5} parent=0 // pred_check
    _
  $region11: #{generator_forward.5} parent=0 // pred_check_branch
    %14 = sbr.rel (0) target = $region13
  $region12: #{generator_forward.5} parent=0 // pred_region
    _
  $region13: #{generator_forward.5} parent=0 // pred_fallthru
    _
  // Predicated region
  $region14: #{generator_forward.5} parent=0 // pred_check
    _
  $region15: #{generator_forward.5} parent=0 // pred_check_branch
    %16 = sbr.rel (0) target = $region17
  $region16: #{generator_forward.5} parent=0 // pred_region
    _
  $region17: #{generator_forward.5} parent=0 // pred_fallthru
    _
  %v18 = vld [vmem:[%s0] sm:$0xf]
  %v19 = vld [vmem:[%s1] sm:$0xff]
  %v20 = vld [vmem:[%s1 + $0x8] sm:$0xff]
  %v21 = vld [vmem:[%s1 + $0x10] sm:$0xff]
  %v22 = vld [vmem:[%s1 + $0x18] sm:$0xff]
  %v23 = vld [vmem:[%s1 + $0x20] sm:$0xff]
  %v24 = vld [vmem:[%s1 + $0x28] sm:$0xff]
  %v25 = vld [vmem:[%s1 + $0x30] sm:$0xff]
  %v26 = vld [vmem:[%s1 + $0x38] sm:$0xff]
  %v35 = vunpack.c.l.b16 %v19
  %v36 = vunpack.c.h.b16 %v19
  %v37 = vunpack.c.l.b16 %v20
  %v38 = vunpack.c.h.b16 %v20
  %v39 = vunpack.c.l.b16 %v21
  %v40 = vunpack.c.h.b16 %v21
  %v41 = vunpack.c.l.b16 %v22
  %v42 = vunpack.c.h.b16 %v22
  %v43 = vunpack.c.l.b16 %v23
  %v44 = vunpack.c.h.b16 %v23
  %v45 = vunpack.c.l.b16 %v24
  %v46 = vunpack.c.h.b16 %v24
  %v47 = vunpack.c.l.b16 %v25
  %v48 = vunpack.c.h.b16 %v25
  %v49 = vunpack.c.l.b16 %v26
  %v50 = vunpack.c.h.b16 %v26
  %v51 = vpack.c.b16 %v43, %v35
  %v52 = vpack.c.b16 %v44, %v36
  %v53 = vpack.c.b16 %v45, %v37
  %v54 = vpack.c.b16 %v46, %v38
  %v55 = vpack.c.b16 %v47, %v39
  %v56 = vpack.c.b16 %v48, %v40
  %v57 = vpack.c.b16 %v49, %v41
  %v58 = vpack.c.b16 %v50, %v42
  %vm67 = vcmask 130048
  %v69 = vsel %vm67, %v18, 0
  %71 = vmatprep.subr.bf16.mxu0 %v52
  %72 = vmatpush1.bf16.msra.mxu0 %v51
  %73 = vmatprep.subr.bf16.mxu0 0
  %74 = vmatpush1.bf16.msra.mxu0 0
  %75 = vmatprep.subr.bf16.mxu0 0
  %76 = vmatpush1.bf16.msra.mxu0 0
  %77 = vmatprep.subr.bf16.mxu0 0
  %78 = vmatpush1.bf16.msra.mxu0 0
  %79 = vmatprep.subr.bf16.mxu0 0
  %80 = vmatpush1.bf16.msra.mxu0 0
  %81 = vmatprep.subr.bf16.mxu0 0
  %82 = vmatpush1.bf16.msra.mxu0 0
  %83 = vmatprep.subr.bf16.mxu0 0
  %84 = vmatpush1.bf16.msra.mxu0 0
  %85 = vmatprep.subr.bf16.mxu0 0
  %86 = vmatpush1.bf16.msra.mxu0 0
  %87 = vmatprep.subr.bf16.mxu0 0
  %88 = vmatpush1.bf16.msra.mxu0 0
  %89 = vmatprep.subr.bf16.mxu0 0
  %90 = vmatpush1.bf16.msra.mxu0 0
  %91 = vmatprep.subr.bf16.mxu0 0
  %92 = vmatpush1.bf16.msra.mxu0 0
  %93 = vmatprep.subr.bf16.mxu0 0
  %94 = vmatpush1.bf16.msra.mxu0 0
  %95 = vmatprep.subr.bf16.mxu0 0
  %96 = vmatpush1.bf16.msra.mxu0 0
  %97 = vmatprep.subr.bf16.mxu0 0
  %98 = vmatpush1.bf16.msra.mxu0 0
  %99 = vmatprep.subr.bf16.mxu0 0
  %100 = vmatpush1.bf16.msra.mxu0 0
  %101 = vmatprep.subr.bf16.mxu0 0
  %102 = vmatpush1.bf16.msra.mxu0 0
  %103 = vmatprep.mubr.bf16.mxu0 0
  %104 = vmatmul.mubr.bf16.gmra.mrb[0].mxu0 %v69
  %v105 = vpop.f32.mrb[0].mxu0
  %v106 = vadd.f32 0.0, %v105
  %v107 = vpop.f32.mrb[0].mxu0
  %v108 = vadd.f32 0.0, %v107
  %v109 = vpop.f32.mrb[0].mxu0
  %v110 = vpop.f32.mrb[0].mxu0
  %111 = vdwg.mxu0
  %112 = vmatprep.subr.bf16.mxu0 %v54
  %113 = vmatpush1.bf16.msra.mxu0 %v53
  %114 = vmatprep.subr.bf16.mxu0 0
  %115 = vmatpush1.bf16.msra.mxu0 0
  %116 = vmatprep.subr.bf16.mxu0 0
  %117 = vmatpush1.bf16.msra.mxu0 0
  %118 = vmatprep.subr.bf16.mxu0 0
  %119 = vmatpush1.bf16.msra.mxu0 0
  %120 = vmatprep.subr.bf16.mxu0 0
  %121 = vmatpush1.bf16.msra.mxu0 0
  %122 = vmatprep.subr.bf16.mxu0 0
  %123 = vmatpush1.bf16.msra.mxu0 0
  %124 = vmatprep.subr.bf16.mxu0 0
  %125 = vmatpush1.bf16.msra.mxu0 0
  %126 = vmatprep.subr.bf16.mxu0 0
  %127 = vmatpush1.bf16.msra.mxu0 0
  %128 = vmatprep.subr.bf16.mxu0 0
  %129 = vmatpush1.bf16.msra.mxu0 0
  %130 = vmatprep.subr.bf16.mxu0 0
  %131 = vmatpush1.bf16.msra.mxu0 0
  %132 = vmatprep.subr.bf16.mxu0 0
  %133 = vmatpush1.bf16.msra.mxu0 0
  %134 = vmatprep.subr.bf16.mxu0 0
  %135 = vmatpush1.bf16.msra.mxu0 0
  %136 = vmatprep.subr.bf16.mxu0 0
  %137 = vmatpush1.bf16.msra.mxu0 0
  %138 = vmatprep.subr.bf16.mxu0 0
  %139 = vmatpush1.bf16.msra.mxu0 0
  %140 = vmatprep.subr.bf16.mxu0 0
  %141 = vmatpush1.bf16.msra.mxu0 0
  %142 = vmatprep.subr.bf16.mxu0 0
  %143 = vmatpush1.bf16.msra.mxu0 0
  %144 = vmatprep.mubr.bf16.mxu0 0
  %145 = vmatmul.mubr.bf16.gmra.mrb[0].mxu0 %v69
  %v146 = vpop.f32.mrb[0].mxu0
  %v147 = vadd.f32 0.0, %v146
  %v148 = vpop.f32.mrb[0].mxu0
  %v149 = vadd.f32 0.0, %v148
  %v150 = vpop.f32.mrb[0].mxu0
  %v151 = vpop.f32.mrb[0].mxu0
  %152 = vdwg.mxu0
  %153 = vmatprep.subr.bf16.mxu0 %v56
  %154 = vmatpush1.bf16.msra.mxu0 %v55
  %155 = vmatprep.subr.bf16.mxu0 0
  %156 = vmatpush1.bf16.msra.mxu0 0
  %157 = vmatprep.subr.bf16.mxu0 0
  %158 = vmatpush1.bf16.msra.mxu0 0
  %159 = vmatprep.subr.bf16.mxu0 0
  %160 = vmatpush1.bf16.msra.mxu0 0
  %161 = vmatprep.subr.bf16.mxu0 0
  %162 = vmatpush1.bf16.msra.mxu0 0
  %163 = vmatprep.subr.bf16.mxu0 0
  %164 = vmatpush1.bf16.msra.mxu0 0
  %165 = vmatprep.subr.bf16.mxu0 0
  %166 = vmatpush1.bf16.msra.mxu0 0
  %167 = vmatprep.subr.bf16.mxu0 0
  %168 = vmatpush1.bf16.msra.mxu0 0
  %169 = vmatprep.subr.bf16.mxu0 0
  %170 = vmatpush1.bf16.msra.mxu0 0
  %171 = vmatprep.subr.bf16.mxu0 0
  %172 = vmatpush1.bf16.msra.mxu0 0
  %173 = vmatprep.subr.bf16.mxu0 0
  %174 = vmatpush1.bf16.msra.mxu0 0
  %175 = vmatprep.subr.bf16.mxu0 0
  %176 = vmatpush1.bf16.msra.mxu0 0
  %177 = vmatprep.subr.bf16.mxu0 0
  %178 = vmatpush1.bf16.msra.mxu0 0
  %179 = vmatprep.subr.bf16.mxu0 0
  %180 = vmatpush1.bf16.msra.mxu0 0
  %181 = vmatprep.subr.bf16.mxu0 0
  %182 = vmatpush1.bf16.msra.mxu0 0
  %183 = vmatprep.subr.bf16.mxu0 0
  %184 = vmatpush1.bf16.msra.mxu0 0
  %185 = vmatprep.mubr.bf16.mxu0 0
  %186 = vmatmul.mubr.bf16.gmra.mrb[0].mxu0 %v69
  %v187 = vpop.f32.mrb[0].mxu0
  %v188 = vadd.f32 0.0, %v187
  %v189 = vpop.f32.mrb[0].mxu0
  %v190 = vadd.f32 0.0, %v189
  %v191 = vpop.f32.mrb[0].mxu0
  %v192 = vpop.f32.mrb[0].mxu0
  %193 = vdwg.mxu0
  %194 = vmatprep.subr.bf16.mxu0 %v58
  %195 = vmatpush1.bf16.msra.mxu0 %v57
  %196 = vmatprep.subr.bf16.mxu0 0
  %197 = vmatpush1.bf16.msra.mxu0 0
  %198 = vmatprep.subr.bf16.mxu0 0
  %199 = vmatpush1.bf16.msra.mxu0 0
  %200 = vmatprep.subr.bf16.mxu0 0
  %201 = vmatpush1.bf16.msra.mxu0 0
  %202 = vmatprep.subr.bf16.mxu0 0
  %203 = vmatpush1.bf16.msra.mxu0 0
  %204 = vmatprep.subr.bf16.mxu0 0
  %205 = vmatpush1.bf16.msra.mxu0 0
  %206 = vmatprep.subr.bf16.mxu0 0
  %207 = vmatpush1.bf16.msra.mxu0 0
  %208 = vmatprep.subr.bf16.mxu0 0
  %209 = vmatpush1.bf16.msra.mxu0 0
  %210 = vmatprep.subr.bf16.mxu0 0
  %211 = vmatpush1.bf16.msra.mxu0 0
  %212 = vmatprep.subr.bf16.mxu0 0
  %213 = vmatpush1.bf16.msra.mxu0 0
  %214 = vmatprep.subr.bf16.mxu0 0
  %215 = vmatpush1.bf16.msra.mxu0 0
  %216 = vmatprep.subr.bf16.mxu0 0
  %217 = vmatpush1.bf16.msra.mxu0 0
  %218 = vmatprep.subr.bf16.mxu0 0
  %219 = vmatpush1.bf16.msra.mxu0 0
  %220 = vmatprep.subr.bf16.mxu0 0
  %221 = vmatpush1.bf16.msra.mxu0 0
  %222 = vmatprep.subr.bf16.mxu0 0
  %223 = vmatpush1.bf16.msra.mxu0 0
  %224 = vmatprep.subr.bf16.mxu0 0
  %225 = vmatpush1.bf16.msra.mxu0 0
  %226 = vmatprep.mubr.bf16.mxu0 0
  %227 = vmatmul.mubr.bf16.gmra.mrb[0].mxu0 %v69
  %v228 = vpop.f32.mrb[0].mxu0
  %v229 = vadd.f32 0.0, %v228
  %v230 = vpop.f32.mrb[0].mxu0
  %v231 = vadd.f32 0.0, %v230
  %v232 = vpop.f32.mrb[0].mxu0
  %v233 = vpop.f32.mrb[0].mxu0
  %234 = vdwg.mxu0
  %v235 = vrot.slane %v106, 4
  %v236 = vadd.f32 %v106, %v235
  %v237 = vrot.slane %v236, 2
  %v238 = vadd.f32 %v236, %v237
  %v239 = vrot.slane %v238, 1
  %v240 = vadd.f32 %v238, %v239
  %v241 = vrot.slane %v108, 4
  %v242 = vadd.f32 %v108, %v241
  %v243 = vrot.slane %v242, 2
  %v244 = vadd.f32 %v242, %v243
  %v245 = vrot.slane %v244, 1
  %v246 = vadd.f32 %v244, %v245
  %v247 = vrot.slane %v147, 4
  %v248 = vadd.f32 %v147, %v247
  %v249 = vrot.slane %v248, 2
  %v250 = vadd.f32 %v248, %v249
  %v251 = vrot.slane %v250, 1
  %v252 = vadd.f32 %v250, %v251
  %v253 = vrot.slane %v149, 4
  %v254 = vadd.f32 %v149, %v253
  %v255 = vrot.slane %v254, 2
  %v256 = vadd.f32 %v254, %v255
  %v257 = vrot.slane %v256, 1
  %v258 = vadd.f32 %v256, %v257
  %v259 = vrot.slane %v188, 4
  %v260 = vadd.f32 %v188, %v259
  %v261 = vrot.slane %v260, 2
  %v262 = vadd.f32 %v260, %v261
  %v263 = vrot.slane %v262, 1
  %v264 = vadd.f32 %v262, %v263
  %v265 = vrot.slane %v190, 4
  %v266 = vadd.f32 %v190, %v265
  %v267 = vrot.slane %v266, 2
  %v268 = vadd.f32 %v266, %v267
  %v269 = vrot.slane %v268, 1
  %v270 = vadd.f32 %v268, %v269
  %v271 = vrot.slane %v229, 4
  %v272 = vadd.f32 %v229, %v271
  %v273 = vrot.slane %v272, 2
  %v274 = vadd.f32 %v272, %v273
  %v275 = vrot.slane %v274, 1
  %v276 = vadd.f32 %v274, %v275
  %v277 = vrot.slane %v231, 4
  %v278 = vadd.f32 %v231, %v277
  %v279 = vrot.slane %v278, 2
  %v280 = vadd.f32 %v278, %v279
  %v281 = vrot.slane %v280, 1
  %v282 = vadd.f32 %v280, %v281
  %v283 = vmul.f32 %v106, %v106
  %v284 = vmul.f32 %v108, %v108
  %v285 = vmul.f32 %v147, %v147
  %v286 = vmul.f32 %v149, %v149
  %v287 = vmul.f32 %v188, %v188
  %v288 = vmul.f32 %v190, %v190
  %v289 = vmul.f32 %v229, %v229
  %v290 = vmul.f32 %v231, %v231
  %v291 = vrot.slane %v283, 4
  %v292 = vadd.f32 %v283, %v291
  %v293 = vrot.slane %v292, 2
  %v294 = vadd.f32 %v292, %v293
  %v295 = vrot.slane %v294, 1
  %v296 = vadd.f32 %v294, %v295
  %v297 = vrot.slane %v284, 4
  %v298 = vadd.f32 %v284, %v297
  %v299 = vrot.slane %v298, 2
  %v300 = vadd.f32 %v298, %v299
  %v301 = vrot.slane %v300, 1
  %v302 = vadd.f32 %v300, %v301
  %v303 = vrot.slane %v285, 4
  %v304 = vadd.f32 %v285, %v303
  %v305 = vrot.slane %v304, 2
  %v306 = vadd.f32 %v304, %v305
  %v307 = vrot.slane %v306, 1
  %v308 = vadd.f32 %v306, %v307
  %v309 = vrot.slane %v286, 4
  %v310 = vadd.f32 %v286, %v309
  %v311 = vrot.slane %v310, 2
  %v312 = vadd.f32 %v310, %v311
  %v313 = vrot.slane %v312, 1
  %v314 = vadd.f32 %v312, %v313
  %v315 = vrot.slane %v287, 4
  %v316 = vadd.f32 %v287, %v315
  %v317 = vrot.slane %v316, 2
  %v318 = vadd.f32 %v316, %v317
  %v319 = vrot.slane %v318, 1
  %v320 = vadd.f32 %v318, %v319
  %v321 = vrot.slane %v288, 4
  %v322 = vadd.f32 %v288, %v321
  %v323 = vrot.slane %v322, 2
  %v324 = vadd.f32 %v322, %v323
  %v325 = vrot.slane %v324, 1
  %v326 = vadd.f32 %v324, %v325
  %v327 = vrot.slane %v289, 4
  %v328 = vadd.f32 %v289, %v327
  %v329 = vrot.slane %v328, 2
  %v330 = vadd.f32 %v328, %v329
  %v331 = vrot.slane %v330, 1
  %v332 = vadd.f32 %v330, %v331
  %v333 = vrot.slane %v290, 4
  %v334 = vadd.f32 %v290, %v333
  %v335 = vrot.slane %v334, 2
  %v336 = vadd.f32 %v334, %v335
  %v337 = vrot.slane %v336, 1
  %v338 = vadd.f32 %v336, %v337
  %339 = vrot.lane.b32.xlu0 %v240, 64
  %v340 = vpop.permute.xlu0 %339
  %341 = vrot.lane.b32.xlu0 %v246, 64
  %v342 = vpop.permute.xlu0 %341
  %343 = vrot.lane.b32.xlu0 %v252, 64
  %v344 = vpop.permute.xlu0 %343
  %345 = vrot.lane.b32.xlu0 %v258, 64
  %v346 = vpop.permute.xlu0 %345
  %347 = vrot.lane.b32.xlu0 %v264, 64
  %v348 = vpop.permute.xlu0 %347
  %349 = vrot.lane.b32.xlu0 %v270, 64
  %v350 = vpop.permute.xlu0 %349
  %351 = vrot.lane.b32.xlu0 %v276, 64
  %v352 = vpop.permute.xlu0 %351
  %353 = vrot.lane.b32.xlu0 %v282, 64
  %v354 = vpop.permute.xlu0 %353
  %v355 = vlaneseq
  %v356 = vand.u32 %v355, 127
  %vm357 = vcmp.lt.s32.totalorder %v356, 64
  %v358 = vsel %vm357, %v352, %v354
  %v359 = vsel %vm357, %v350, %v352
  %v360 = vsel %vm357, %v348, %v350
  %v361 = vsel %vm357, %v346, %v348
  %v362 = vsel %vm357, %v344, %v346
  %v363 = vsel %vm357, %v342, %v344
  %v364 = vsel %vm357, %v340, %v342
  %v365 = vsel %vm357, %v354, %v340
  %v366 = vadd.f32 %v240, %v365
  %v367 = vadd.f32 %v246, %v364
  %v368 = vadd.f32 %v252, %v363
  %v369 = vadd.f32 %v258, %v362
  %v370 = vadd.f32 %v264, %v361
  %v371 = vadd.f32 %v270, %v360
  %v372 = vadd.f32 %v276, %v359
  %v373 = vadd.f32 %v282, %v358
  %374 = vrot.lane.b32.xlu0 %v296, 64
  %v375 = vpop.permute.xlu0 %374
  %376 = vrot.lane.b32.xlu0 %v302, 64
  %v377 = vpop.permute.xlu0 %376
  %378 = vrot.lane.b32.xlu0 %v308, 64
  %v379 = vpop.permute.xlu0 %378
  %380 = vrot.lane.b32.xlu0 %v314, 64
  %v381 = vpop.permute.xlu0 %380
  %382 = vrot.lane.b32.xlu0 %v320, 64
  %v383 = vpop.permute.xlu0 %382
  %384 = vrot.lane.b32.xlu0 %v326, 64
  %v385 = vpop.permute.xlu0 %384
  %386 = vrot.lane.b32.xlu0 %v332, 64
  %v387 = vpop.permute.xlu0 %386
  %388 = vrot.lane.b32.xlu0 %v338, 64
  %v389 = vpop.permute.xlu0 %388
  %v390 = vsel %vm357, %v387, %v389
  %v391 = vsel %vm357, %v385, %v387
  %v392 = vsel %vm357, %v383, %v385
  %v393 = vsel %vm357, %v381, %v383
  %v394 = vsel %vm357, %v379, %v381
  %v395 = vsel %vm357, %v377, %v379
  %v396 = vsel %vm357, %v375, %v377
  %v397 = vsel %vm357, %v389, %v375
  %v398 = vadd.f32 %v296, %v397
  %v399 = vadd.f32 %v302, %v396
  %v400 = vadd.f32 %v308, %v395
  %v401 = vadd.f32 %v314, %v394
  %v402 = vadd.f32 %v320, %v393
  %v403 = vadd.f32 %v326, %v392
  %v404 = vadd.f32 %v332, %v391
  %v405 = vadd.f32 %v338, %v390
  %v406 = vadd.f32 %v366, %v282
  %v407 = vadd.f32 %v367, %v240
  %v408 = vadd.f32 %v368, %v246
  %v409 = vadd.f32 %v369, %v252
  %v410 = vadd.f32 %v370, %v258
  %v411 = vadd.f32 %v371, %v264
  %v412 = vadd.f32 %v372, %v270
  %v413 = vadd.f32 %v373, %v276
  %v414 = vadd.f32 %v398, %v338
  %v415 = vadd.f32 %v399, %v296
  %v416 = vadd.f32 %v400, %v302
  %v417 = vadd.f32 %v401, %v308
  %v418 = vadd.f32 %v402, %v314
  %v419 = vadd.f32 %v403, %v320
  %v420 = vadd.f32 %v404, %v326
  %v421 = vadd.f32 %v405, %v332
  %v422 = vadd.f32 %v406, %v358
  %v423 = vadd.f32 %v407, %v365
  %v424 = vadd.f32 %v408, %v364
  %v425 = vadd.f32 %v409, %v363
  %v426 = vadd.f32 %v410, %v362
  %v427 = vadd.f32 %v411, %v361
  %v428 = vadd.f32 %v412, %v360
  %v429 = vadd.f32 %v413, %v359
  %v430 = vadd.f32 %v414, %v390
  %v431 = vadd.f32 %v415, %v397
  %v432 = vadd.f32 %v416, %v396
  %v433 = vadd.f32 %v417, %v395
  %v434 = vadd.f32 %v418, %v394
  %v435 = vadd.f32 %v419, %v393
  %v436 = vadd.f32 %v420, %v392
  %v437 = vadd.f32 %v421, %v391
  %v438 = vadd.f32 %v422, %v276
  %v439 = vadd.f32 %v423, %v282
  %v440 = vadd.f32 %v424, %v240
  %v441 = vadd.f32 %v425, %v246
  %v442 = vadd.f32 %v426, %v252
  %v443 = vadd.f32 %v427, %v258
  %v444 = vadd.f32 %v428, %v264
  %v445 = vadd.f32 %v429, %v270
  %v446 = vadd.f32 %v430, %v332
  %v447 = vadd.f32 %v431, %v338
  %v448 = vadd.f32 %v432, %v296
  %v449 = vadd.f32 %v433, %v302
  %v450 = vadd.f32 %v434, %v308
  %v451 = vadd.f32 %v435, %v314
  %v452 = vadd.f32 %v436, %v320
  %v453 = vadd.f32 %v437, %v326
  %v454 = vadd.f32 %v438, %v359
  %v455 = vadd.f32 %v439, %v358
  %v456 = vadd.f32 %v440, %v365
  %v457 = vadd.f32 %v441, %v364
  %v458 = vadd.f32 %v442, %v363
  %v459 = vadd.f32 %v443, %v362
  %v460 = vadd.f32 %v444, %v361
  %v461 = vadd.f32 %v445, %v360
  %v462 = vadd.f32 %v446, %v391
  %v463 = vadd.f32 %v447, %v390
  %v464 = vadd.f32 %v448, %v397
  %v465 = vadd.f32 %v449, %v396
  %v466 = vadd.f32 %v450, %v395
  %v467 = vadd.f32 %v451, %v394
  %v468 = vadd.f32 %v452, %v393
  %v469 = vadd.f32 %v453, %v392
  %v470 = vadd.f32 %v454, %v270
  %v471 = vadd.f32 %v455, %v276
  %v472 = vadd.f32 %v456, %v282
  %v473 = vadd.f32 %v457, %v240
  %v474 = vadd.f32 %v458, %v246
  %v475 = vadd.f32 %v459, %v252
  %v476 = vadd.f32 %v460, %v258
  %v477 = vadd.f32 %v461, %v264
  %v478 = vadd.f32 %v462, %v326
  %v479 = vadd.f32 %v463, %v332
  %v480 = vadd.f32 %v464, %v338
  %v481 = vadd.f32 %v465, %v296
  %v482 = vadd.f32 %v466, %v302
  %v483 = vadd.f32 %v467, %v308
  %v484 = vadd.f32 %v468, %v314
  %v485 = vadd.f32 %v469, %v320
  %v486 = vadd.f32 %v470, %v360
  %v487 = vadd.f32 %v471, %v359
  %v488 = vadd.f32 %v472, %v358
  %v489 = vadd.f32 %v473, %v365
  %v490 = vadd.f32 %v474, %v364
  %v491 = vadd.f32 %v475, %v363
  %v492 = vadd.f32 %v476, %v362
  %v493 = vadd.f32 %v477, %v361
  %v494 = vadd.f32 %v478, %v392
  %v495 = vadd.f32 %v479, %v391
  %v496 = vadd.f32 %v480, %v390
  %v497 = vadd.f32 %v481, %v397
  %v498 = vadd.f32 %v482, %v396
  %v499 = vadd.f32 %v483, %v395
  %v500 = vadd.f32 %v484, %v394
  %v501 = vadd.f32 %v485, %v393
  %v502 = vadd.f32 %v486, %v264
  %v503 = vadd.f32 %v487, %v270
  %v504 = vadd.f32 %v488, %v276
  %v505 = vadd.f32 %v489, %v282
  %v506 = vadd.f32 %v490, %v240
  %v507 = vadd.f32 %v491, %v246
  %v508 = vadd.f32 %v492, %v252
  %v509 = vadd.f32 %v493, %v258
  %v510 = vadd.f32 %v494, %v320
  %v511 = vadd.f32 %v495, %v326
  %v512 = vadd.f32 %v496, %v332
  %v513 = vadd.f32 %v497, %v338
  %v514 = vadd.f32 %v498, %v296
  %v515 = vadd.f32 %v499, %v302
  %v516 = vadd.f32 %v500, %v308
  %v517 = vadd.f32 %v501, %v314
  %v518 = vadd.f32 %v502, %v361
  %v519 = vadd.f32 %v503, %v360
  %v520 = vadd.f32 %v504, %v359
  %v521 = vadd.f32 %v505, %v358
  %v522 = vadd.f32 %v506, %v365
  %v523 = vadd.f32 %v507, %v364
  %v524 = vadd.f32 %v508, %v363
  %v525 = vadd.f32 %v509, %v362
  %v526 = vadd.f32 %v510, %v393
  %v527 = vadd.f32 %v511, %v392
  %v528 = vadd.f32 %v512, %v391
  %v529 = vadd.f32 %v513, %v390
  %v530 = vadd.f32 %v514, %v397
  %v531 = vadd.f32 %v515, %v396
  %v532 = vadd.f32 %v516, %v395
  %v533 = vadd.f32 %v517, %v394
  %v534 = vadd.f32 %v518, %v258
  %v535 = vadd.f32 %v519, %v264
  %v536 = vadd.f32 %v520, %v270
  %v537 = vadd.f32 %v521, %v276
  %v538 = vadd.f32 %v522, %v282
  %v539 = vadd.f32 %v523, %v240
  %v540 = vadd.f32 %v524, %v246
  %v541 = vadd.f32 %v525, %v252
  %v542 = vadd.f32 %v526, %v314
  %v543 = vadd.f32 %v527, %v320
  %v544 = vadd.f32 %v528, %v326
  %v545 = vadd.f32 %v529, %v332
  %v546 = vadd.f32 %v530, %v338
  %v547 = vadd.f32 %v531, %v296
  %v548 = vadd.f32 %v532, %v302
  %v549 = vadd.f32 %v533, %v308
  %v550 = vadd.f32 %v534, %v362
  %v551 = vadd.f32 %v535, %v361
  %v552 = vadd.f32 %v536, %v360
  %v553 = vadd.f32 %v537, %v359
  %v554 = vadd.f32 %v538, %v358
  %v555 = vadd.f32 %v539, %v365
  %v556 = vadd.f32 %v540, %v364
  %v557 = vadd.f32 %v541, %v363
  %v558 = vadd.f32 %v542, %v394
  %v559 = vadd.f32 %v543, %v393
  %v560 = vadd.f32 %v544, %v392
  %v561 = vadd.f32 %v545, %v391
  %v562 = vadd.f32 %v546, %v390
  %v563 = vadd.f32 %v547, %v397
  %v564 = vadd.f32 %v548, %v396
  %v565 = vadd.f32 %v549, %v395
  %v566 = vadd.f32 %v550, %v252
  %v567 = vadd.f32 %v551, %v258
  %v568 = vadd.f32 %v552, %v264
  %v569 = vadd.f32 %v553, %v270
  %v570 = vadd.f32 %v554, %v276
  %v571 = vadd.f32 %v555, %v282
  %v572 = vadd.f32 %v556, %v240
  %v573 = vadd.f32 %v557, %v246
  %v574 = vadd.f32 %v558, %v308
  %v575 = vadd.f32 %v559, %v314
  %v576 = vadd.f32 %v560, %v320
  %v577 = vadd.f32 %v561, %v326
  %v578 = vadd.f32 %v562, %v332
  %v579 = vadd.f32 %v563, %v338
  %v580 = vadd.f32 %v564, %v296
  %v581 = vadd.f32 %v565, %v302
  %v582 = vadd.f32 %v566, %v363
  %v583 = vadd.f32 %v567, %v362
  %v584 = vadd.f32 %v568, %v361
  %v585 = vadd.f32 %v569, %v360
  %v586 = vadd.f32 %v570, %v359
  %v587 = vadd.f32 %v571, %v358
  %v588 = vadd.f32 %v572, %v365
  %v589 = vadd.f32 %v573, %v364
  %v590 = vadd.f32 %v574, %v395
  %v591 = vadd.f32 %v575, %v394
  %v592 = vadd.f32 %v576, %v393
  %v593 = vadd.f32 %v577, %v392
  %v594 = vadd.f32 %v578, %v391
  %v595 = vadd.f32 %v579, %v390
  %v596 = vadd.f32 %v580, %v397
  %v597 = vadd.f32 %v581, %v396
  %v598 = vadd.f32 %v582, %v246
  %v599 = vadd.f32 %v583, %v252
  %v600 = vadd.f32 %v584, %v258
  %v601 = vadd.f32 %v585, %v264
  %v602 = vadd.f32 %v586, %v270
  %v603 = vadd.f32 %v587, %v276
  %v604 = vadd.f32 %v588, %v282
  %v605 = vadd.f32 %v589, %v240
  %v606 = vadd.f32 %v590, %v302
  %v607 = vadd.f32 %v591, %v308
  %v608 = vadd.f32 %v592, %v314
  %v609 = vadd.f32 %v593, %v320
  %v610 = vadd.f32 %v594, %v326
  %v611 = vadd.f32 %v595, %v332
  %v612 = vadd.f32 %v596, %v338
  %v613 = vadd.f32 %v597, %v296
  %v614 = vadd.f32 %v598, %v364
  %v615 = vadd.f32 %v599, %v363
  %v616 = vadd.f32 %v600, %v362
  %v617 = vadd.f32 %v601, %v361
  %v618 = vadd.f32 %v602, %v360
  %v619 = vadd.f32 %v603, %v359
  %v620 = vadd.f32 %v604, %v358
  %v621 = vadd.f32 %v605, %v365
  %v622 = vadd.f32 %v606, %v396
  %v623 = vadd.f32 %v607, %v395
  %v624 = vadd.f32 %v608, %v394
  %v625 = vadd.f32 %v609, %v393
  %v626 = vadd.f32 %v610, %v392
  %v627 = vadd.f32 %v611, %v391
  %v628 = vadd.f32 %v612, %v390
  %v629 = vadd.f32 %v613, %v397
  %v630 = vmul.f32 %v614, 0.03125
  %v631 = vmul.f32 %v615, 0.03125
  %v632 = vmul.f32 %v616, 0.03125
  %v633 = vmul.f32 %v617, 0.03125
  %v634 = vmul.f32 %v618, 0.03125
  %v635 = vmul.f32 %v619, 0.03125
  %v636 = vmul.f32 %v620, 0.03125
  %v637 = vmul.f32 %v621, 0.03125
  %v638 = vmul.f32 %v622, 0.03125
  %v639 = vmul.f32 %v623, 0.03125
  %v640 = vmul.f32 %v624, 0.03125
  %v641 = vmul.f32 %v625, 0.03125
  %v642 = vmul.f32 %v626, 0.03125
  %v643 = vmul.f32 %v627, 0.03125
  %v644 = vmul.f32 %v628, 0.03125
  %v645 = vmul.f32 %v629, 0.03125
  %v646 = vmul.f32 %v630, %v630
  %v647 = vmul.f32 %v631, %v631
  %v648 = vmul.f32 %v632, %v632
  %v649 = vmul.f32 %v633, %v633
  %v650 = vmul.f32 %v634, %v634
  %v651 = vmul.f32 %v635, %v635
  %v652 = vmul.f32 %v636, %v636
  %v653 = vmul.f32 %v637, %v637
  %v654 = vsub.f32 %v638, %v646
  %v655 = vsub.f32 %v639, %v647
  %v656 = vsub.f32 %v640, %v648
  %v657 = vsub.f32 %v641, %v649
  %v658 = vsub.f32 %v642, %v650
  %v659 = vsub.f32 %v643, %v651
  %v660 = vsub.f32 %v644, %v652
  %v661 = vsub.f32 %v645, %v653
  %v662 = vmax.f32 %v654, 0.0
  %v663 = vmax.f32 %v655, 0.0
  %v664 = vmax.f32 %v656, 0.0
  %v665 = vmax.f32 %v657, 0.0
  %v666 = vmax.f32 %v658, 0.0
  %v667 = vmax.f32 %v659, 0.0
  %v668 = vmax.f32 %v660, 0.0
  %v669 = vmax.f32 %v661, 0.0
  %v670 = vld [vmem:[%s2] sm:$0xff]
  %v671 = vadd.f32 %v662, 1e-05
  %v672 = vadd.f32 %v663, 1e-05
  %v673 = vadd.f32 %v664, 1e-05
  %v674 = vadd.f32 %v665, 1e-05
  %v675 = vadd.f32 %v666, 1e-05
  %v676 = vadd.f32 %v667, 1e-05
  %v677 = vadd.f32 %v668, 1e-05
  %v678 = vadd.f32 %v669, 1e-05
  %v679 = vrsqrt.pop %v671
  %v680 = vrsqrt.pop %v672
  %v681 = vrsqrt.pop %v673
  %v682 = vrsqrt.pop %v674
  %v683 = vrsqrt.pop %v675
  %v684 = vrsqrt.pop %v676
  %v685 = vrsqrt.pop %v677
  %v686 = vrsqrt.pop %v678
  %v695 = vcombine.low %v679, %v680
  %v696 = vcombine.low %v681, %v682
  %v697 = vcombine.low %v683, %v684
  %v698 = vcombine.low %v685, %v686
  %v700 = vunpack.c.l.s4 1966171168
  %v701 = vunpack.c.0.s8 %v700
  %v702 = vlaneseq
  %v703 = vshrl.u32 %v702, 7
  %v704 = vsub.s32 %v701, %v703
  %v705 = vrot.slane %v695, %v704
  %v707 = vunpack.c.l.s4 1966171168
  %v708 = vunpack.c.0.s8 %v707
  %v709 = vlaneseq
  %v710 = vshrl.u32 %v709, 7
  %v711 = vsub.s32 %v708, %v710
  %v712 = vrot.slane %v696, %v711
  %v714 = vunpack.c.l.s4 1966171168
  %v715 = vunpack.c.0.s8 %v714
  %v716 = vlaneseq
  %v717 = vshrl.u32 %v716, 7
  %v718 = vsub.s32 %v715, %v717
  %v719 = vrot.slane %v697, %v718
  %v721 = vunpack.c.l.s4 1966171168
  %v722 = vunpack.c.0.s8 %v721
  %v723 = vlaneseq
  %v724 = vshrl.u32 %v723, 7
  %v725 = vsub.s32 %v722, %v724
  %v726 = vrot.slane %v698, %v725
  %v727 = vcombine.low %v705, %v712
  %v728 = vcombine.low %v719, %v726
  %v730 = vunpack.c.l.s4 1966171168
  %v731 = vunpack.c.0.s8 %v730
  %v732 = vlaneseq
  %v733 = vshrl.u32 %v732, 7
  %v734 = vsub.s32 %v731, %v733
  %v735 = vrot.slane %v727, %v734
  %v737 = vunpack.c.l.s4 1966171168
  %v738 = vunpack.c.0.s8 %v737
  %v739 = vlaneseq
  %v740 = vshrl.u32 %v739, 7
  %v741 = vsub.s32 %v738, %v740
  %v742 = vrot.slane %v728, %v741
  %v743 = vcombine.low %v735, %v742
  %v745 = vmul.f32 %v670, %v743
  %v746 = vld [vmem:[%s3] sm:$0xff]
  %v748 = vlaneseq
  %v749 = vshrl.u32 %v748, 7
  %v750 = vsub.s32 0, %v749
  %v751 = vrot.slane %v745, %v750
  %v752 = vlaneseq
  %v753 = vshrl.u32 %v752, 7
  %v754 = vsub.s32 1, %v753
  %v755 = vrot.slane %v745, %v754
  %v756 = vlaneseq
  %v757 = vshrl.u32 %v756, 7
  %v758 = vsub.s32 2, %v757
  %v759 = vrot.slane %v745, %v758
  %v760 = vlaneseq
  %v761 = vshrl.u32 %v760, 7
  %v762 = vsub.s32 3, %v761
  %v763 = vrot.slane %v745, %v762
  %v764 = vlaneseq
  %v765 = vshrl.u32 %v764, 7
  %v766 = vsub.s32 4, %v765
  %v767 = vrot.slane %v745, %v766
  %v768 = vlaneseq
  %v769 = vshrl.u32 %v768, 7
  %v770 = vsub.s32 5, %v769
  %v771 = vrot.slane %v745, %v770
  %v772 = vlaneseq
  %v773 = vshrl.u32 %v772, 7
  %v774 = vsub.s32 6, %v773
  %v775 = vrot.slane %v745, %v774
  %v776 = vlaneseq
  %v777 = vshrl.u32 %v776, 7
  %v778 = vsub.s32 7, %v777
  %v779 = vrot.slane %v745, %v778
  %v788 = vmul.f32 %v630, %v751
  %v789 = vmul.f32 %v631, %v755
  %v790 = vmul.f32 %v632, %v759
  %v791 = vmul.f32 %v633, %v763
  %v792 = vmul.f32 %v634, %v767
  %v793 = vmul.f32 %v635, %v771
  %v794 = vmul.f32 %v636, %v775
  %v795 = vmul.f32 %v637, %v779
  %v804 = vcombine.low %v788, %v789
  %v805 = vcombine.low %v790, %v791
  %v806 = vcombine.low %v792, %v793
  %v807 = vcombine.low %v794, %v795
  %v809 = vunpack.c.l.s4 1966171168
  %v810 = vunpack.c.0.s8 %v809
  %v811 = vlaneseq
  %v812 = vshrl.u32 %v811, 7
  %v813 = vsub.s32 %v810, %v812
  %v814 = vrot.slane %v804, %v813
  %v816 = vunpack.c.l.s4 1966171168
  %v817 = vunpack.c.0.s8 %v816
  %v818 = vlaneseq
  %v819 = vshrl.u32 %v818, 7
  %v820 = vsub.s32 %v817, %v819
  %v821 = vrot.slane %v805, %v820
  %v823 = vunpack.c.l.s4 1966171168
  %v824 = vunpack.c.0.s8 %v823
  %v825 = vlaneseq
  %v826 = vshrl.u32 %v825, 7
  %v827 = vsub.s32 %v824, %v826
  %v828 = vrot.slane %v806, %v827
  %v830 = vunpack.c.l.s4 1966171168
  %v831 = vunpack.c.0.s8 %v830
  %v832 = vlaneseq
  %v833 = vshrl.u32 %v832, 7
  %v834 = vsub.s32 %v831, %v833
  %v835 = vrot.slane %v807, %v834
  %v836 = vcombine.low %v814, %v821
  %v837 = vcombine.low %v828, %v835
  %v839 = vunpack.c.l.s4 1966171168
  %v840 = vunpack.c.0.s8 %v839
  %v841 = vlaneseq
  %v842 = vshrl.u32 %v841, 7
  %v843 = vsub.s32 %v840, %v842
  %v844 = vrot.slane %v836, %v843
  %v846 = vunpack.c.l.s4 1966171168
  %v847 = vunpack.c.0.s8 %v846
  %v848 = vlaneseq
  %v849 = vshrl.u32 %v848, 7
  %v850 = vsub.s32 %v847, %v849
  %v851 = vrot.slane %v837, %v850
  %v852 = vcombine.low %v844, %v851
  %v854 = vsub.f32 %v746, %v852
  %v855 = vmul.f32 %v106, %v751
  %v856 = vmul.f32 %v108, %v755
  %v857 = vmul.f32 %v147, %v759
  %v858 = vmul.f32 %v149, %v763
  %v859 = vmul.f32 %v188, %v767
  %v860 = vmul.f32 %v190, %v771
  %v861 = vmul.f32 %v229, %v775
  %v862 = vmul.f32 %v231, %v779
  %v864 = vlaneseq
  %v865 = vshrl.u32 %v864, 7
  %v866 = vsub.s32 0, %v865
  %v867 = vrot.slane %v854, %v866
  %v868 = vlaneseq
  %v869 = vshrl.u32 %v868, 7
  %v870 = vsub.s32 1, %v869
  %v871 = vrot.slane %v854, %v870
  %v872 = vlaneseq
  %v873 = vshrl.u32 %v872, 7
  %v874 = vsub.s32 2, %v873
  %v875 = vrot.slane %v854, %v874
  %v876 = vlaneseq
  %v877 = vshrl.u32 %v876, 7
  %v878 = vsub.s32 3, %v877
  %v879 = vrot.slane %v854, %v878
  %v880 = vlaneseq
  %v881 = vshrl.u32 %v880, 7
  %v882 = vsub.s32 4, %v881
  %v883 = vrot.slane %v854, %v882
  %v884 = vlaneseq
  %v885 = vshrl.u32 %v884, 7
  %v886 = vsub.s32 5, %v885
  %v887 = vrot.slane %v854, %v886
  %v888 = vlaneseq
  %v889 = vshrl.u32 %v888, 7
  %v890 = vsub.s32 6, %v889
  %v891 = vrot.slane %v854, %v890
  %v892 = vlaneseq
  %v893 = vshrl.u32 %v892, 7
  %v894 = vsub.s32 7, %v893
  %v895 = vrot.slane %v854, %v894
  %v904 = vadd.f32 %v855, %v867
  %v905 = vadd.f32 %v856, %v871
  %v906 = vadd.f32 %v857, %v875
  %v907 = vadd.f32 %v858, %v879
  %v908 = vadd.f32 %v859, %v883
  %v909 = vadd.f32 %v860, %v887
  %v910 = vadd.f32 %v861, %v891
  %v911 = vadd.f32 %v862, %v895
  %v912 = vmax.f32 %v904, 0.0
  %v913 = vmax.f32 %v905, 0.0
  %v914 = vmax.f32 %v906, 0.0
  %v915 = vmax.f32 %v907, 0.0
  %v916 = vmax.f32 %v908, 0.0
  %v917 = vmax.f32 %v909, 0.0
  %v918 = vmax.f32 %v910, 0.0
  %v919 = vmax.f32 %v911, 0.0
  %v920 = vpack.c.bf16 %v912, %v912
  %v921 = vpack.c.bf16 %v913, %v913
  %v922 = vpack.c.bf16 %v914, %v914
  %v923 = vpack.c.bf16 %v915, %v915
  %v924 = vpack.c.bf16 %v916, %v916
  %v925 = vpack.c.bf16 %v917, %v917
  %v926 = vpack.c.bf16 %v918, %v918
  %v927 = vpack.c.bf16 %v919, %v919
  %v936 = vunpack.c.l.b16 %v920
  %v937 = vunpack.c.l.b16 %v921
  %v938 = vunpack.c.l.b16 %v922
  %v939 = vunpack.c.l.b16 %v923
  %v940 = vunpack.c.l.b16 %v924
  %v941 = vunpack.c.l.b16 %v925
  %v942 = vunpack.c.l.b16 %v926
  %v943 = vunpack.c.l.b16 %v927
  %v944 = vpack.c.b16 %v937, %v936
  %v945 = vpack.c.b16 %v939, %v938
  %v946 = vpack.c.b16 %v941, %v940
  %v947 = vpack.c.b16 %v943, %v942
  %952 = vst [vmem:[%s4] sm:$0xff] %v944
  %953 = vst [vmem:[%s4 + $0x8] sm:$0xff] %v945
  %954 = vst [vmem:[%s4 + $0x10] sm:$0xff] %v946
  %955 = vst [vmem:[%s4 + $0x18] sm:$0xff] %v947
  // Predicated region
  $region18: #{generator_forward.5} parent=0 // pred_check
    _
  $region19: #{generator_forward.5} parent=0 // pred_check_branch
    %957 = sbr.rel (0) target = $region21
  $region20: #{generator_forward.5} parent=0 // pred_region
    _
  $region21: #{generator_forward.5} parent=0 // pred_fallthru
    _
  // Predicated region
  $region22: #{generator_forward.5} parent=0 // pred_check
    _
  $region23: #{generator_forward.5} parent=0 // pred_check_branch
    %959 = sbr.rel (0) target = $region25
  $region24: #{generator_forward.5} parent=0 // pred_region
    _
  $region25: #{generator_forward.5} parent=0 // pred_fallthru
    _

// kernel: generator_forward.6
$region0: #{generator_forward.6}
  #allocation0 [shape = 'u32[]', space=smem, size = 0x4, offset = 0x4, fixed_abs, tag = 'smem constant byte address 0x4 - core index']
  #allocation1 [shape = 'u32[144,128]{1,0:T(1,128)}', space=vmem, size = 0x12000, scoped, tag = 'internal scratch']
  %s0 = inlined_call_operand.vmem [shape: bf16[56,256], index: 0, kind: input, shape index: {}]
  %s1 = inlined_call_operand.vmem [shape: bf16[256,128], index: 1, kind: input, shape index: {}]
  %s2 = inlined_call_operand.vmem [shape: bf16[56,128], index: 2, kind: input, shape index: {}]
  %s3 = inlined_call_operand.vmem [shape: f32[1,128], index: 3, kind: input, shape index: {}]
  %s4 = inlined_call_operand.vmem [shape: f32[1,128], index: 4, kind: input, shape index: {}]
  %s5 = inlined_call_operand.vmem [shape: bf16[56,128], index: 5, kind: output, shape index: {}]
  %s6 = sld [smem:[#allocation0]]
  $region30: #{generator_forward.6} parent=0
    _
  %s8 = ssub.s32 1, %s6
  %s9 = scalar_select 0, %s8, %s6
  // Predicated region
  $region2: #{generator_forward.6} parent=0 // pred_check
    _
  $region3: #{generator_forward.6} parent=0 // pred_check_branch
    %11 = sbr.rel (0) target = $region5
  $region4: #{generator_forward.6} parent=0 // pred_region
    _
  $region5: #{generator_forward.6} parent=0 // pred_fallthru
    _
  // Predicated region
  $region6: #{generator_forward.6} parent=0 // pred_check
    _
  $region7: #{generator_forward.6} parent=0 // pred_check_branch
    %13 = sbr.rel (0) target = $region9
  $region8: #{generator_forward.6} parent=0 // pred_region
    _
  $region9: #{generator_forward.6} parent=0 // pred_fallthru
    _
  // Predicated region
  $region10: #{generator_forward.6} parent=0 // pred_check
    _
  $region11: #{generator_forward.6} parent=0 // pred_check_branch
    %15 = sbr.rel (0) target = $region13
  $region12: #{generator_forward.6} parent=0 // pred_region
    _
  $region13: #{generator_forward.6} parent=0 // pred_fallthru
    _
  // Predicated region
  $region14: #{generator_forward.6} parent=0 // pred_check
    _
  $region15: #{generator_forward.6} parent=0 // pred_check_branch
    %17 = sbr.rel (0) target = $region17
  $region16: #{generator_forward.6} parent=0 // pred_region
    _
  $region17: #{generator_forward.6} parent=0 // pred_fallthru
    _
  // Predicated region
  $region18: #{generator_forward.6} parent=0 // pred_check
    _
  $region19: #{generator_forward.6} parent=0 // pred_check_branch
    %19 = sbr.rel (0) target = $region21
  $region20: #{generator_forward.6} parent=0 // pred_region
    _
  $region21: #{generator_forward.6} parent=0 // pred_fallthru
    _
  %v21 = vld [vmem:[%s0] sm:$0xff]
  %v22 = vld [vmem:[%s0 + $0x8] sm:$0xff]
  %v23 = vld [vmem:[%s0 + $0x10] sm:$0xff]
  %v24 = vld [vmem:[%s0 + $0x18] sm:$0xff]
  %v25 = vld [vmem:[%s0 + $0x20] sm:$0xff]
  %v26 = vld [vmem:[%s0 + $0x28] sm:$0xff]
  %v27 = vld [vmem:[%s0 + $0x30] sm:$0xff]
  %v28 = vld [vmem:[%s1] sm:$0xf]
  %v29 = vld [vmem:[%s1 + $0x4] sm:$0xf]
  %v30 = vld [vmem:[%s1 + $0x8] sm:$0xf]
  %v31 = vld [vmem:[%s1 + $0xc] sm:$0xf]
  %v32 = vld [vmem:[%s1 + $0x10] sm:$0xf]
  %v33 = vld [vmem:[%s1 + $0x14] sm:$0xf]
  %v34 = vld [vmem:[%s1 + $0x18] sm:$0xf]
  %v35 = vld [vmem:[%s1 + $0x1c] sm:$0xf]
  %v36 = vld [vmem:[%s1 + $0x20] sm:$0xf]
  %v37 = vld [vmem:[%s1 + $0x24] sm:$0xf]
  %v38 = vld [vmem:[%s1 + $0x28] sm:$0xf]
  %v39 = vld [vmem:[%s1 + $0x2c] sm:$0xf]
  %v40 = vld [vmem:[%s1 + $0x30] sm:$0xf]
  %v41 = vld [vmem:[%s1 + $0x34] sm:$0xf]
  %v42 = vld [vmem:[%s1 + $0x38] sm:$0xf]
  %v43 = vld [vmem:[%s1 + $0x3c] sm:$0xf]
  %v44 = vld [vmem:[%s1 + $0x40] sm:$0xf]
  %v45 = vld [vmem:[%s1 + $0x44] sm:$0xf]
  %v46 = vld [vmem:[%s1 + $0x48] sm:$0xf]
  %v47 = vld [vmem:[%s1 + $0x4c] sm:$0xf]
  %v48 = vld [vmem:[%s1 + $0x50] sm:$0xf]
  %v49 = vld [vmem:[%s1 + $0x54] sm:$0xf]
  %v50 = vld [vmem:[%s1 + $0x58] sm:$0xf]
  %v51 = vld [vmem:[%s1 + $0x5c] sm:$0xf]
  %v52 = vld [vmem:[%s1 + $0x60] sm:$0xf]
  %v53 = vld [vmem:[%s1 + $0x64] sm:$0xf]
  %v54 = vld [vmem:[%s1 + $0x68] sm:$0xf]
  %v55 = vld [vmem:[%s1 + $0x6c] sm:$0xf]
  %v56 = vld [vmem:[%s1 + $0x70] sm:$0xf]
  %v57 = vld [vmem:[%s1 + $0x74] sm:$0xf]
  %v58 = vld [vmem:[%s1 + $0x78] sm:$0xf]
  %v59 = vld [vmem:[%s1 + $0x7c] sm:$0xf]
  %v67 = vunpack.c.l.b16 %v21
  %v68 = vunpack.c.h.b16 %v21
  %v69 = vunpack.c.l.b16 %v22
  %v70 = vunpack.c.h.b16 %v22
  %v71 = vunpack.c.l.b16 %v23
  %v72 = vunpack.c.h.b16 %v23
  %v73 = vunpack.c.l.b16 %v24
  %v74 = vunpack.c.h.b16 %v24
  %v75 = vunpack.c.l.b16 %v25
  %v76 = vunpack.c.h.b16 %v25
  %v77 = vunpack.c.l.b16 %v26
  %v78 = vunpack.c.h.b16 %v26
  %v79 = vunpack.c.l.b16 %v27
  %v80 = vunpack.c.h.b16 %v27
  %v81 = vpack.c.b16 %v69, %v67
  %v82 = vpack.c.b16 %v70, %v68
  %v83 = vpack.c.b16 %v73, %v71
  %v84 = vpack.c.b16 %v74, %v72
  %v85 = vpack.c.b16 %v77, %v75
  %v86 = vpack.c.b16 %v78, %v76
  %v87 = vpack.c.b16 %v79, %v79
  %v88 = vpack.c.b16 %v80, %v80
  %v129 = vunpack.c.l.b16 %v28
  %v130 = vunpack.c.l.b16 %v29
  %v131 = vunpack.c.l.b16 %v30
  %v132 = vunpack.c.l.b16 %v31
  %v133 = vunpack.c.l.b16 %v32
  %v134 = vunpack.c.l.b16 %v33
  %v135 = vunpack.c.l.b16 %v34
  %v136 = vunpack.c.l.b16 %v35
  %v137 = vunpack.c.l.b16 %v36
  %v138 = vunpack.c.l.b16 %v37
  %v139 = vunpack.c.l.b16 %v38
  %v140 = vunpack.c.l.b16 %v39
  %v141 = vunpack.c.l.b16 %v40
  %v142 = vunpack.c.l.b16 %v41
  %v143 = vunpack.c.l.b16 %v42
  %v144 = vunpack.c.l.b16 %v43
  %v145 = vunpack.c.l.b16 %v44
  %v146 = vunpack.c.l.b16 %v45
  %v147 = vunpack.c.l.b16 %v46
  %v148 = vunpack.c.l.b16 %v47
  %v149 = vunpack.c.l.b16 %v48
  %v150 = vunpack.c.l.b16 %v49
  %v151 = vunpack.c.l.b16 %v50
  %v152 = vunpack.c.l.b16 %v51
  %v153 = vunpack.c.l.b16 %v52
  %v154 = vunpack.c.l.b16 %v53
  %v155 = vunpack.c.l.b16 %v54
  %v156 = vunpack.c.l.b16 %v55
  %v157 = vunpack.c.l.b16 %v56
  %v158 = vunpack.c.l.b16 %v57
  %v159 = vunpack.c.l.b16 %v58
  %v160 = vunpack.c.l.b16 %v59
  %v161 = vpack.c.b16 %v130, %v129
  %v162 = vpack.c.b16 %v132, %v131
  %v163 = vpack.c.b16 %v134, %v133
  %v164 = vpack.c.b16 %v136, %v135
  %v165 = vpack.c.b16 %v138, %v137
  %v166 = vpack.c.b16 %v140, %v139
  %v167 = vpack.c.b16 %v142, %v141
  %v168 = vpack.c.b16 %v144, %v143
  %v169 = vpack.c.b16 %v146, %v145
  %v170 = vpack.c.b16 %v148, %v147
  %v171 = vpack.c.b16 %v150, %v149
  %v172 = vpack.c.b16 %v152, %v151
  %v173 = vpack.c.b16 %v154, %v153
  %v174 = vpack.c.b16 %v156, %v155
  %v175 = vpack.c.b16 %v158, %v157
  %v176 = vpack.c.b16 %v160, %v159
  %193 = vmatprep.subr.bf16.mxu0 0
  %194 = vmatpush1.bf16.msra.mxu0 %v161
  %195 = vmatprep.subr.bf16.mxu0 0
  %196 = vmatpush1.bf16.msra.mxu0 %v162
  %197 = vmatprep.subr.bf16.mxu0 0
  %198 = vmatpush1.bf16.msra.mxu0 %v163
  %199 = vmatprep.subr.bf16.mxu0 0
  %200 = vmatpush1.bf16.msra.mxu0 %v164
  %201 = vmatprep.subr.bf16.mxu0 0
  %202 = vmatpush1.bf16.msra.mxu0 %v165
  %203 = vmatprep.subr.bf16.mxu0 0
  %204 = vmatpush1.bf16.msra.mxu0 %v166
  %205 = vmatprep.subr.bf16.mxu0 0
  %206 = vmatpush1.bf16.msra.mxu0 %v167
  %207 = vmatprep.subr.bf16.mxu0 0
  %208 = vmatpush1.bf16.msra.mxu0 %v168
  %209 = vmatprep.subr.bf16.mxu0 0
  %210 = vmatpush1.bf16.msra.mxu0 %v169
  %211 = vmatprep.subr.bf16.mxu0 0
  %212 = vmatpush1.bf16.msra.mxu0 %v170
  %213 = vmatprep.subr.bf16.mxu0 0
  %214 = vmatpush1.bf16.msra.mxu0 %v171
  %215 = vmatprep.subr.bf16.mxu0 0
  %216 = vmatpush1.bf16.msra.mxu0 %v172
  %217 = vmatprep.subr.bf16.mxu0 0
  %218 = vmatpush1.bf16.msra.mxu0 %v173
  %219 = vmatprep.subr.bf16.mxu0 0
  %220 = vmatpush1.bf16.msra.mxu0 %v174
  %221 = vmatprep.subr.bf16.mxu0 0
  %222 = vmatpush1.bf16.msra.mxu0 %v175
  %223 = vmatprep.subr.bf16.mxu0 0
  %224 = vmatpush1.bf16.msra.mxu0 %v176
  %225 = vmatprep.mubr.bf16.mxu0 %v82
  %226 = vmatmul.mubr.bf16.gmra.mrb[0].mxu0 %v81
  %v227 = vpop.f32.mrb[0].mxu0
  %v228 = vadd.f32 0.0, %v227
  %v229 = vpop.f32.mrb[0].mxu0
  %v230 = vpop.f32.mrb[0].mxu0
  %v231 = vadd.f32 0.0, %v230
  %v232 = vpop.f32.mrb[0].mxu0
  %233 = vmatprep.mubr.bf16.mxu0 %v84
  %234 = vmatmul.mubr.bf16.gmra.mrb[0].mxu0 %v83
  %v235 = vpop.f32.mrb[0].mxu0
  %v236 = vadd.f32 0.0, %v235
  %v237 = vpop.f32.mrb[0].mxu0
  %v238 = vpop.f32.mrb[0].mxu0
  %v239 = vadd.f32 0.0, %v238
  %v240 = vpop.f32.mrb[0].mxu0
  %241 = vmatprep.mubr.bf16.mxu0 %v86
  %242 = vmatmul.mubr.bf16.gmra.mrb[0].mxu0 %v85
  %v243 = vpop.f32.mrb[0].mxu0
  %v244 = vadd.f32 0.0, %v243
  %v245 = vpop.f32.mrb[0].mxu0
  %v246 = vpop.f32.mrb[0].mxu0
  %v247 = vadd.f32 0.0, %v246
  %v248 = vpop.f32.mrb[0].mxu0
  %249 = vmatprep.mubr.bf16.mxu0 %v88
  %250 = vmatmul.mubr.bf16.gmra.mrb[0].mxu0 %v87
  %v251 = vpop.f32.mrb[0].mxu0
  %v252 = vadd.f32 0.0, %v251
  %v253 = vpop.f32.mrb[0].mxu0
  %v254 = vpop.f32.mrb[0].mxu0
  %v255 = vpop.f32.mrb[0].mxu0
  %256 = vdwg.mxu0
  %v257 = vld [vmem:[%s2] sm:$0xf]
  %v258 = vld [vmem:[%s2 + $0x4] sm:$0xf]
  %v259 = vld [vmem:[%s2 + $0x8] sm:$0xf]
  %v260 = vld [vmem:[%s2 + $0xc] sm:$0xf]
  %v261 = vld [vmem:[%s2 + $0x10] sm:$0xf]
  %v262 = vld [vmem:[%s2 + $0x14] sm:$0xf]
  %v263 = vld [vmem:[%s2 + $0x18] sm:$0xf]
  %v264 = vunpack.c.l.bf16 %v257
  %v265 = vunpack.c.l.bf16 %v258
  %v266 = vunpack.c.l.bf16 %v259
  %v267 = vunpack.c.l.bf16 %v260
  %v268 = vunpack.c.l.bf16 %v261
  %v269 = vunpack.c.l.bf16 %v262
  %v270 = vunpack.c.l.bf16 %v263
  %v271 = vmul.f32 %v228, %v264
  %v272 = vmul.f32 %v231, %v265
  %v273 = vmul.f32 %v236, %v266
  %v274 = vmul.f32 %v239, %v267
  %v275 = vmul.f32 %v244, %v268
  %v276 = vmul.f32 %v247, %v269
  %v277 = vmul.f32 %v252, %v270
  %v278 = vadd.f32 %v271, %v272
  %v279 = vadd.f32 %v278, %v273
  %v280 = vadd.f32 %v279, %v274
  %v281 = vadd.f32 %v280, %v275
  %v282 = vadd.f32 %v281, %v276
  %v283 = vadd.f32 %v282, %v277
  %v284 = vrot.slane %v283, 4
  %v285 = vadd.f32 %v283, %v284
  %v286 = vrot.slane %v285, 2
  %v287 = vadd.f32 %v285, %v286
  %v288 = vrot.slane %v287, 1
  %v289 = vadd.f32 %v287, %v288
  %v290 = vmul.f32 %v271, %v228
  %v291 = vmul.f32 %v272, %v231
  %v292 = vmul.f32 %v273, %v236
  %v293 = vmul.f32 %v274, %v239
  %v294 = vmul.f32 %v275, %v244
  %v295 = vmul.f32 %v276, %v247
  %v296 = vmul.f32 %v277, %v252
  %v297 = vadd.f32 %v290, %v291
  %v298 = vadd.f32 %v297, %v292
  %v299 = vadd.f32 %v298, %v293
  %v300 = vadd.f32 %v299, %v294
  %v301 = vadd.f32 %v300, %v295
  %v302 = vadd.f32 %v301, %v296
  %v303 = vrot.slane %v302, 4
  %v304 = vadd.f32 %v302, %v303
  %v305 = vrot.slane %v304, 2
  %v306 = vadd.f32 %v304, %v305
  %v307 = vrot.slane %v306, 1
  %v308 = vadd.f32 %v306, %v307
  %309 = vrot.lane.b32.xlu0 %v289, 32
  %v310 = vpop.permute.xlu0 %309
  %v311 = vadd.f32 %v289, %v310
  %312 = vrot.lane.b32.xlu0 %v308, 32
  %v313 = vpop.permute.xlu0 %312
  %v314 = vadd.f32 %v308, %v313
  %315 = vrot.lane.b32.xlu0 %v289, 64
  %v316 = vpop.permute.xlu0 %315
  %v317 = vadd.f32 %v311, %v316
  %318 = vrot.lane.b32.xlu0 %v308, 64
  %v319 = vpop.permute.xlu0 %318
  %v320 = vadd.f32 %v314, %v319
  %321 = vrot.lane.b32.xlu0 %v289, 96
  %v322 = vpop.permute.xlu0 %321
  %v323 = vadd.f32 %v317, %v322
  %324 = vrot.lane.b32.xlu0 %v308, 96
  %v325 = vpop.permute.xlu0 %324
  %v326 = vadd.f32 %v320, %v325
  %v327 = vmul.f32 %v323, 0.0078125
  %v328 = vmul.f32 %v326, 0.0078125
  %v329 = vmul.f32 %v327, %v327
  %v330 = vsub.f32 %v328, %v329
  %v331 = vmax.f32 %v330, 0.0
  %v332 = vld [vmem:[%s3] sm:$0x1]
  %v333 = vadd.f32 %v331, 1e-05
  %v334 = vrsqrt.pop %v333
  %v335 = vmul.f32 %v332, %v334
  %v336 = vld [vmem:[%s4] sm:$0x1]
  %v337 = vmul.f32 %v327, %v335
  %v338 = vsub.f32 %v336, %v337
  %v340 = vlaneseq
  %v341 = vshrl.u32 %v340, 7
  %v342 = vsub.s32 0, %v341
  %v343 = vrot.slane %v335, %v342
  %v345 = vmul.f32 %v228, %v343
  %v346 = vmul.f32 %v231, %v343
  %v347 = vmul.f32 %v236, %v343
  %v348 = vmul.f32 %v239, %v343
  %v349 = vmul.f32 %v244, %v343
  %v350 = vmul.f32 %v247, %v343
  %v351 = vmul.f32 %v252, %v343
  %v353 = vlaneseq
  %v354 = vshrl.u32 %v353, 7
  %v355 = vsub.s32 0, %v354
  %v356 = vrot.slane %v338, %v355
  %v358 = vadd.f32 %v345, %v356
  %v359 = vadd.f32 %v346, %v356
  %v360 = vadd.f32 %v347, %v356
  %v361 = vadd.f32 %v348, %v356
  %v362 = vadd.f32 %v349, %v356
  %v363 = vadd.f32 %v350, %v356
  %v364 = vadd.f32 %v351, %v356
  %v365 = vmax.f32 %v358, 0.0
  %v366 = vmax.f32 %v359, 0.0
  %v367 = vmax.f32 %v360, 0.0
  %v368 = vmax.f32 %v361, 0.0
  %v369 = vmax.f32 %v362, 0.0
  %v370 = vmax.f32 %v363, 0.0
  %v371 = vmax.f32 %v364, 0.0
  %v372 = vpack.c.bf16 %v366, %v365
  %v373 = vpack.c.bf16 %v368, %v367
  %v374 = vpack.c.bf16 %v370, %v369
  %v375 = vpack.c.bf16 %v371, %v371
  %v380 = vunpack.c.l.b16 %v372
  %v381 = vunpack.c.h.b16 %v372
  %v382 = vunpack.c.l.b16 %v373
  %v383 = vunpack.c.h.b16 %v373
  %v384 = vunpack.c.l.b16 %v374
  %v385 = vunpack.c.h.b16 %v374
  %v386 = vunpack.c.l.b16 %v375
  %v387 = vpack.c.b16 %v380, %v380
  %v388 = vpack.c.b16 %v381, %v381
  %v389 = vpack.c.b16 %v382, %v382
  %v390 = vpack.c.b16 %v383, %v383
  %v391 = vpack.c.b16 %v384, %v384
  %v392 = vpack.c.b16 %v385, %v385
  %v393 = vpack.c.b16 %v386, %v386
  %401 = vst [vmem:[%s5] sm:$0xf] %v387
  %402 = vst [vmem:[%s5 + $0x4] sm:$0xf] %v388
  %403 = vst [vmem:[%s5 + $0x8] sm:$0xf] %v389
  %404 = vst [vmem:[%s5 + $0xc] sm:$0xf] %v390
  %405 = vst [vmem:[%s5 + $0x10] sm:$0xf] %v391
  %406 = vst [vmem:[%s5 + $0x14] sm:$0xf] %v392
  %407 = vst [vmem:[%s5 + $0x18] sm:$0xf] %v393
  // Predicated region
  $region22: #{generator_forward.6} parent=0 // pred_check
    _
  $region23: #{generator_forward.6} parent=0 // pred_check_branch
    %409 = sbr.rel (0) target = $region25
  $region24: #{generator_forward.6} parent=0 // pred_region
    _
  $region25: #{generator_forward.6} parent=0 // pred_fallthru
    _
  // Predicated region
  $region26: #{generator_forward.6} parent=0 // pred_check
    _
  $region27: #{generator_forward.6} parent=0 // pred_check_branch
    %411 = sbr.rel (0) target = $region29
  $region28: #{generator_forward.6} parent=0 // pred_region
    _
  $region29: #{generator_forward.6} parent=0 // pred_fallthru
    _

// kernel: generator_forward.7
$region0: #{generator_forward.7}
  #allocation0 [shape = 'u32[]', space=smem, size = 0x4, offset = 0x4, fixed_abs, tag = 'smem constant byte address 0x4 - core index']
  #allocation1 [shape = 'u32[144,128]{1,0:T(1,128)}', space=vmem, size = 0x12000, scoped, tag = 'internal scratch']
  %s0 = inlined_call_operand.vmem [shape: bf16[168,128], index: 0, kind: input, shape index: {}]
  %s1 = inlined_call_operand.vmem [shape: bf16[128,128], index: 1, kind: input, shape index: {}]
  %s2 = inlined_call_operand.vmem [shape: bf16[168,128], index: 2, kind: input, shape index: {}]
  %s3 = inlined_call_operand.vmem [shape: f32[1,128], index: 3, kind: input, shape index: {}]
  %s4 = inlined_call_operand.vmem [shape: f32[1,128], index: 4, kind: input, shape index: {}]
  %s5 = inlined_call_operand.vmem [shape: bf16[168,128], index: 5, kind: output, shape index: {}]
  %s6 = sld [smem:[#allocation0]]
  $region30: #{generator_forward.7} parent=0
    _
  %s8 = ssub.s32 1, %s6
  %s9 = scalar_select 0, %s8, %s6
  // Predicated region
  $region2: #{generator_forward.7} parent=0 // pred_check
    _
  $region3: #{generator_forward.7} parent=0 // pred_check_branch
    %11 = sbr.rel (0) target = $region5
  $region4: #{generator_forward.7} parent=0 // pred_region
    _
  $region5: #{generator_forward.7} parent=0 // pred_fallthru
    _
  // Predicated region
  $region6: #{generator_forward.7} parent=0 // pred_check
    _
  $region7: #{generator_forward.7} parent=0 // pred_check_branch
    %13 = sbr.rel (0) target = $region9
  $region8: #{generator_forward.7} parent=0 // pred_region
    _
  $region9: #{generator_forward.7} parent=0 // pred_fallthru
    _
  // Predicated region
  $region10: #{generator_forward.7} parent=0 // pred_check
    _
  $region11: #{generator_forward.7} parent=0 // pred_check_branch
    %15 = sbr.rel (0) target = $region13
  $region12: #{generator_forward.7} parent=0 // pred_region
    _
  $region13: #{generator_forward.7} parent=0 // pred_fallthru
    _
  // Predicated region
  $region14: #{generator_forward.7} parent=0 // pred_check
    _
  $region15: #{generator_forward.7} parent=0 // pred_check_branch
    %17 = sbr.rel (0) target = $region17
  $region16: #{generator_forward.7} parent=0 // pred_region
    _
  $region17: #{generator_forward.7} parent=0 // pred_fallthru
    _
  // Predicated region
  $region18: #{generator_forward.7} parent=0 // pred_check
    _
  $region19: #{generator_forward.7} parent=0 // pred_check_branch
    %19 = sbr.rel (0) target = $region21
  $region20: #{generator_forward.7} parent=0 // pred_region
    _
  $region21: #{generator_forward.7} parent=0 // pred_fallthru
    _
  %v21 = vld [vmem:[%s0] sm:$0xf]
  %v22 = vld [vmem:[%s0 + $0x4] sm:$0xf]
  %v23 = vld [vmem:[%s0 + $0x8] sm:$0xf]
  %v24 = vld [vmem:[%s0 + $0xc] sm:$0xf]
  %v25 = vld [vmem:[%s0 + $0x10] sm:$0xf]
  %v26 = vld [vmem:[%s0 + $0x14] sm:$0xf]
  %v27 = vld [vmem:[%s0 + $0x18] sm:$0xf]
  %v28 = vld [vmem:[%s0 + $0x1c] sm:$0xf]
  %v29 = vld [vmem:[%s0 + $0x20] sm:$0xf]
  %v30 = vld [vmem:[%s0 + $0x24] sm:$0xf]
  %v31 = vld [vmem:[%s0 + $0x28] sm:$0xf]
  %v32 = vld [vmem:[%s0 + $0x2c] sm:$0xf]
  %v33 = vld [vmem:[%s0 + $0x30] sm:$0xf]
  %v34 = vld [vmem:[%s0 + $0x34] sm:$0xf]
  %v35 = vld [vmem:[%s0 + $0x38] sm:$0xf]
  %v36 = vld [vmem:[%s0 + $0x3c] sm:$0xf]
  %v37 = vld [vmem:[%s0 + $0x40] sm:$0xf]
  %v38 = vld [vmem:[%s0 + $0x44] sm:$0xf]
  %v39 = vld [vmem:[%s0 + $0x48] sm:$0xf]
  %v40 = vld [vmem:[%s0 + $0x4c] sm:$0xf]
  %v41 = vld [vmem:[%s0 + $0x50] sm:$0xf]
  %v42 = vld [vmem:[%s1] sm:$0xf]
  %v43 = vld [vmem:[%s1 + $0x4] sm:$0xf]
  %v44 = vld [vmem:[%s1 + $0x8] sm:$0xf]
  %v45 = vld [vmem:[%s1 + $0xc] sm:$0xf]
  %v46 = vld [vmem:[%s1 + $0x10] sm:$0xf]
  %v47 = vld [vmem:[%s1 + $0x14] sm:$0xf]
  %v48 = vld [vmem:[%s1 + $0x18] sm:$0xf]
  %v49 = vld [vmem:[%s1 + $0x1c] sm:$0xf]
  %v50 = vld [vmem:[%s1 + $0x20] sm:$0xf]
  %v51 = vld [vmem:[%s1 + $0x24] sm:$0xf]
  %v52 = vld [vmem:[%s1 + $0x28] sm:$0xf]
  %v53 = vld [vmem:[%s1 + $0x2c] sm:$0xf]
  %v54 = vld [vmem:[%s1 + $0x30] sm:$0xf]
  %v55 = vld [vmem:[%s1 + $0x34] sm:$0xf]
  %v56 = vld [vmem:[%s1 + $0x38] sm:$0xf]
  %v57 = vld [vmem:[%s1 + $0x3c] sm:$0xf]
  %v79 = vunpack.c.l.b16 %v21
  %v80 = vunpack.c.l.b16 %v22
  %v81 = vunpack.c.l.b16 %v23
  %v82 = vunpack.c.l.b16 %v24
  %v83 = vunpack.c.l.b16 %v25
  %v84 = vunpack.c.l.b16 %v26
  %v85 = vunpack.c.l.b16 %v27
  %v86 = vunpack.c.l.b16 %v28
  %v87 = vunpack.c.l.b16 %v29
  %v88 = vunpack.c.l.b16 %v30
  %v89 = vunpack.c.l.b16 %v31
  %v90 = vunpack.c.l.b16 %v32
  %v91 = vunpack.c.l.b16 %v33
  %v92 = vunpack.c.l.b16 %v34
  %v93 = vunpack.c.l.b16 %v35
  %v94 = vunpack.c.l.b16 %v36
  %v95 = vunpack.c.l.b16 %v37
  %v96 = vunpack.c.l.b16 %v38
  %v97 = vunpack.c.l.b16 %v39
  %v98 = vunpack.c.l.b16 %v40
  %v99 = vunpack.c.l.b16 %v41
  %v100 = vpack.c.b16 %v80, %v79
  %v101 = vpack.c.b16 %v82, %v81
  %v102 = vpack.c.b16 %v84, %v83
  %v103 = vpack.c.b16 %v86, %v85
  %v104 = vpack.c.b16 %v88, %v87
  %v105 = vpack.c.b16 %v90, %v89
  %v106 = vpack.c.b16 %v92, %v91
  %v107 = vpack.c.b16 %v94, %v93
  %v108 = vpack.c.b16 %v96, %v95
  %v109 = vpack.c.b16 %v98, %v97
  %v110 = vpack.c.b16 %v99, %v99
  %v138 = vunpack.c.l.b16 %v42
  %v139 = vunpack.c.l.b16 %v43
  %v140 = vunpack.c.l.b16 %v44
  %v141 = vunpack.c.l.b16 %v45
  %v142 = vunpack.c.l.b16 %v46
  %v143 = vunpack.c.l.b16 %v47
  %v144 = vunpack.c.l.b16 %v48
  %v145 = vunpack.c.l.b16 %v49
  %v146 = vunpack.c.l.b16 %v50
  %v147 = vunpack.c.l.b16 %v51
  %v148 = vunpack.c.l.b16 %v52
  %v149 = vunpack.c.l.b16 %v53
  %v150 = vunpack.c.l.b16 %v54
  %v151 = vunpack.c.l.b16 %v55
  %v152 = vunpack.c.l.b16 %v56
  %v153 = vunpack.c.l.b16 %v57
  %v154 = vpack.c.b16 %v139, %v138
  %v155 = vpack.c.b16 %v141, %v140
  %v156 = vpack.c.b16 %v143, %v142
  %v157 = vpack.c.b16 %v145, %v144
  %v158 = vpack.c.b16 %v147, %v146
  %v159 = vpack.c.b16 %v149, %v148
  %v160 = vpack.c.b16 %v151, %v150
  %v161 = vpack.c.b16 %v153, %v152
  %170 = vmatprep.subr.bf16.mxu0 0
  %171 = vmatpush1.bf16.msra.mxu0 %v154
  %172 = vmatprep.subr.bf16.mxu0 0
  %173 = vmatpush1.bf16.msra.mxu0 %v155
  %174 = vmatprep.subr.bf16.mxu0 0
  %175 = vmatpush1.bf16.msra.mxu0 %v156
  %176 = vmatprep.subr.bf16.mxu0 0
  %177 = vmatpush1.bf16.msra.mxu0 %v157
  %178 = vmatprep.subr.bf16.mxu0 0
  %179 = vmatpush1.bf16.msra.mxu0 %v158
  %180 = vmatprep.subr.bf16.mxu0 0
  %181 = vmatpush1.bf16.msra.mxu0 %v159
  %182 = vmatprep.subr.bf16.mxu0 0
  %183 = vmatpush1.bf16.msra.mxu0 %v160
  %184 = vmatprep.subr.bf16.mxu0 0
  %185 = vmatpush1.bf16.msra.mxu0 %v161
  %186 = vmatprep.subr.bf16.mxu0 0
  %187 = vmatpush1.bf16.msra.mxu0 0
  %188 = vmatprep.subr.bf16.mxu0 0
  %189 = vmatpush1.bf16.msra.mxu0 0
  %190 = vmatprep.subr.bf16.mxu0 0
  %191 = vmatpush1.bf16.msra.mxu0 0
  %192 = vmatprep.subr.bf16.mxu0 0
  %193 = vmatpush1.bf16.msra.mxu0 0
  %194 = vmatprep.subr.bf16.mxu0 0
  %195 = vmatpush1.bf16.msra.mxu0 0
  %196 = vmatprep.subr.bf16.mxu0 0
  %197 = vmatpush1.bf16.msra.mxu0 0
  %198 = vmatprep.subr.bf16.mxu0 0
  %199 = vmatpush1.bf16.msra.mxu0 0
  %200 = vmatprep.subr.bf16.mxu0 0
  %201 = vmatpush1.bf16.msra.mxu0 0
  %202 = vmatprep.mubr.bf16.mxu0 0
  %203 = vmatmul.mubr.bf16.gmra.mrb[0].mxu0 %v100
  %v204 = vpop.f32.mrb[0].mxu0
  %v205 = vadd.f32 0.0, %v204
  %v206 = vpop.f32.mrb[0].mxu0
  %v207 = vpop.f32.mrb[0].mxu0
  %v208 = vadd.f32 0.0, %v207
  %v209 = vpop.f32.mrb[0].mxu0
  %210 = vmatprep.mubr.bf16.mxu0 0
  %211 = vmatmul.mubr.bf16.gmra.mrb[0].mxu0 %v101
  %v212 = vpop.f32.mrb[0].mxu0
  %v213 = vadd.f32 0.0, %v212
  %v214 = vpop.f32.mrb[0].mxu0
  %v215 = vpop.f32.mrb[0].mxu0
  %v216 = vadd.f32 0.0, %v215
  %v217 = vpop.f32.mrb[0].mxu0
  %218 = vmatprep.mubr.bf16.mxu0 0
  %219 = vmatmul.mubr.bf16.gmra.mrb[0].mxu0 %v102
  %v220 = vpop.f32.mrb[0].mxu0
  %v221 = vadd.f32 0.0, %v220
  %v222 = vpop.f32.mrb[0].mxu0
  %v223 = vpop.f32.mrb[0].mxu0
  %v224 = vadd.f32 0.0, %v223
  %v225 = vpop.f32.mrb[0].mxu0
  %226 = vmatprep.mubr.bf16.mxu0 0
  %227 = vmatmul.mubr.bf16.gmra.mrb[0].mxu0 %v103
  %v228 = vpop.f32.mrb[0].mxu0
  %v229 = vadd.f32 0.0, %v228
  %v230 = vpop.f32.mrb[0].mxu0
  %v231 = vpop.f32.mrb[0].mxu0
  %v232 = vadd.f32 0.0, %v231
  %v233 = vpop.f32.mrb[0].mxu0
  %234 = vmatprep.mubr.bf16.mxu0 0
  %235 = vmatmul.mubr.bf16.gmra.mrb[0].mxu0 %v104
  %v236 = vpop.f32.mrb[0].mxu0
  %v237 = vadd.f32 0.0, %v236
  %v238 = vpop.f32.mrb[0].mxu0
  %v239 = vpop.f32.mrb[0].mxu0
  %v240 = vadd.f32 0.0, %v239
  %v241 = vpop.f32.mrb[0].mxu0
  %242 = vmatprep.mubr.bf16.mxu0 0
  %243 = vmatmul.mubr.bf16.gmra.mrb[0].mxu0 %v105
  %v244 = vpop.f32.mrb[0].mxu0
  %v245 = vadd.f32 0.0, %v244
  %v246 = vpop.f32.mrb[0].mxu0
  %v247 = vpop.f32.mrb[0].mxu0
  %v248 = vadd.f32 0.0, %v247
  %v249 = vpop.f32.mrb[0].mxu0
  %250 = vmatprep.mubr.bf16.mxu0 0
  %251 = vmatmul.mubr.bf16.gmra.mrb[0].mxu0 %v106
  %v252 = vpop.f32.mrb[0].mxu0
  %v253 = vadd.f32 0.0, %v252
  %v254 = vpop.f32.mrb[0].mxu0
  %v255 = vpop.f32.mrb[0].mxu0
  %v256 = vadd.f32 0.0, %v255
  %v257 = vpop.f32.mrb[0].mxu0
  %258 = vmatprep.mubr.bf16.mxu0 0
  %259 = vmatmul.mubr.bf16.gmra.mrb[0].mxu0 %v107
  %v260 = vpop.f32.mrb[0].mxu0
  %v261 = vadd.f32 0.0, %v260
  %v262 = vpop.f32.mrb[0].mxu0
  %v263 = vpop.f32.mrb[0].mxu0
  %v264 = vadd.f32 0.0, %v263
  %v265 = vpop.f32.mrb[0].mxu0
  %266 = vmatprep.mubr.bf16.mxu0 0
  %267 = vmatmul.mubr.bf16.gmra.mrb[0].mxu0 %v108
  %v268 = vpop.f32.mrb[0].mxu0
  %v269 = vadd.f32 0.0, %v268
  %v270 = vpop.f32.mrb[0].mxu0
  %v271 = vpop.f32.mrb[0].mxu0
  %v272 = vadd.f32 0.0, %v271
  %v273 = vpop.f32.mrb[0].mxu0
  %274 = vmatprep.mubr.bf16.mxu0 0
  %275 = vmatmul.mubr.bf16.gmra.mrb[0].mxu0 %v109
  %v276 = vpop.f32.mrb[0].mxu0
  %v277 = vadd.f32 0.0, %v276
  %v278 = vpop.f32.mrb[0].mxu0
  %v279 = vpop.f32.mrb[0].mxu0
  %v280 = vadd.f32 0.0, %v279
  %v281 = vpop.f32.mrb[0].mxu0
  %282 = vmatprep.mubr.bf16.mxu0 0
  %283 = vmatmul.mubr.bf16.gmra.mrb[0].mxu0 %v110
  %v284 = vpop.f32.mrb[0].mxu0
  %v285 = vadd.f32 0.0, %v284
  %v286 = vpop.f32.mrb[0].mxu0
  %v287 = vpop.f32.mrb[0].mxu0
  %v288 = vpop.f32.mrb[0].mxu0
  %289 = vdwg.mxu0
  %v290 = vld [vmem:[%s2] sm:$0xf]
  %v291 = vld [vmem:[%s2 + $0x4] sm:$0xf]
  %v292 = vld [vmem:[%s2 + $0x8] sm:$0xf]
  %v293 = vld [vmem:[%s2 + $0xc] sm:$0xf]
  %v294 = vld [vmem:[%s2 + $0x10] sm:$0xf]
  %v295 = vld [vmem:[%s2 + $0x14] sm:$0xf]
  %v296 = vld [vmem:[%s2 + $0x18] sm:$0xf]
  %v297 = vld [vmem:[%s2 + $0x1c] sm:$0xf]
  %v298 = vld [vmem:[%s2 + $0x20] sm:$0xf]
  %v299 = vld [vmem:[%s2 + $0x24] sm:$0xf]
  %v300 = vld [vmem:[%s2 + $0x28] sm:$0xf]
  %v301 = vld [vmem:[%s2 + $0x2c] sm:$0xf]
  %v302 = vld [vmem:[%s2 + $0x30] sm:$0xf]
  %v303 = vld [vmem:[%s2 + $0x34] sm:$0xf]
  %v304 = vld [vmem:[%s2 + $0x38] sm:$0xf]
  %v305 = vld [vmem:[%s2 + $0x3c] sm:$0xf]
  %v306 = vld [vmem:[%s2 + $0x40] sm:$0xf]
  %v307 = vld [vmem:[%s2 + $0x44] sm:$0xf]
  %v308 = vld [vmem:[%s2 + $0x48] sm:$0xf]
  %v309 = vld [vmem:[%s2 + $0x4c] sm:$0xf]
  %v310 = vld [vmem:[%s2 + $0x50] sm:$0xf]
  %v311 = vunpack.c.l.bf16 %v290
  %v312 = vunpack.c.l.bf16 %v291
  %v313 = vunpack.c.l.bf16 %v292
  %v314 = vunpack.c.l.bf16 %v293
  %v315 = vunpack.c.l.bf16 %v294
  %v316 = vunpack.c.l.bf16 %v295
  %v317 = vunpack.c.l.bf16 %v296
  %v318 = vunpack.c.l.bf16 %v297
  %v319 = vunpack.c.l.bf16 %v298
  %v320 = vunpack.c.l.bf16 %v299
  %v321 = vunpack.c.l.bf16 %v300
  %v322 = vunpack.c.l.bf16 %v301
  %v323 = vunpack.c.l.bf16 %v302
  %v324 = vunpack.c.l.bf16 %v303
  %v325 = vunpack.c.l.bf16 %v304
  %v326 = vunpack.c.l.bf16 %v305
  %v327 = vunpack.c.l.bf16 %v306
  %v328 = vunpack.c.l.bf16 %v307
  %v329 = vunpack.c.l.bf16 %v308
  %v330 = vunpack.c.l.bf16 %v309
  %v331 = vunpack.c.l.bf16 %v310
  %v332 = vmul.f32 %v205, %v311
  %v333 = vmul.f32 %v208, %v312
  %v334 = vmul.f32 %v213, %v313
  %v335 = vmul.f32 %v216, %v314
  %v336 = vmul.f32 %v221, %v315
  %v337 = vmul.f32 %v224, %v316
  %v338 = vmul.f32 %v229, %v317
  %v339 = vmul.f32 %v232, %v318
  %v340 = vmul.f32 %v237, %v319
  %v341 = vmul.f32 %v240, %v320
  %v342 = vmul.f32 %v245, %v321
  %v343 = vmul.f32 %v248, %v322
  %v344 = vmul.f32 %v253, %v323
  %v345 = vmul.f32 %v256, %v324
  %v346 = vmul.f32 %v261, %v325
  %v347 = vmul.f32 %v264, %v326
  %v348 = vmul.f32 %v269, %v327
  %v349 = vmul.f32 %v272, %v328
  %v350 = vmul.f32 %v277, %v329
  %v351 = vmul.f32 %v280, %v330
  %v352 = vmul.f32 %v285, %v331
  %v353 = vadd.f32 %v332, %v333
  %v354 = vadd.f32 %v353, %v334
  %v355 = vadd.f32 %v354, %v335
  %v356 = vadd.f32 %v355, %v336
  %v357 = vadd.f32 %v356, %v337
  %v358 = vadd.f32 %v357, %v338
  %v359 = vadd.f32 %v358, %v339
  %v360 = vadd.f32 %v359, %v340
  %v361 = vadd.f32 %v360, %v341
  %v362 = vadd.f32 %v361, %v342
  %v363 = vadd.f32 %v362, %v343
  %v364 = vadd.f32 %v363, %v344
  %v365 = vadd.f32 %v364, %v345
  %v366 = vadd.f32 %v365, %v346
  %v367 = vadd.f32 %v366, %v347
  %v368 = vadd.f32 %v367, %v348
  %v369 = vadd.f32 %v368, %v349
  %v370 = vadd.f32 %v369, %v350
  %v371 = vadd.f32 %v370, %v351
  %v372 = vadd.f32 %v371, %v352
  %v373 = vrot.slane %v372, 4
  %v374 = vadd.f32 %v372, %v373
  %v375 = vrot.slane %v374, 2
  %v376 = vadd.f32 %v374, %v375
  %v377 = vrot.slane %v376, 1
  %v378 = vadd.f32 %v376, %v377
  %v379 = vmul.f32 %v332, %v205
  %v380 = vmul.f32 %v333, %v208
  %v381 = vmul.f32 %v334, %v213
  %v382 = vmul.f32 %v335, %v216
  %v383 = vmul.f32 %v336, %v221
  %v384 = vmul.f32 %v337, %v224
  %v385 = vmul.f32 %v338, %v229
  %v386 = vmul.f32 %v339, %v232
  %v387 = vmul.f32 %v340, %v237
  %v388 = vmul.f32 %v341, %v240
  %v389 = vmul.f32 %v342, %v245
  %v390 = vmul.f32 %v343, %v248
  %v391 = vmul.f32 %v344, %v253
  %v392 = vmul.f32 %v345, %v256
  %v393 = vmul.f32 %v346, %v261
  %v394 = vmul.f32 %v347, %v264
  %v395 = vmul.f32 %v348, %v269
  %v396 = vmul.f32 %v349, %v272
  %v397 = vmul.f32 %v350, %v277
  %v398 = vmul.f32 %v351, %v280
  %v399 = vmul.f32 %v352, %v285
  %v400 = vadd.f32 %v379, %v380
  %v401 = vadd.f32 %v400, %v381
  %v402 = vadd.f32 %v401, %v382
  %v403 = vadd.f32 %v402, %v383
  %v404 = vadd.f32 %v403, %v384
  %v405 = vadd.f32 %v404, %v385
  %v406 = vadd.f32 %v405, %v386
  %v407 = vadd.f32 %v406, %v387
  %v408 = vadd.f32 %v407, %v388
  %v409 = vadd.f32 %v408, %v389
  %v410 = vadd.f32 %v409, %v390
  %v411 = vadd.f32 %v410, %v391
  %v412 = vadd.f32 %v411, %v392
  %v413 = vadd.f32 %v412, %v393
  %v414 = vadd.f32 %v413, %v394
  %v415 = vadd.f32 %v414, %v395
  %v416 = vadd.f32 %v415, %v396
  %v417 = vadd.f32 %v416, %v397
  %v418 = vadd.f32 %v417, %v398
  %v419 = vadd.f32 %v418, %v399
  %v420 = vrot.slane %v419, 4
  %v421 = vadd.f32 %v419, %v420
  %v422 = vrot.slane %v421, 2
  %v423 = vadd.f32 %v421, %v422
  %v424 = vrot.slane %v423, 1
  %v425 = vadd.f32 %v423, %v424
  %426 = vrot.lane.b32.xlu0 %v378, 16
  %v427 = vpop.permute.xlu0 %426
  %v428 = vadd.f32 %v378, %v427
  %429 = vrot.lane.b32.xlu0 %v425, 16
  %v430 = vpop.permute.xlu0 %429
  %v431 = vadd.f32 %v425, %v430
  %432 = vrot.lane.b32.xlu0 %v378, 32
  %v433 = vpop.permute.xlu0 %432
  %v434 = vadd.f32 %v428, %v433
  %435 = vrot.lane.b32.xlu0 %v425, 32
  %v436 = vpop.permute.xlu0 %435
  %v437 = vadd.f32 %v431, %v436
  %438 = vrot.lane.b32.xlu0 %v378, 48
  %v439 = vpop.permute.xlu0 %438
  %v440 = vadd.f32 %v434, %v439
  %441 = vrot.lane.b32.xlu0 %v425, 48
  %v442 = vpop.permute.xlu0 %441
  %v443 = vadd.f32 %v437, %v442
  %444 = vrot.lane.b32.xlu0 %v378, 64
  %v445 = vpop.permute.xlu0 %444
  %v446 = vadd.f32 %v440, %v445
  %447 = vrot.lane.b32.xlu0 %v425, 64
  %v448 = vpop.permute.xlu0 %447
  %v449 = vadd.f32 %v443, %v448
  %450 = vrot.lane.b32.xlu0 %v378, 80
  %v451 = vpop.permute.xlu0 %450
  %v452 = vadd.f32 %v446, %v451
  %453 = vrot.lane.b32.xlu0 %v425, 80
  %v454 = vpop.permute.xlu0 %453
  %v455 = vadd.f32 %v449, %v454
  %456 = vrot.lane.b32.xlu0 %v378, 96
  %v457 = vpop.permute.xlu0 %456
  %v458 = vadd.f32 %v452, %v457
  %459 = vrot.lane.b32.xlu0 %v425, 96
  %v460 = vpop.permute.xlu0 %459
  %v461 = vadd.f32 %v455, %v460
  %462 = vrot.lane.b32.xlu0 %v378, 112
  %v463 = vpop.permute.xlu0 %462
  %v464 = vadd.f32 %v458, %v463
  %465 = vrot.lane.b32.xlu0 %v425, 112
  %v466 = vpop.permute.xlu0 %465
  %v467 = vadd.f32 %v461, %v466
  %v468 = vmul.f32 %v464, 0.001953125
  %v469 = vmul.f32 %v467, 0.001953125
  %v470 = vmul.f32 %v468, %v468
  %v471 = vsub.f32 %v469, %v470
  %v472 = vmax.f32 %v471, 0.0
  %v473 = vld [vmem:[%s3] sm:$0x1]
  %v474 = vadd.f32 %v472, 1e-05
  %v475 = vrsqrt.pop %v474
  %v476 = vmul.f32 %v473, %v475
  %v477 = vld [vmem:[%s4] sm:$0x1]
  %v478 = vmul.f32 %v468, %v476
  %v479 = vsub.f32 %v477, %v478
  %v481 = vlaneseq
  %v482 = vshrl.u32 %v481, 7
  %v483 = vsub.s32 0, %v482
  %v484 = vrot.slane %v476, %v483
  %v486 = vmul.f32 %v205, %v484
  %v487 = vmul.f32 %v208, %v484
  %v488 = vmul.f32 %v213, %v484
  %v489 = vmul.f32 %v216, %v484
  %v490 = vmul.f32 %v221, %v484
  %v491 = vmul.f32 %v224, %v484
  %v492 = vmul.f32 %v229, %v484
  %v493 = vmul.f32 %v232, %v484
  %v494 = vmul.f32 %v237, %v484
  %v495 = vmul.f32 %v240, %v484
  %v496 = vmul.f32 %v245, %v484
  %v497 = vmul.f32 %v248, %v484
  %v498 = vmul.f32 %v253, %v484
  %v499 = vmul.f32 %v256, %v484
  %v500 = vmul.f32 %v261, %v484
  %v501 = vmul.f32 %v264, %v484
  %v502 = vmul.f32 %v269, %v484
  %v503 = vmul.f32 %v272, %v484
  %v504 = vmul.f32 %v277, %v484
  %v505 = vmul.f32 %v280, %v484
  %v506 = vmul.f32 %v285, %v484
  %v508 = vlaneseq
  %v509 = vshrl.u32 %v508, 7
  %v510 = vsub.s32 0, %v509
  %v511 = vrot.slane %v479, %v510
  %v513 = vadd.f32 %v486, %v511
  %v514 = vadd.f32 %v487, %v511
  %v515 = vadd.f32 %v488, %v511
  %v516 = vadd.f32 %v489, %v511
  %v517 = vadd.f32 %v490, %v511
  %v518 = vadd.f32 %v491, %v511
  %v519 = vadd.f32 %v492, %v511
  %v520 = vadd.f32 %v493, %v511
  %v521 = vadd.f32 %v494, %v511
  %v522 = vadd.f32 %v495, %v511
  %v523 = vadd.f32 %v496, %v511
  %v524 = vadd.f32 %v497, %v511
  %v525 = vadd.f32 %v498, %v511
  %v526 = vadd.f32 %v499, %v511
  %v527 = vadd.f32 %v500, %v511
  %v528 = vadd.f32 %v501, %v511
  %v529 = vadd.f32 %v502, %v511
  %v530 = vadd.f32 %v503, %v511
  %v531 = vadd.f32 %v504, %v511
  %v532 = vadd.f32 %v505, %v511
  %v533 = vadd.f32 %v506, %v511
  %v534 = vmax.f32 %v513, 0.0
  %v535 = vmax.f32 %v514, 0.0
  %v536 = vmax.f32 %v515, 0.0
  %v537 = vmax.f32 %v516, 0.0
  %v538 = vmax.f32 %v517, 0.0
  %v539 = vmax.f32 %v518, 0.0
  %v540 = vmax.f32 %v519, 0.0
  %v541 = vmax.f32 %v520, 0.0
  %v542 = vmax.f32 %v521, 0.0
  %v543 = vmax.f32 %v522, 0.0
  %v544 = vmax.f32 %v523, 0.0
  %v545 = vmax.f32 %v524, 0.0
  %v546 = vmax.f32 %v525, 0.0
  %v547 = vmax.f32 %v526, 0.0
  %v548 = vmax.f32 %v527, 0.0
  %v549 = vmax.f32 %v528, 0.0
  %v550 = vmax.f32 %v529, 0.0
  %v551 = vmax.f32 %v530, 0.0
  %v552 = vmax.f32 %v531, 0.0
  %v553 = vmax.f32 %v532, 0.0
  %v554 = vmax.f32 %v533, 0.0
  %v555 = vpack.c.bf16 %v535, %v534
  %v556 = vpack.c.bf16 %v537, %v536
  %v557 = vpack.c.bf16 %v539, %v538
  %v558 = vpack.c.bf16 %v541, %v540
  %v559 = vpack.c.bf16 %v543, %v542
  %v560 = vpack.c.bf16 %v545, %v544
  %v561 = vpack.c.bf16 %v547, %v546
  %v562 = vpack.c.bf16 %v549, %v548
  %v563 = vpack.c.bf16 %v551, %v550
  %v564 = vpack.c.bf16 %v553, %v552
  %v565 = vpack.c.bf16 %v554, %v554
  %v577 = vunpack.c.l.b16 %v555
  %v578 = vunpack.c.h.b16 %v555
  %v579 = vunpack.c.l.b16 %v556
  %v580 = vunpack.c.h.b16 %v556
  %v581 = vunpack.c.l.b16 %v557
  %v582 = vunpack.c.h.b16 %v557
  %v583 = vunpack.c.l.b16 %v558
  %v584 = vunpack.c.h.b16 %v558
  %v585 = vunpack.c.l.b16 %v559
  %v586 = vunpack.c.h.b16 %v559
  %v587 = vunpack.c.l.b16 %v560
  %v588 = vunpack.c.h.b16 %v560
  %v589 = vunpack.c.l.b16 %v561
  %v590 = vunpack.c.h.b16 %v561
  %v591 = vunpack.c.l.b16 %v562
  %v592 = vunpack.c.h.b16 %v562
  %v593 = vunpack.c.l.b16 %v563
  %v594 = vunpack.c.h.b16 %v563
  %v595 = vunpack.c.l.b16 %v564
  %v596 = vunpack.c.h.b16 %v564
  %v597 = vunpack.c.l.b16 %v565
  %v598 = vpack.c.b16 %v577, %v577
  %v599 = vpack.c.b16 %v578, %v578
  %v600 = vpack.c.b16 %v579, %v579
  %v601 = vpack.c.b16 %v580, %v580
  %v602 = vpack.c.b16 %v581, %v581
  %v603 = vpack.c.b16 %v582, %v582
  %v604 = vpack.c.b16 %v583, %v583
  %v605 = vpack.c.b16 %v584, %v584
  %v606 = vpack.c.b16 %v585, %v585
  %v607 = vpack.c.b16 %v586, %v586
  %v608 = vpack.c.b16 %v587, %v587
  %v609 = vpack.c.b16 %v588, %v588
  %v610 = vpack.c.b16 %v589, %v589
  %v611 = vpack.c.b16 %v590, %v590
  %v612 = vpack.c.b16 %v591, %v591
  %v613 = vpack.c.b16 %v592, %v592
  %v614 = vpack.c.b16 %v593, %v593
  %v615 = vpack.c.b16 %v594, %v594
  %v616 = vpack.c.b16 %v595, %v595
  %v617 = vpack.c.b16 %v596, %v596
  %v618 = vpack.c.b16 %v597, %v597
  %640 = vst [vmem:[%s5] sm:$0xf] %v598
  %641 = vst [vmem:[%s5 + $0x4] sm:$0xf] %v599
  %642 = vst [vmem:[%s5 + $0x8] sm:$0xf] %v600
  %643 = vst [vmem:[%s5 + $0xc] sm:$0xf] %v601
  %644 = vst [vmem:[%s5 + $0x10] sm:$0xf] %v602
  %645 = vst [vmem:[%s5 + $0x14] sm:$0xf] %v603
  %646 = vst [vmem:[%s5 + $0x18] sm:$0xf] %v604
  %647 = vst [vmem:[%s5 + $0x1c] sm:$0xf] %v605
  %648 = vst [vmem:[%s5 + $0x20] sm:$0xf] %v606
  %649 = vst [vmem:[%s5 + $0x24] sm:$0xf] %v607
  %650 = vst [vmem:[%s5 + $0x28] sm:$0xf] %v608
  %651 = vst [vmem:[%s5 + $0x2c] sm:$0xf] %v609
  %652 = vst [vmem:[%s5 + $0x30] sm:$0xf] %v610
  %653 = vst [vmem:[%s5 + $0x34] sm:$0xf] %v611
  %654 = vst [vmem:[%s5 + $0x38] sm:$0xf] %v612
  %655 = vst [vmem:[%s5 + $0x3c] sm:$0xf] %v613
  %656 = vst [vmem:[%s5 + $0x40] sm:$0xf] %v614
  %657 = vst [vmem:[%s5 + $0x44] sm:$0xf] %v615
  %658 = vst [vmem:[%s5 + $0x48] sm:$0xf] %v616
  %659 = vst [vmem:[%s5 + $0x4c] sm:$0xf] %v617
  %660 = vst [vmem:[%s5 + $0x50] sm:$0xf] %v618
  // Predicated region
  $region22: #{generator_forward.7} parent=0 // pred_check
    _
  $region23: #{generator_forward.7} parent=0 // pred_check_branch
    %662 = sbr.rel (0) target = $region25
  $region24: #{generator_forward.7} parent=0 // pred_region
    _
  $region25: #{generator_forward.7} parent=0 // pred_fallthru
    _
  // Predicated region
  $region26: #{generator_forward.7} parent=0 // pred_check
    _
  $region27: #{generator_forward.7} parent=0 // pred_check_branch
    %664 = sbr.rel (0) target = $region29
  $region28: #{generator_forward.7} parent=0 // pred_region
    _
  $region29: #{generator_forward.7} parent=0 // pred_fallthru
    _

// kernel: generator_forward.8
$region0: #{generator_forward.8}
  #allocation0 [shape = 'u32[]', space=smem, size = 0x4, offset = 0x4, fixed_abs, tag = 'smem constant byte address 0x4 - core index']
  #allocation1 [shape = 'u32[144,128]{1,0:T(1,128)}', space=vmem, size = 0x12000, scoped, tag = 'internal scratch']
  %s0 = inlined_call_operand.vmem [shape: bf16[584,64], index: 0, kind: input, shape index: {}]
  %s1 = inlined_call_operand.vmem [shape: bf16[64,128], index: 1, kind: input, shape index: {}]
  %s2 = inlined_call_operand.vmem [shape: bf16[584,128], index: 2, kind: input, shape index: {}]
  %s3 = inlined_call_operand.vmem [shape: f32[1,128], index: 3, kind: input, shape index: {}]
  %s4 = inlined_call_operand.vmem [shape: f32[1,128], index: 4, kind: input, shape index: {}]
  %s5 = inlined_call_operand.vmem [shape: bf16[584,128], index: 5, kind: output, shape index: {}]
  %s6 = sld [smem:[#allocation0]]
  $region30: #{generator_forward.8} parent=0
    _
  %s8 = ssub.s32 1, %s6
  %s9 = scalar_select 0, %s8, %s6
  // Predicated region
  $region2: #{generator_forward.8} parent=0 // pred_check
    _
  $region3: #{generator_forward.8} parent=0 // pred_check_branch
    %11 = sbr.rel (0) target = $region5
  $region4: #{generator_forward.8} parent=0 // pred_region
    _
  $region5: #{generator_forward.8} parent=0 // pred_fallthru
    _
  // Predicated region
  $region6: #{generator_forward.8} parent=0 // pred_check
    _
  $region7: #{generator_forward.8} parent=0 // pred_check_branch
    %13 = sbr.rel (0) target = $region9
  $region8: #{generator_forward.8} parent=0 // pred_region
    _
  $region9: #{generator_forward.8} parent=0 // pred_fallthru
    _
  // Predicated region
  $region10: #{generator_forward.8} parent=0 // pred_check
    _
  $region11: #{generator_forward.8} parent=0 // pred_check_branch
    %15 = sbr.rel (0) target = $region13
  $region12: #{generator_forward.8} parent=0 // pred_region
    _
  $region13: #{generator_forward.8} parent=0 // pred_fallthru
    _
  // Predicated region
  $region14: #{generator_forward.8} parent=0 // pred_check
    _
  $region15: #{generator_forward.8} parent=0 // pred_check_branch
    %17 = sbr.rel (0) target = $region17
  $region16: #{generator_forward.8} parent=0 // pred_region
    _
  $region17: #{generator_forward.8} parent=0 // pred_fallthru
    _
  // Predicated region
  $region18: #{generator_forward.8} parent=0 // pred_check
    _
  $region19: #{generator_forward.8} parent=0 // pred_check_branch
    %19 = sbr.rel (0) target = $region21
  $region20: #{generator_forward.8} parent=0 // pred_region
    _
  $region21: #{generator_forward.8} parent=0 // pred_fallthru
    _
  %v21 = vld [vmem:[%s0] sm:$0xf]
  %v22 = vld [vmem:[%s0 + $0x4] sm:$0xf]
  %v23 = vld [vmem:[%s0 + $0x8] sm:$0xf]
  %v24 = vld [vmem:[%s0 + $0xc] sm:$0xf]
  %v25 = vld [vmem:[%s0 + $0x10] sm:$0xf]
  %v26 = vld [vmem:[%s0 + $0x14] sm:$0xf]
  %v27 = vld [vmem:[%s0 + $0x18] sm:$0xf]
  %v28 = vld [vmem:[%s0 + $0x1c] sm:$0xf]
  %v29 = vld [vmem:[%s0 + $0x20] sm:$0xf]
  %v30 = vld [vmem:[%s0 + $0x24] sm:$0xf]
  %v31 = vld [vmem:[%s0 + $0x28] sm:$0xf]
  %v32 = vld [vmem:[%s0 + $0x2c] sm:$0xf]
  %v33 = vld [vmem:[%s0 + $0x30] sm:$0xf]
  %v34 = vld [vmem:[%s0 + $0x34] sm:$0xf]
  %v35 = vld [vmem:[%s0 + $0x38] sm:$0xf]
  %v36 = vld [vmem:[%s0 + $0x3c] sm:$0xf]
  %v37 = vld [vmem:[%s0 + $0x40] sm:$0xf]
  %v38 = vld [vmem:[%s0 + $0x44] sm:$0xf]
  %v39 = vld [vmem:[%s0 + $0x48] sm:$0xf]
  %v40 = vld [vmem:[%s0 + $0x4c] sm:$0xf]
  %v41 = vld [vmem:[%s0 + $0x50] sm:$0xf]
  %v42 = vld [vmem:[%s0 + $0x54] sm:$0xf]
  %v43 = vld [vmem:[%s0 + $0x58] sm:$0xf]
  %v44 = vld [vmem:[%s0 + $0x5c] sm:$0xf]
  %v45 = vld [vmem:[%s0 + $0x60] sm:$0xf]
  %v46 = vld [vmem:[%s0 + $0x64] sm:$0xf]
  %v47 = vld [vmem:[%s0 + $0x68] sm:$0xf]
  %v48 = vld [vmem:[%s0 + $0x6c] sm:$0xf]
  %v49 = vld [vmem:[%s0 + $0x70] sm:$0xf]
  %v50 = vld [vmem:[%s0 + $0x74] sm:$0xf]
  %v51 = vld [vmem:[%s0 + $0x78] sm:$0xf]
  %v52 = vld [vmem:[%s0 + $0x7c] sm:$0xf]
  %v53 = vld [vmem:[%s0 + $0x80] sm:$0xf]
  %v54 = vld [vmem:[%s0 + $0x84] sm:$0xf]
  %v55 = vld [vmem:[%s0 + $0x88] sm:$0xf]
  %v56 = vld [vmem:[%s0 + $0x8c] sm:$0xf]
  %v57 = vld [vmem:[%s0 + $0x90] sm:$0xf]
  %v58 = vld [vmem:[%s0 + $0x94] sm:$0xf]
  %v59 = vld [vmem:[%s0 + $0x98] sm:$0xf]
  %v60 = vld [vmem:[%s0 + $0x9c] sm:$0xf]
  %v61 = vld [vmem:[%s0 + $0xa0] sm:$0xf]
  %v62 = vld [vmem:[%s0 + $0xa4] sm:$0xf]
  %v63 = vld [vmem:[%s0 + $0xa8] sm:$0xf]
  %v64 = vld [vmem:[%s0 + $0xac] sm:$0xf]
  %v65 = vld [vmem:[%s0 + $0xb0] sm:$0xf]
  %v66 = vld [vmem:[%s0 + $0xb4] sm:$0xf]
  %v67 = vld [vmem:[%s0 + $0xb8] sm:$0xf]
  %v68 = vld [vmem:[%s0 + $0xbc] sm:$0xf]
  %v69 = vld [vmem:[%s0 + $0xc0] sm:$0xf]
  %v70 = vld [vmem:[%s0 + $0xc4] sm:$0xf]
  %v71 = vld [vmem:[%s0 + $0xc8] sm:$0xf]
  %v72 = vld [vmem:[%s0 + $0xcc] sm:$0xf]
  %v73 = vld [vmem:[%s0 + $0xd0] sm:$0xf]
  %v74 = vld [vmem:[%s0 + $0xd4] sm:$0xf]
  %v75 = vld [vmem:[%s0 + $0xd8] sm:$0xf]
  %v76 = vld [vmem:[%s0 + $0xdc] sm:$0xf]
  %v77 = vld [vmem:[%s0 + $0xe0] sm:$0xf]
  %v78 = vld [vmem:[%s0 + $0xe4] sm:$0xf]
  %v79 = vld [vmem:[%s0 + $0xe8] sm:$0xf]
  %v80 = vld [vmem:[%s0 + $0xec] sm:$0xf]
  %v81 = vld [vmem:[%s0 + $0xf0] sm:$0xf]
  %v82 = vld [vmem:[%s0 + $0xf4] sm:$0xf]
  %v83 = vld [vmem:[%s0 + $0xf8] sm:$0xf]
  %v84 = vld [vmem:[%s0 + $0xfc] sm:$0xf]
  %v85 = vld [vmem:[%s0 + $0x100] sm:$0xf]
  %v86 = vld [vmem:[%s0 + $0x104] sm:$0xf]
  %v87 = vld [vmem:[%s0 + $0x108] sm:$0xf]
  %v88 = vld [vmem:[%s0 + $0x10c] sm:$0xf]
  %v89 = vld [vmem:[%s0 + $0x110] sm:$0xf]
  %v90 = vld [vmem:[%s0 + $0x114] sm:$0xf]
  %v91 = vld [vmem:[%s0 + $0x118] sm:$0xf]
  %v92 = vld [vmem:[%s0 + $0x11c] sm:$0xf]
  %v93 = vld [vmem:[%s0 + $0x120] sm:$0xf]
  %v94 = vld [vmem:[%s1] sm:$0xf]
  %v95 = vld [vmem:[%s1 + $0x4] sm:$0xf]
  %v96 = vld [vmem:[%s1 + $0x8] sm:$0xf]
  %v97 = vld [vmem:[%s1 + $0xc] sm:$0xf]
  %v98 = vld [vmem:[%s1 + $0x10] sm:$0xf]
  %v99 = vld [vmem:[%s1 + $0x14] sm:$0xf]
  %v100 = vld [vmem:[%s1 + $0x18] sm:$0xf]
  %v101 = vld [vmem:[%s1 + $0x1c] sm:$0xf]
  %v175 = vunpack.c.l.b16 %v21
  %v176 = vunpack.c.l.b16 %v22
  %v177 = vunpack.c.l.b16 %v23
  %v178 = vunpack.c.l.b16 %v24
  %v179 = vunpack.c.l.b16 %v25
  %v180 = vunpack.c.l.b16 %v26
  %v181 = vunpack.c.l.b16 %v27
  %v182 = vunpack.c.l.b16 %v28
  %v183 = vunpack.c.l.b16 %v29
  %v184 = vunpack.c.l.b16 %v30
  %v185 = vunpack.c.l.b16 %v31
  %v186 = vunpack.c.l.b16 %v32
  %v187 = vunpack.c.l.b16 %v33
  %v188 = vunpack.c.l.b16 %v34
  %v189 = vunpack.c.l.b16 %v35
  %v190 = vunpack.c.l.b16 %v36
  %v191 = vunpack.c.l.b16 %v37
  %v192 = vunpack.c.l.b16 %v38
  %v193 = vunpack.c.l.b16 %v39
  %v194 = vunpack.c.l.b16 %v40
  %v195 = vunpack.c.l.b16 %v41
  %v196 = vunpack.c.l.b16 %v42
  %v197 = vunpack.c.l.b16 %v43
  %v198 = vunpack.c.l.b16 %v44
  %v199 = vunpack.c.l.b16 %v45
  %v200 = vunpack.c.l.b16 %v46
  %v201 = vunpack.c.l.b16 %v47
  %v202 = vunpack.c.l.b16 %v48
  %v203 = vunpack.c.l.b16 %v49
  %v204 = vunpack.c.l.b16 %v50
  %v205 = vunpack.c.l.b16 %v51
  %v206 = vunpack.c.l.b16 %v52
  %v207 = vunpack.c.l.b16 %v53
  %v208 = vunpack.c.l.b16 %v54
  %v209 = vunpack.c.l.b16 %v55
  %v210 = vunpack.c.l.b16 %v56
  %v211 = vunpack.c.l.b16 %v57
  %v212 = vunpack.c.l.b16 %v58
  %v213 = vunpack.c.l.b16 %v59
  %v214 = vunpack.c.l.b16 %v60
  %v215 = vunpack.c.l.b16 %v61
  %v216 = vunpack.c.l.b16 %v62
  %v217 = vunpack.c.l.b16 %v63
  %v218 = vunpack.c.l.b16 %v64
  %v219 = vunpack.c.l.b16 %v65
  %v220 = vunpack.c.l.b16 %v66
  %v221 = vunpack.c.l.b16 %v67
  %v222 = vunpack.c.l.b16 %v68
  %v223 = vunpack.c.l.b16 %v69
  %v224 = vunpack.c.l.b16 %v70
  %v225 = vunpack.c.l.b16 %v71
  %v226 = vunpack.c.l.b16 %v72
  %v227 = vunpack.c.l.b16 %v73
  %v228 = vunpack.c.l.b16 %v74
  %v229 = vunpack.c.l.b16 %v75
  %v230 = vunpack.c.l.b16 %v76
  %v231 = vunpack.c.l.b16 %v77
  %v232 = vunpack.c.l.b16 %v78
  %v233 = vunpack.c.l.b16 %v79
  %v234 = vunpack.c.l.b16 %v80
  %v235 = vunpack.c.l.b16 %v81
  %v236 = vunpack.c.l.b16 %v82
  %v237 = vunpack.c.l.b16 %v83
  %v238 = vunpack.c.l.b16 %v84
  %v239 = vunpack.c.l.b16 %v85
  %v240 = vunpack.c.l.b16 %v86
  %v241 = vunpack.c.l.b16 %v87
  %v242 = vunpack.c.l.b16 %v88
  %v243 = vunpack.c.l.b16 %v89
  %v244 = vunpack.c.l.b16 %v90
  %v245 = vunpack.c.l.b16 %v91
  %v246 = vunpack.c.l.b16 %v92
  %v247 = vunpack.c.l.b16 %v93
  %v248 = vpack.c.b16 %v176, %v175
  %v249 = vpack.c.b16 %v178, %v177
  %v250 = vpack.c.b16 %v180, %v179
  %v251 = vpack.c.b16 %v182, %v181
  %v252 = vpack.c.b16 %v184, %v183
  %v253 = vpack.c.b16 %v186, %v185
  %v254 = vpack.c.b16 %v188, %v187
  %v255 = vpack.c.b16 %v190, %v189
  %v256 = vpack.c.b16 %v192, %v191
  %v257 = vpack.c.b16 %v194, %v193
  %v258 = vpack.c.b16 %v196, %v195
  %v259 = vpack.c.b16 %v198, %v197
  %v260 = vpack.c.b16 %v200, %v199
  %v261 = vpack.c.b16 %v202, %v201
  %v262 = vpack.c.b16 %v204, %v203
  %v263 = vpack.c.b16 %v206, %v205
  %v264 = vpack.c.b16 %v208, %v207
  %v265 = vpack.c.b16 %v210, %v209
  %v266 = vpack.c.b16 %v212, %v211
  %v267 = vpack.c.b16 %v214, %v213
  %v268 = vpack.c.b16 %v216, %v215
  %v269 = vpack.c.b16 %v218, %v217
  %v270 = vpack.c.b16 %v220, %v219
  %v271 = vpack.c.b16 %v222, %v221
  %v272 = vpack.c.b16 %v224, %v223
  %v273 = vpack.c.b16 %v226, %v225
  %v274 = vpack.c.b16 %v228, %v227
  %v275 = vpack.c.b16 %v230, %v229
  %v276 = vpack.c.b16 %v232, %v231
  %v277 = vpack.c.b16 %v234, %v233
  %v278 = vpack.c.b16 %v236, %v235
  %v279 = vpack.c.b16 %v238, %v237
  %v280 = vpack.c.b16 %v240, %v239
  %v281 = vpack.c.b16 %v242, %v241
  %v282 = vpack.c.b16 %v244, %v243
  %v283 = vpack.c.b16 %v246, %v245
  %v284 = vpack.c.b16 %v247, %v247
  %v293 = vunpack.c.l.b16 %v94
  %v294 = vunpack.c.l.b16 %v95
  %v295 = vunpack.c.l.b16 %v96
  %v296 = vunpack.c.l.b16 %v97
  %v297 = vunpack.c.l.b16 %v98
  %v298 = vunpack.c.l.b16 %v99
  %v299 = vunpack.c.l.b16 %v100
  %v300 = vunpack.c.l.b16 %v101
  %v301 = vpack.c.b16 %v294, %v293
  %v302 = vpack.c.b16 %v296, %v295
  %v303 = vpack.c.b16 %v298, %v297
  %v304 = vpack.c.b16 %v300, %v299
  %vm309 = vcmask 523264
  %v311 = vsel %vm309, %v248, 0
  %v314 = vsel %vm309, %v249, 0
  %v317 = vsel %vm309, %v250, 0
  %v320 = vsel %vm309, %v251, 0
  %v323 = vsel %vm309, %v252, 0
  %v326 = vsel %vm309, %v253, 0
  %v329 = vsel %vm309, %v254, 0
  %v332 = vsel %vm309, %v255, 0
  %v335 = vsel %vm309, %v256, 0
  %v338 = vsel %vm309, %v257, 0
  %v341 = vsel %vm309, %v258, 0
  %v344 = vsel %vm309, %v259, 0
  %v347 = vsel %vm309, %v260, 0
  %v350 = vsel %vm309, %v261, 0
  %v353 = vsel %vm309, %v262, 0
  %v356 = vsel %vm309, %v263, 0
  %v359 = vsel %vm309, %v264, 0
  %v362 = vsel %vm309, %v265, 0
  %v365 = vsel %vm309, %v266, 0
  %v368 = vsel %vm309, %v267, 0
  %v371 = vsel %vm309, %v268, 0
  %v374 = vsel %vm309, %v269, 0
  %v377 = vsel %vm309, %v270, 0
  %v380 = vsel %vm309, %v271, 0
  %v383 = vsel %vm309, %v272, 0
  %v386 = vsel %vm309, %v273, 0
  %v389 = vsel %vm309, %v274, 0
  %v392 = vsel %vm309, %v275, 0
  %v395 = vsel %vm309, %v276, 0
  %v398 = vsel %vm309, %v277, 0
  %v401 = vsel %vm309, %v278, 0
  %v404 = vsel %vm309, %v279, 0
  %v407 = vsel %vm309, %v280, 0
  %v410 = vsel %vm309, %v281, 0
  %v413 = vsel %vm309, %v282, 0
  %v416 = vsel %vm309, %v283, 0
  %v419 = vsel %vm309, %v284, 0
  %421 = vmatprep.subr.bf16.mxu0 0
  %422 = vmatpush1.bf16.msra.mxu0 %v301
  %423 = vmatprep.subr.bf16.mxu0 0
  %424 = vmatpush1.bf16.msra.mxu0 %v302
  %425 = vmatprep.subr.bf16.mxu0 0
  %426 = vmatpush1.bf16.msra.mxu0 %v303
  %427 = vmatprep.subr.bf16.mxu0 0
  %428 = vmatpush1.bf16.msra.mxu0 %v304
  %429 = vmatprep.subr.bf16.mxu0 0
  %430 = vmatpush1.bf16.msra.mxu0 0
  %431 = vmatprep.subr.bf16.mxu0 0
  %432 = vmatpush1.bf16.msra.mxu0 0
  %433 = vmatprep.subr.bf16.mxu0 0
  %434 = vmatpush1.bf16.msra.mxu0 0
  %435 = vmatprep.subr.bf16.mxu0 0
  %436 = vmatpush1.bf16.msra.mxu0 0
  %437 = vmatprep.subr.bf16.mxu0 0
  %438 = vmatpush1.bf16.msra.mxu0 0
  %439 = vmatprep.subr.bf16.mxu0 0
  %440 = vmatpush1.bf16.msra.mxu0 0
  %441 = vmatprep.subr.bf16.mxu0 0
  %442 = vmatpush1.bf16.msra.mxu0 0
  %443 = vmatprep.subr.bf16.mxu0 0
  %444 = vmatpush1.bf16.msra.mxu0 0
  %445 = vmatprep.subr.bf16.mxu0 0
  %446 = vmatpush1.bf16.msra.mxu0 0
  %447 = vmatprep.subr.bf16.mxu0 0
  %448 = vmatpush1.bf16.msra.mxu0 0
  %449 = vmatprep.subr.bf16.mxu0 0
  %450 = vmatpush1.bf16.msra.mxu0 0
  %451 = vmatprep.subr.bf16.mxu0 0
  %452 = vmatpush1.bf16.msra.mxu0 0
  %453 = vmatprep.mubr.bf16.mxu0 0
  %454 = vmatmul.mubr.bf16.gmra.mrb[0].mxu0 %v311
  %v455 = vpop.f32.mrb[0].mxu0
  %v456 = vadd.f32 0.0, %v455
  %v457 = vpop.f32.mrb[0].mxu0
  %v458 = vpop.f32.mrb[0].mxu0
  %v459 = vadd.f32 0.0, %v458
  %v460 = vpop.f32.mrb[0].mxu0
  %461 = vmatprep.mubr.bf16.mxu0 0
  %462 = vmatmul.mubr.bf16.gmra.mrb[0].mxu0 %v314
  %v463 = vpop.f32.mrb[0].mxu0
  %v464 = vadd.f32 0.0, %v463
  %v465 = vpop.f32.mrb[0].mxu0
  %v466 = vpop.f32.mrb[0].mxu0
  %v467 = vadd.f32 0.0, %v466
  %v468 = vpop.f32.mrb[0].mxu0
  %469 = vmatprep.mubr.bf16.mxu0 0
  %470 = vmatmul.mubr.bf16.gmra.mrb[0].mxu0 %v317
  %v471 = vpop.f32.mrb[0].mxu0
  %v472 = vadd.f32 0.0, %v471
  %v473 = vpop.f32.mrb[0].mxu0
  %v474 = vpop.f32.mrb[0].mxu0
  %v475 = vadd.f32 0.0, %v474
  %v476 = vpop.f32.mrb[0].mxu0
  %477 = vmatprep.mubr.bf16.mxu0 0
  %478 = vmatmul.mubr.bf16.gmra.mrb[0].mxu0 %v320
  %v479 = vpop.f32.mrb[0].mxu0
  %v480 = vadd.f32 0.0, %v479
  %v481 = vpop.f32.mrb[0].mxu0
  %v482 = vpop.f32.mrb[0].mxu0
  %v483 = vadd.f32 0.0, %v482
  %v484 = vpop.f32.mrb[0].mxu0
  %485 = vmatprep.mubr.bf16.mxu0 0
  %486 = vmatmul.mubr.bf16.gmra.mrb[0].mxu0 %v323
  %v487 = vpop.f32.mrb[0].mxu0
  %v488 = vadd.f32 0.0, %v487
  %v489 = vpop.f32.mrb[0].mxu0
  %v490 = vpop.f32.mrb[0].mxu0
  %v491 = vadd.f32 0.0, %v490
  %v492 = vpop.f32.mrb[0].mxu0
  %493 = vmatprep.mubr.bf16.mxu0 0
  %494 = vmatmul.mubr.bf16.gmra.mrb[0].mxu0 %v326
  %v495 = vpop.f32.mrb[0].mxu0
  %v496 = vadd.f32 0.0, %v495
  %v497 = vpop.f32.mrb[0].mxu0
  %v498 = vpop.f32.mrb[0].mxu0
  %v499 = vadd.f32 0.0, %v498
  %v500 = vpop.f32.mrb[0].mxu0
  %501 = vmatprep.mubr.bf16.mxu0 0
  %502 = vmatmul.mubr.bf16.gmra.mrb[0].mxu0 %v329
  %v503 = vpop.f32.mrb[0].mxu0
  %v504 = vadd.f32 0.0, %v503
  %v505 = vpop.f32.mrb[0].mxu0
  %v506 = vpop.f32.mrb[0].mxu0
  %v507 = vadd.f32 0.0, %v506
  %v508 = vpop.f32.mrb[0].mxu0
  %509 = vmatprep.mubr.bf16.mxu0 0
  %510 = vmatmul.mubr.bf16.gmra.mrb[0].mxu0 %v332
  %v511 = vpop.f32.mrb[0].mxu0
  %v512 = vadd.f32 0.0, %v511
  %v513 = vpop.f32.mrb[0].mxu0
  %v514 = vpop.f32.mrb[0].mxu0
  %v515 = vadd.f32 0.0, %v514
  %v516 = vpop.f32.mrb[0].mxu0
  %517 = vmatprep.mubr.bf16.mxu0 0
  %518 = vmatmul.mubr.bf16.gmra.mrb[0].mxu0 %v335
  %v519 = vpop.f32.mrb[0].mxu0
  %v520 = vadd.f32 0.0, %v519
  %v521 = vpop.f32.mrb[0].mxu0
  %v522 = vpop.f32.mrb[0].mxu0
  %v523 = vadd.f32 0.0, %v522
  %v524 = vpop.f32.mrb[0].mxu0
  %525 = vmatprep.mubr.bf16.mxu0 0
  %526 = vmatmul.mubr.bf16.gmra.mrb[0].mxu0 %v338
  %v527 = vpop.f32.mrb[0].mxu0
  %v528 = vadd.f32 0.0, %v527
  %v529 = vpop.f32.mrb[0].mxu0
  %v530 = vpop.f32.mrb[0].mxu0
  %v531 = vadd.f32 0.0, %v530
  %v532 = vpop.f32.mrb[0].mxu0
  %533 = vmatprep.mubr.bf16.mxu0 0
  %534 = vmatmul.mubr.bf16.gmra.mrb[0].mxu0 %v341
  %v535 = vpop.f32.mrb[0].mxu0
  %v536 = vadd.f32 0.0, %v535
  %v537 = vpop.f32.mrb[0].mxu0
  %v538 = vpop.f32.mrb[0].mxu0
  %v539 = vadd.f32 0.0, %v538
  %v540 = vpop.f32.mrb[0].mxu0
  %541 = vmatprep.mubr.bf16.mxu0 0
  %542 = vmatmul.mubr.bf16.gmra.mrb[0].mxu0 %v344
  %v543 = vpop.f32.mrb[0].mxu0
  %v544 = vadd.f32 0.0, %v543
  %v545 = vpop.f32.mrb[0].mxu0
  %v546 = vpop.f32.mrb[0].mxu0
  %v547 = vadd.f32 0.0, %v546
  %v548 = vpop.f32.mrb[0].mxu0
  %549 = vmatprep.mubr.bf16.mxu0 0
  %550 = vmatmul.mubr.bf16.gmra.mrb[0].mxu0 %v347
  %v551 = vpop.f32.mrb[0].mxu0
  %v552 = vadd.f32 0.0, %v551
  %v553 = vpop.f32.mrb[0].mxu0
  %v554 = vpop.f32.mrb[0].mxu0
  %v555 = vadd.f32 0.0, %v554
  %v556 = vpop.f32.mrb[0].mxu0
  %557 = vmatprep.mubr.bf16.mxu0 0
  %558 = vmatmul.mubr.bf16.gmra.mrb[0].mxu0 %v350
  %v559 = vpop.f32.mrb[0].mxu0
  %v560 = vadd.f32 0.0, %v559
  %v561 = vpop.f32.mrb[0].mxu0
  %v562 = vpop.f32.mrb[0].mxu0
  %v563 = vadd.f32 0.0, %v562
  %v564 = vpop.f32.mrb[0].mxu0
  %565 = vmatprep.mubr.bf16.mxu0 0
  %566 = vmatmul.mubr.bf16.gmra.mrb[0].mxu0 %v353
  %v567 = vpop.f32.mrb[0].mxu0
  %v568 = vadd.f32 0.0, %v567
  %v569 = vpop.f32.mrb[0].mxu0
  %v570 = vpop.f32.mrb[0].mxu0
  %v571 = vadd.f32 0.0, %v570
  %v572 = vpop.f32.mrb[0].mxu0
  %573 = vmatprep.mubr.bf16.mxu0 0
  %574 = vmatmul.mubr.bf16.gmra.mrb[0].mxu0 %v356
  %v575 = vpop.f32.mrb[0].mxu0
  %v576 = vadd.f32 0.0, %v575
  %v577 = vpop.f32.mrb[0].mxu0
  %v578 = vpop.f32.mrb[0].mxu0
  %v579 = vadd.f32 0.0, %v578
  %v580 = vpop.f32.mrb[0].mxu0
  %581 = vmatprep.mubr.bf16.mxu0 0
  %582 = vmatmul.mubr.bf16.gmra.mrb[0].mxu0 %v359
  %v583 = vpop.f32.mrb[0].mxu0
  %v584 = vadd.f32 0.0, %v583
  %v585 = vpop.f32.mrb[0].mxu0
  %v586 = vpop.f32.mrb[0].mxu0
  %v587 = vadd.f32 0.0, %v586
  %v588 = vpop.f32.mrb[0].mxu0
  %589 = vmatprep.mubr.bf16.mxu0 0
  %590 = vmatmul.mubr.bf16.gmra.mrb[0].mxu0 %v362
  %v591 = vpop.f32.mrb[0].mxu0
  %v592 = vadd.f32 0.0, %v591
  %v593 = vpop.f32.mrb[0].mxu0
  %v594 = vpop.f32.mrb[0].mxu0
  %v595 = vadd.f32 0.0, %v594
  %v596 = vpop.f32.mrb[0].mxu0
  %597 = vmatprep.mubr.bf16.mxu0 0
  %598 = vmatmul.mubr.bf16.gmra.mrb[0].mxu0 %v365
  %v599 = vpop.f32.mrb[0].mxu0
  %v600 = vadd.f32 0.0, %v599
  %v601 = vpop.f32.mrb[0].mxu0
  %v602 = vpop.f32.mrb[0].mxu0
  %v603 = vadd.f32 0.0, %v602
  %v604 = vpop.f32.mrb[0].mxu0
  %605 = vmatprep.mubr.bf16.mxu0 0
  %606 = vmatmul.mubr.bf16.gmra.mrb[0].mxu0 %v368
  %v607 = vpop.f32.mrb[0].mxu0
  %v608 = vadd.f32 0.0, %v607
  %v609 = vpop.f32.mrb[0].mxu0
  %v610 = vpop.f32.mrb[0].mxu0
  %v611 = vadd.f32 0.0, %v610
  %v612 = vpop.f32.mrb[0].mxu0
  %613 = vmatprep.mubr.bf16.mxu0 0
  %614 = vmatmul.mubr.bf16.gmra.mrb[0].mxu0 %v371
  %v615 = vpop.f32.mrb[0].mxu0
  %v616 = vadd.f32 0.0, %v615
  %v617 = vpop.f32.mrb[0].mxu0
  %v618 = vpop.f32.mrb[0].mxu0
  %v619 = vadd.f32 0.0, %v618
  %v620 = vpop.f32.mrb[0].mxu0
  %621 = vmatprep.mubr.bf16.mxu0 0
  %622 = vmatmul.mubr.bf16.gmra.mrb[0].mxu0 %v374
  %v623 = vpop.f32.mrb[0].mxu0
  %v624 = vadd.f32 0.0, %v623
  %v625 = vpop.f32.mrb[0].mxu0
  %v626 = vpop.f32.mrb[0].mxu0
  %v627 = vadd.f32 0.0, %v626
  %v628 = vpop.f32.mrb[0].mxu0
  %629 = vmatprep.mubr.bf16.mxu0 0
  %630 = vmatmul.mubr.bf16.gmra.mrb[0].mxu0 %v377
  %v631 = vpop.f32.mrb[0].mxu0
  %v632 = vadd.f32 0.0, %v631
  %v633 = vpop.f32.mrb[0].mxu0
  %v634 = vpop.f32.mrb[0].mxu0
  %v635 = vadd.f32 0.0, %v634
  %v636 = vpop.f32.mrb[0].mxu0
  %637 = vmatprep.mubr.bf16.mxu0 0
  %638 = vmatmul.mubr.bf16.gmra.mrb[0].mxu0 %v380
  %v639 = vpop.f32.mrb[0].mxu0
  %v640 = vadd.f32 0.0, %v639
  %v641 = vpop.f32.mrb[0].mxu0
  %v642 = vpop.f32.mrb[0].mxu0
  %v643 = vadd.f32 0.0, %v642
  %v644 = vpop.f32.mrb[0].mxu0
  %645 = vmatprep.mubr.bf16.mxu0 0
  %646 = vmatmul.mubr.bf16.gmra.mrb[0].mxu0 %v383
  %v647 = vpop.f32.mrb[0].mxu0
  %v648 = vadd.f32 0.0, %v647
  %v649 = vpop.f32.mrb[0].mxu0
  %v650 = vpop.f32.mrb[0].mxu0
  %v651 = vadd.f32 0.0, %v650
  %v652 = vpop.f32.mrb[0].mxu0
  %653 = vmatprep.mubr.bf16.mxu0 0
  %654 = vmatmul.mubr.bf16.gmra.mrb[0].mxu0 %v386
  %v655 = vpop.f32.mrb[0].mxu0
  %v656 = vadd.f32 0.0, %v655
  %v657 = vpop.f32.mrb[0].mxu0
  %v658 = vpop.f32.mrb[0].mxu0
  %v659 = vadd.f32 0.0, %v658
  %v660 = vpop.f32.mrb[0].mxu0
  %661 = vmatprep.mubr.bf16.mxu0 0
  %662 = vmatmul.mubr.bf16.gmra.mrb[0].mxu0 %v389
  %v663 = vpop.f32.mrb[0].mxu0
  %v664 = vadd.f32 0.0, %v663
  %v665 = vpop.f32.mrb[0].mxu0
  %v666 = vpop.f32.mrb[0].mxu0
  %v667 = vadd.f32 0.0, %v666
  %v668 = vpop.f32.mrb[0].mxu0
  %669 = vmatprep.mubr.bf16.mxu0 0
  %670 = vmatmul.mubr.bf16.gmra.mrb[0].mxu0 %v392
  %v671 = vpop.f32.mrb[0].mxu0
  %v672 = vadd.f32 0.0, %v671
  %v673 = vpop.f32.mrb[0].mxu0
  %v674 = vpop.f32.mrb[0].mxu0
  %v675 = vadd.f32 0.0, %v674
  %v676 = vpop.f32.mrb[0].mxu0
  %677 = vmatprep.mubr.bf16.mxu0 0
  %678 = vmatmul.mubr.bf16.gmra.mrb[0].mxu0 %v395
  %v679 = vpop.f32.mrb[0].mxu0
  %v680 = vadd.f32 0.0, %v679
  %v681 = vpop.f32.mrb[0].mxu0
  %v682 = vpop.f32.mrb[0].mxu0
  %v683 = vadd.f32 0.0, %v682
  %v684 = vpop.f32.mrb[0].mxu0
  %685 = vmatprep.mubr.bf16.mxu0 0
  %686 = vmatmul.mubr.bf16.gmra.mrb[0].mxu0 %v398
  %v687 = vpop.f32.mrb[0].mxu0
  %v688 = vadd.f32 0.0, %v687
  %v689 = vpop.f32.mrb[0].mxu0
  %v690 = vpop.f32.mrb[0].mxu0
  %v691 = vadd.f32 0.0, %v690
  %v692 = vpop.f32.mrb[0].mxu0
  %693 = vmatprep.mubr.bf16.mxu0 0
  %694 = vmatmul.mubr.bf16.gmra.mrb[0].mxu0 %v401
  %v695 = vpop.f32.mrb[0].mxu0
  %v696 = vadd.f32 0.0, %v695
  %v697 = vpop.f32.mrb[0].mxu0
  %v698 = vpop.f32.mrb[0].mxu0
  %v699 = vadd.f32 0.0, %v698
  %v700 = vpop.f32.mrb[0].mxu0
  %701 = vmatprep.mubr.bf16.mxu0 0
  %702 = vmatmul.mubr.bf16.gmra.mrb[0].mxu0 %v404
  %v703 = vpop.f32.mrb[0].mxu0
  %v704 = vadd.f32 0.0, %v703
  %v705 = vpop.f32.mrb[0].mxu0
  %v706 = vpop.f32.mrb[0].mxu0
  %v707 = vadd.f32 0.0, %v706
  %v708 = vpop.f32.mrb[0].mxu0
  %709 = vmatprep.mubr.bf16.mxu0 0
  %710 = vmatmul.mubr.bf16.gmra.mrb[0].mxu0 %v407
  %v711 = vpop.f32.mrb[0].mxu0
  %v712 = vadd.f32 0.0, %v711
  %v713 = vpop.f32.mrb[0].mxu0
  %v714 = vpop.f32.mrb[0].mxu0
  %v715 = vadd.f32 0.0, %v714
  %v716 = vpop.f32.mrb[0].mxu0
  %717 = vmatprep.mubr.bf16.mxu0 0
  %718 = vmatmul.mubr.bf16.gmra.mrb[0].mxu0 %v410
  %v719 = vpop.f32.mrb[0].mxu0
  %v720 = vadd.f32 0.0, %v719
  %v721 = vpop.f32.mrb[0].mxu0
  %v722 = vpop.f32.mrb[0].mxu0
  %v723 = vadd.f32 0.0, %v722
  %v724 = vpop.f32.mrb[0].mxu0
  %725 = vmatprep.mubr.bf16.mxu0 0
  %726 = vmatmul.mubr.bf16.gmra.mrb[0].mxu0 %v413
  %v727 = vpop.f32.mrb[0].mxu0
  %v728 = vadd.f32 0.0, %v727
  %v729 = vpop.f32.mrb[0].mxu0
  %v730 = vpop.f32.mrb[0].mxu0
  %v731 = vadd.f32 0.0, %v730
  %v732 = vpop.f32.mrb[0].mxu0
  %733 = vmatprep.mubr.bf16.mxu0 0
  %734 = vmatmul.mubr.bf16.gmra.mrb[0].mxu0 %v416
  %v735 = vpop.f32.mrb[0].mxu0
  %v736 = vadd.f32 0.0, %v735
  %v737 = vpop.f32.mrb[0].mxu0
  %v738 = vpop.f32.mrb[0].mxu0
  %v739 = vadd.f32 0.0, %v738
  %v740 = vpop.f32.mrb[0].mxu0
  %741 = vmatprep.mubr.bf16.mxu0 0
  %742 = vmatmul.mubr.bf16.gmra.mrb[0].mxu0 %v419
  %v743 = vpop.f32.mrb[0].mxu0
  %v744 = vadd.f32 0.0, %v743
  %v745 = vpop.f32.mrb[0].mxu0
  %v746 = vpop.f32.mrb[0].mxu0
  %v747 = vpop.f32.mrb[0].mxu0
  %748 = vdwg.mxu0
  %v749 = vld [vmem:[%s2] sm:$0xf]
  %v750 = vld [vmem:[%s2 + $0x4] sm:$0xf]
  %v751 = vld [vmem:[%s2 + $0x8] sm:$0xf]
  %v752 = vld [vmem:[%s2 + $0xc] sm:$0xf]
  %v753 = vld [vmem:[%s2 + $0x10] sm:$0xf]
  %v754 = vld [vmem:[%s2 + $0x14] sm:$0xf]
  %v755 = vld [vmem:[%s2 + $0x18] sm:$0xf]
  %v756 = vld [vmem:[%s2 + $0x1c] sm:$0xf]
  %v757 = vld [vmem:[%s2 + $0x20] sm:$0xf]
  %v758 = vld [vmem:[%s2 + $0x24] sm:$0xf]
  %v759 = vld [vmem:[%s2 + $0x28] sm:$0xf]
  %v760 = vld [vmem:[%s2 + $0x2c] sm:$0xf]
  %v761 = vld [vmem:[%s2 + $0x30] sm:$0xf]
  %v762 = vld [vmem:[%s2 + $0x34] sm:$0xf]
  %v763 = vld [vmem:[%s2 + $0x38] sm:$0xf]
  %v764 = vld [vmem:[%s2 + $0x3c] sm:$0xf]
  %v765 = vld [vmem:[%s2 + $0x40] sm:$0xf]
  %v766 = vld [vmem:[%s2 + $0x44] sm:$0xf]
  %v767 = vld [vmem:[%s2 + $0x48] sm:$0xf]
  %v768 = vld [vmem:[%s2 + $0x4c] sm:$0xf]
  %v769 = vld [vmem:[%s2 + $0x50] sm:$0xf]
  %v770 = vld [vmem:[%s2 + $0x54] sm:$0xf]
  %v771 = vld [vmem:[%s2 + $0x58] sm:$0xf]
  %v772 = vld [vmem:[%s2 + $0x5c] sm:$0xf]
  %v773 = vld [vmem:[%s2 + $0x60] sm:$0xf]
  %v774 = vld [vmem:[%s2 + $0x64] sm:$0xf]
  %v775 = vld [vmem:[%s2 + $0x68] sm:$0xf]
  %v776 = vld [vmem:[%s2 + $0x6c] sm:$0xf]
  %v777 = vld [vmem:[%s2 + $0x70] sm:$0xf]
  %v778 = vld [vmem:[%s2 + $0x74] sm:$0xf]
  %v779 = vld [vmem:[%s2 + $0x78] sm:$0xf]
  %v780 = vld [vmem:[%s2 + $0x7c] sm:$0xf]
  %v781 = vld [vmem:[%s2 + $0x80] sm:$0xf]
  %v782 = vld [vmem:[%s2 + $0x84] sm:$0xf]
  %v783 = vld [vmem:[%s2 + $0x88] sm:$0xf]
  %v784 = vld [vmem:[%s2 + $0x8c] sm:$0xf]
  %v785 = vld [vmem:[%s2 + $0x90] sm:$0xf]
  %v786 = vld [vmem:[%s2 + $0x94] sm:$0xf]
  %v787 = vld [vmem:[%s2 + $0x98] sm:$0xf]
  %v788 = vld [vmem:[%s2 + $0x9c] sm:$0xf]
  %v789 = vld [vmem:[%s2 + $0xa0] sm:$0xf]
  %v790 = vld [vmem:[%s2 + $0xa4] sm:$0xf]
  %v791 = vld [vmem:[%s2 + $0xa8] sm:$0xf]
  %v792 = vld [vmem:[%s2 + $0xac] sm:$0xf]
  %v793 = vld [vmem:[%s2 + $0xb0] sm:$0xf]
  %v794 = vld [vmem:[%s2 + $0xb4] sm:$0xf]
  %v795 = vld [vmem:[%s2 + $0xb8] sm:$0xf]
  %v796 = vld [vmem:[%s2 + $0xbc] sm:$0xf]
  %v797 = vld [vmem:[%s2 + $0xc0] sm:$0xf]
  %v798 = vld [vmem:[%s2 + $0xc4] sm:$0xf]
  %v799 = vld [vmem:[%s2 + $0xc8] sm:$0xf]
  %v800 = vld [vmem:[%s2 + $0xcc] sm:$0xf]
  %v801 = vld [vmem:[%s2 + $0xd0] sm:$0xf]
  %v802 = vld [vmem:[%s2 + $0xd4] sm:$0xf]
  %v803 = vld [vmem:[%s2 + $0xd8] sm:$0xf]
  %v804 = vld [vmem:[%s2 + $0xdc] sm:$0xf]
  %v805 = vld [vmem:[%s2 + $0xe0] sm:$0xf]
  %v806 = vld [vmem:[%s2 + $0xe4] sm:$0xf]
  %v807 = vld [vmem:[%s2 + $0xe8] sm:$0xf]
  %v808 = vld [vmem:[%s2 + $0xec] sm:$0xf]
  %v809 = vld [vmem:[%s2 + $0xf0] sm:$0xf]
  %v810 = vld [vmem:[%s2 + $0xf4] sm:$0xf]
  %v811 = vld [vmem:[%s2 + $0xf8] sm:$0xf]
  %v812 = vld [vmem:[%s2 + $0xfc] sm:$0xf]
  %v813 = vld [vmem:[%s2 + $0x100] sm:$0xf]
  %v814 = vld [vmem:[%s2 + $0x104] sm:$0xf]
  %v815 = vld [vmem:[%s2 + $0x108] sm:$0xf]
  %v816 = vld [vmem:[%s2 + $0x10c] sm:$0xf]
  %v817 = vld [vmem:[%s2 + $0x110] sm:$0xf]
  %v818 = vld [vmem:[%s2 + $0x114] sm:$0xf]
  %v819 = vld [vmem:[%s2 + $0x118] sm:$0xf]
  %v820 = vld [vmem:[%s2 + $0x11c] sm:$0xf]
  %v821 = vld [vmem:[%s2 + $0x120] sm:$0xf]
  %v822 = vunpack.c.l.bf16 %v749
  %v823 = vunpack.c.l.bf16 %v750
  %v824 = vunpack.c.l.bf16 %v751
  %v825 = vunpack.c.l.bf16 %v752
  %v826 = vunpack.c.l.bf16 %v753
  %v827 = vunpack.c.l.bf16 %v754
  %v828 = vunpack.c.l.bf16 %v755
  %v829 = vunpack.c.l.bf16 %v756
  %v830 = vunpack.c.l.bf16 %v757
  %v831 = vunpack.c.l.bf16 %v758
  %v832 = vunpack.c.l.bf16 %v759
  %v833 = vunpack.c.l.bf16 %v760
  %v834 = vunpack.c.l.bf16 %v761
  %v835 = vunpack.c.l.bf16 %v762
  %v836 = vunpack.c.l.bf16 %v763
  %v837 = vunpack.c.l.bf16 %v764
  %v838 = vunpack.c.l.bf16 %v765
  %v839 = vunpack.c.l.bf16 %v766
  %v840 = vunpack.c.l.bf16 %v767
  %v841 = vunpack.c.l.bf16 %v768
  %v842 = vunpack.c.l.bf16 %v769
  %v843 = vunpack.c.l.bf16 %v770
  %v844 = vunpack.c.l.bf16 %v771
  %v845 = vunpack.c.l.bf16 %v772
  %v846 = vunpack.c.l.bf16 %v773
  %v847 = vunpack.c.l.bf16 %v774
  %v848 = vunpack.c.l.bf16 %v775
  %v849 = vunpack.c.l.bf16 %v776
  %v850 = vunpack.c.l.bf16 %v777
  %v851 = vunpack.c.l.bf16 %v778
  %v852 = vunpack.c.l.bf16 %v779
  %v853 = vunpack.c.l.bf16 %v780
  %v854 = vunpack.c.l.bf16 %v781
  %v855 = vunpack.c.l.bf16 %v782
  %v856 = vunpack.c.l.bf16 %v783
  %v857 = vunpack.c.l.bf16 %v784
  %v858 = vunpack.c.l.bf16 %v785
  %v859 = vunpack.c.l.bf16 %v786
  %v860 = vunpack.c.l.bf16 %v787
  %v861 = vunpack.c.l.bf16 %v788
  %v862 = vunpack.c.l.bf16 %v789
  %v863 = vunpack.c.l.bf16 %v790
  %v864 = vunpack.c.l.bf16 %v791
  %v865 = vunpack.c.l.bf16 %v792
  %v866 = vunpack.c.l.bf16 %v793
  %v867 = vunpack.c.l.bf16 %v794
  %v868 = vunpack.c.l.bf16 %v795
  %v869 = vunpack.c.l.bf16 %v796
  %v870 = vunpack.c.l.bf16 %v797
  %v871 = vunpack.c.l.bf16 %v798
  %v872 = vunpack.c.l.bf16 %v799
  %v873 = vunpack.c.l.bf16 %v800
  %v874 = vunpack.c.l.bf16 %v801
  %v875 = vunpack.c.l.bf16 %v802
  %v876 = vunpack.c.l.bf16 %v803
  %v877 = vunpack.c.l.bf16 %v804
  %v878 = vunpack.c.l.bf16 %v805
  %v879 = vunpack.c.l.bf16 %v806
  %v880 = vunpack.c.l.bf16 %v807
  %v881 = vunpack.c.l.bf16 %v808
  %v882 = vunpack.c.l.bf16 %v809
  %v883 = vunpack.c.l.bf16 %v810
  %v884 = vunpack.c.l.bf16 %v811
  %v885 = vunpack.c.l.bf16 %v812
  %v886 = vunpack.c.l.bf16 %v813
  %v887 = vunpack.c.l.bf16 %v814
  %v888 = vunpack.c.l.bf16 %v815
  %v889 = vunpack.c.l.bf16 %v816
  %v890 = vunpack.c.l.bf16 %v817
  %v891 = vunpack.c.l.bf16 %v818
  %v892 = vunpack.c.l.bf16 %v819
  %v893 = vunpack.c.l.bf16 %v820
  %v894 = vunpack.c.l.bf16 %v821
  %v895 = vmul.f32 %v456, %v822
  %v896 = vmul.f32 %v459, %v823
  %v897 = vmul.f32 %v464, %v824
  %v898 = vmul.f32 %v467, %v825
  %v899 = vmul.f32 %v472, %v826
  %v900 = vmul.f32 %v475, %v827
  %v901 = vmul.f32 %v480, %v828
  %v902 = vmul.f32 %v483, %v829
  %v903 = vmul.f32 %v488, %v830
  %v904 = vmul.f32 %v491, %v831
  %v905 = vmul.f32 %v496, %v832
  %v906 = vmul.f32 %v499, %v833
  %v907 = vmul.f32 %v504, %v834
  %v908 = vmul.f32 %v507, %v835
  %v909 = vmul.f32 %v512, %v836
  %v910 = vmul.f32 %v515, %v837
  %v911 = vmul.f32 %v520, %v838
  %v912 = vmul.f32 %v523, %v839
  %v913 = vmul.f32 %v528, %v840
  %v914 = vmul.f32 %v531, %v841
  %v915 = vmul.f32 %v536, %v842
  %v916 = vmul.f32 %v539, %v843
  %v917 = vmul.f32 %v544, %v844
  %v918 = vmul.f32 %v547, %v845
  %v919 = vmul.f32 %v552, %v846
  %v920 = vmul.f32 %v555, %v847
  %v921 = vmul.f32 %v560, %v848
  %v922 = vmul.f32 %v563, %v849
  %v923 = vmul.f32 %v568, %v850
  %v924 = vmul.f32 %v571, %v851
  %v925 = vmul.f32 %v576, %v852
  %v926 = vmul.f32 %v579, %v853
  %v927 = vmul.f32 %v584, %v854
  %v928 = vmul.f32 %v587, %v855
  %v929 = vmul.f32 %v592, %v856
  %v930 = vmul.f32 %v595, %v857
  %v931 = vmul.f32 %v600, %v858
  %v932 = vmul.f32 %v603, %v859
  %v933 = vmul.f32 %v608, %v860
  %v934 = vmul.f32 %v611, %v861
  %v935 = vmul.f32 %v616, %v862
  %v936 = vmul.f32 %v619, %v863
  %v937 = vmul.f32 %v624, %v864
  %v938 = vmul.f32 %v627, %v865
  %v939 = vmul.f32 %v632, %v866
  %v940 = vmul.f32 %v635, %v867
  %v941 = vmul.f32 %v640, %v868
  %v942 = vmul.f32 %v643, %v869
  %v943 = vmul.f32 %v648, %v870
  %v944 = vmul.f32 %v651, %v871
  %v945 = vmul.f32 %v656, %v872
  %v946 = vmul.f32 %v659, %v873
  %v947 = vmul.f32 %v664, %v874
  %v948 = vmul.f32 %v667, %v875
  %v949 = vmul.f32 %v672, %v876
  %v950 = vmul.f32 %v675, %v877
  %v951 = vmul.f32 %v680, %v878
  %v952 = vmul.f32 %v683, %v879
  %v953 = vmul.f32 %v688, %v880
  %v954 = vmul.f32 %v691, %v881
  %v955 = vmul.f32 %v696, %v882
  %v956 = vmul.f32 %v699, %v883
  %v957 = vmul.f32 %v704, %v884
  %v958 = vmul.f32 %v707, %v885
  %v959 = vmul.f32 %v712, %v886
  %v960 = vmul.f32 %v715, %v887
  %v961 = vmul.f32 %v720, %v888
  %v962 = vmul.f32 %v723, %v889
  %v963 = vmul.f32 %v728, %v890
  %v964 = vmul.f32 %v731, %v891
  %v965 = vmul.f32 %v736, %v892
  %v966 = vmul.f32 %v739, %v893
  %v967 = vmul.f32 %v744, %v894
  %v968 = vadd.f32 %v895, %v896
  %v969 = vadd.f32 %v968, %v897
  %v970 = vadd.f32 %v969, %v898
  %v971 = vadd.f32 %v970, %v899
  %v972 = vadd.f32 %v971, %v900
  %v973 = vadd.f32 %v972, %v901
  %v974 = vadd.f32 %v973, %v902
  %v975 = vadd.f32 %v974, %v903
  %v976 = vadd.f32 %v975, %v904
  %v977 = vadd.f32 %v976, %v905
  %v978 = vadd.f32 %v977, %v906
  %v979 = vadd.f32 %v978, %v907
  %v980 = vadd.f32 %v979, %v908
  %v981 = vadd.f32 %v980, %v909
  %v982 = vadd.f32 %v981, %v910
  %v983 = vadd.f32 %v982, %v911
  %v984 = vadd.f32 %v983, %v912
  %v985 = vadd.f32 %v984, %v913
  %v986 = vadd.f32 %v985, %v914
  %v987 = vadd.f32 %v986, %v915
  %v988 = vadd.f32 %v987, %v916
  %v989 = vadd.f32 %v988, %v917
  %v990 = vadd.f32 %v989, %v918
  %v991 = vadd.f32 %v990, %v919
  %v992 = vadd.f32 %v991, %v920
  %v993 = vadd.f32 %v992, %v921
  %v994 = vadd.f32 %v993, %v922
  %v995 = vadd.f32 %v994, %v923
  %v996 = vadd.f32 %v995, %v924
  %v997 = vadd.f32 %v996, %v925
  %v998 = vadd.f32 %v997, %v926
  %v999 = vadd.f32 %v998, %v927
  %v1000 = vadd.f32 %v999, %v928
  %v1001 = vadd.f32 %v1000, %v929
  %v1002 = vadd.f32 %v1001, %v930
  %v1003 = vadd.f32 %v1002, %v931
  %v1004 = vadd.f32 %v1003, %v932
  %v1005 = vadd.f32 %v1004, %v933
  %v1006 = vadd.f32 %v1005, %v934
  %v1007 = vadd.f32 %v1006, %v935
  %v1008 = vadd.f32 %v1007, %v936
  %v1009 = vadd.f32 %v1008, %v937
  %v1010 = vadd.f32 %v1009, %v938
  %v1011 = vadd.f32 %v1010, %v939
  %v1012 = vadd.f32 %v1011, %v940
  %v1013 = vadd.f32 %v1012, %v941
  %v1014 = vadd.f32 %v1013, %v942
  %v1015 = vadd.f32 %v1014, %v943
  %v1016 = vadd.f32 %v1015, %v944
  %v1017 = vadd.f32 %v1016, %v945
  %v1018 = vadd.f32 %v1017, %v946
  %v1019 = vadd.f32 %v1018, %v947
  %v1020 = vadd.f32 %v1019, %v948
  %v1021 = vadd.f32 %v1020, %v949
  %v1022 = vadd.f32 %v1021, %v950
  %v1023 = vadd.f32 %v1022, %v951
  %v1024 = vadd.f32 %v1023, %v952
  %v1025 = vadd.f32 %v1024, %v953
  %v1026 = vadd.f32 %v1025, %v954
  %v1027 = vadd.f32 %v1026, %v955
  %v1028 = vadd.f32 %v1027, %v956
  %v1029 = vadd.f32 %v1028, %v957
  %v1030 = vadd.f32 %v1029, %v958
  %v1031 = vadd.f32 %v1030, %v959
  %v1032 = vadd.f32 %v1031, %v960
  %v1033 = vadd.f32 %v1032, %v961
  %v1034 = vadd.f32 %v1033, %v962
  %v1035 = vadd.f32 %v1034, %v963
  %v1036 = vadd.f32 %v1035, %v964
  %v1037 = vadd.f32 %v1036, %v965
  %v1038 = vadd.f32 %v1037, %v966
  %v1039 = vadd.f32 %v1038, %v967
  %v1040 = vrot.slane %v1039, 4
  %v1041 = vadd.f32 %v1039, %v1040
  %v1042 = vrot.slane %v1041, 2
  %v1043 = vadd.f32 %v1041, %v1042
  %v1044 = vrot.slane %v1043, 1
  %v1045 = vadd.f32 %v1043, %v1044
  %v1046 = vmul.f32 %v895, %v456
  %v1047 = vmul.f32 %v896, %v459
  %v1048 = vmul.f32 %v897, %v464
  %v1049 = vmul.f32 %v898, %v467
  %v1050 = vmul.f32 %v899, %v472
  %v1051 = vmul.f32 %v900, %v475
  %v1052 = vmul.f32 %v901, %v480
  %v1053 = vmul.f32 %v902, %v483
  %v1054 = vmul.f32 %v903, %v488
  %v1055 = vmul.f32 %v904, %v491
  %v1056 = vmul.f32 %v905, %v496
  %v1057 = vmul.f32 %v906, %v499
  %v1058 = vmul.f32 %v907, %v504
  %v1059 = vmul.f32 %v908, %v507
  %v1060 = vmul.f32 %v909, %v512
  %v1061 = vmul.f32 %v910, %v515
  %v1062 = vmul.f32 %v911, %v520
  %v1063 = vmul.f32 %v912, %v523
  %v1064 = vmul.f32 %v913, %v528
  %v1065 = vmul.f32 %v914, %v531
  %v1066 = vmul.f32 %v915, %v536
  %v1067 = vmul.f32 %v916, %v539
  %v1068 = vmul.f32 %v917, %v544
  %v1069 = vmul.f32 %v918, %v547
  %v1070 = vmul.f32 %v919, %v552
  %v1071 = vmul.f32 %v920, %v555
  %v1072 = vmul.f32 %v921, %v560
  %v1073 = vmul.f32 %v922, %v563
  %v1074 = vmul.f32 %v923, %v568
  %v1075 = vmul.f32 %v924, %v571
  %v1076 = vmul.f32 %v925, %v576
  %v1077 = vmul.f32 %v926, %v579
  %v1078 = vmul.f32 %v927, %v584
  %v1079 = vmul.f32 %v928, %v587
  %v1080 = vmul.f32 %v929, %v592
  %v1081 = vmul.f32 %v930, %v595
  %v1082 = vmul.f32 %v931, %v600
  %v1083 = vmul.f32 %v932, %v603
  %v1084 = vmul.f32 %v933, %v608
  %v1085 = vmul.f32 %v934, %v611
  %v1086 = vmul.f32 %v935, %v616
  %v1087 = vmul.f32 %v936, %v619
  %v1088 = vmul.f32 %v937, %v624
  %v1089 = vmul.f32 %v938, %v627
  %v1090 = vmul.f32 %v939, %v632
  %v1091 = vmul.f32 %v940, %v635
  %v1092 = vmul.f32 %v941, %v640
  %v1093 = vmul.f32 %v942, %v643
  %v1094 = vmul.f32 %v943, %v648
  %v1095 = vmul.f32 %v944, %v651
  %v1096 = vmul.f32 %v945, %v656
  %v1097 = vmul.f32 %v946, %v659
  %v1098 = vmul.f32 %v947, %v664
  %v1099 = vmul.f32 %v948, %v667
  %v1100 = vmul.f32 %v949, %v672
  %v1101 = vmul.f32 %v950, %v675
  %v1102 = vmul.f32 %v951, %v680
  %v1103 = vmul.f32 %v952, %v683
  %v1104 = vmul.f32 %v953, %v688
  %v1105 = vmul.f32 %v954, %v691
  %v1106 = vmul.f32 %v955, %v696
  %v1107 = vmul.f32 %v956, %v699
  %v1108 = vmul.f32 %v957, %v704
  %v1109 = vmul.f32 %v958, %v707
  %v1110 = vmul.f32 %v959, %v712
  %v1111 = vmul.f32 %v960, %v715
  %v1112 = vmul.f32 %v961, %v720
  %v1113 = vmul.f32 %v962, %v723
  %v1114 = vmul.f32 %v963, %v728
  %v1115 = vmul.f32 %v964, %v731
  %v1116 = vmul.f32 %v965, %v736
  %v1117 = vmul.f32 %v966, %v739
  %v1118 = vmul.f32 %v967, %v744
  %v1119 = vadd.f32 %v1046, %v1047
  %v1120 = vadd.f32 %v1119, %v1048
  %v1121 = vadd.f32 %v1120, %v1049
  %v1122 = vadd.f32 %v1121, %v1050
  %v1123 = vadd.f32 %v1122, %v1051
  %v1124 = vadd.f32 %v1123, %v1052
  %v1125 = vadd.f32 %v1124, %v1053
  %v1126 = vadd.f32 %v1125, %v1054
  %v1127 = vadd.f32 %v1126, %v1055
  %v1128 = vadd.f32 %v1127, %v1056
  %v1129 = vadd.f32 %v1128, %v1057
  %v1130 = vadd.f32 %v1129, %v1058
  %v1131 = vadd.f32 %v1130, %v1059
  %v1132 = vadd.f32 %v1131, %v1060
  %v1133 = vadd.f32 %v1132, %v1061
  %v1134 = vadd.f32 %v1133, %v1062
  %v1135 = vadd.f32 %v1134, %v1063
  %v1136 = vadd.f32 %v1135, %v1064
  %v1137 = vadd.f32 %v1136, %v1065
  %v1138 = vadd.f32 %v1137, %v1066
  %v1139 = vadd.f32 %v1138, %v1067
  %v1140 = vadd.f32 %v1139, %v1068
  %v1141 = vadd.f32 %v1140, %v1069
  %v1142 = vadd.f32 %v1141, %v1070
  %v1143 = vadd.f32 %v1142, %v1071
  %v1144 = vadd.f32 %v1143, %v1072
  %v1145 = vadd.f32 %v1144, %v1073
  %v1146 = vadd.f32 %v1145, %v1074
  %v1147 = vadd.f32 %v1146, %v1075
  %v1148 = vadd.f32 %v1147, %v1076
  %v1149 = vadd.f32 %v1148, %v1077
  %v1150 = vadd.f32 %v1149, %v1078
  %v1151 = vadd.f32 %v1150, %v1079
  %v1152 = vadd.f32 %v1151, %v1080
  %v1153 = vadd.f32 %v1152, %v1081
  %v1154 = vadd.f32 %v1153, %v1082
  %v1155 = vadd.f32 %v1154, %v1083
  %v1156 = vadd.f32 %v1155, %v1084
  %v1157 = vadd.f32 %v1156, %v1085
  %v1158 = vadd.f32 %v1157, %v1086
  %v1159 = vadd.f32 %v1158, %v1087
  %v1160 = vadd.f32 %v1159, %v1088
  %v1161 = vadd.f32 %v1160, %v1089
  %v1162 = vadd.f32 %v1161, %v1090
  %v1163 = vadd.f32 %v1162, %v1091
  %v1164 = vadd.f32 %v1163, %v1092
  %v1165 = vadd.f32 %v1164, %v1093
  %v1166 = vadd.f32 %v1165, %v1094
  %v1167 = vadd.f32 %v1166, %v1095
  %v1168 = vadd.f32 %v1167, %v1096
  %v1169 = vadd.f32 %v1168, %v1097
  %v1170 = vadd.f32 %v1169, %v1098
  %v1171 = vadd.f32 %v1170, %v1099
  %v1172 = vadd.f32 %v1171, %v1100
  %v1173 = vadd.f32 %v1172, %v1101
  %v1174 = vadd.f32 %v1173, %v1102
  %v1175 = vadd.f32 %v1174, %v1103
  %v1176 = vadd.f32 %v1175, %v1104
  %v1177 = vadd.f32 %v1176, %v1105
  %v1178 = vadd.f32 %v1177, %v1106
  %v1179 = vadd.f32 %v1178, %v1107
  %v1180 = vadd.f32 %v1179, %v1108
  %v1181 = vadd.f32 %v1180, %v1109
  %v1182 = vadd.f32 %v1181, %v1110
  %v1183 = vadd.f32 %v1182, %v1111
  %v1184 = vadd.f32 %v1183, %v1112
  %v1185 = vadd.f32 %v1184, %v1113
  %v1186 = vadd.f32 %v1185, %v1114
  %v1187 = vadd.f32 %v1186, %v1115
  %v1188 = vadd.f32 %v1187, %v1116
  %v1189 = vadd.f32 %v1188, %v1117
  %v1190 = vadd.f32 %v1189, %v1118
  %v1191 = vrot.slane %v1190, 4
  %v1192 = vadd.f32 %v1190, %v1191
  %v1193 = vrot.slane %v1192, 2
  %v1194 = vadd.f32 %v1192, %v1193
  %v1195 = vrot.slane %v1194, 1
  %v1196 = vadd.f32 %v1194, %v1195
  %1197 = vrot.lane.b32.xlu0 %v1045, 8
  %v1198 = vpop.permute.xlu0 %1197
  %v1199 = vadd.f32 %v1045, %v1198
  %1200 = vrot.lane.b32.xlu0 %v1196, 8
  %v1201 = vpop.permute.xlu0 %1200
  %v1202 = vadd.f32 %v1196, %v1201
  %1203 = vrot.lane.b32.xlu0 %v1045, 16
  %v1204 = vpop.permute.xlu0 %1203
  %v1205 = vadd.f32 %v1199, %v1204
  %1206 = vrot.lane.b32.xlu0 %v1196, 16
  %v1207 = vpop.permute.xlu0 %1206
  %v1208 = vadd.f32 %v1202, %v1207
  %1209 = vrot.lane.b32.xlu0 %v1045, 24
  %v1210 = vpop.permute.xlu0 %1209
  %v1211 = vadd.f32 %v1205, %v1210
  %1212 = vrot.lane.b32.xlu0 %v1196, 24
  %v1213 = vpop.permute.xlu0 %1212
  %v1214 = vadd.f32 %v1208, %v1213
  %1215 = vrot.lane.b32.xlu0 %v1045, 32
  %v1216 = vpop.permute.xlu0 %1215
  %v1217 = vadd.f32 %v1211, %v1216
  %1218 = vrot.lane.b32.xlu0 %v1196, 32
  %v1219 = vpop.permute.xlu0 %1218
  %v1220 = vadd.f32 %v1214, %v1219
  %1221 = vrot.lane.b32.xlu0 %v1045, 40
  %v1222 = vpop.permute.xlu0 %1221
  %v1223 = vadd.f32 %v1217, %v1222
  %1224 = vrot.lane.b32.xlu0 %v1196, 40
  %v1225 = vpop.permute.xlu0 %1224
  %v1226 = vadd.f32 %v1220, %v1225
  %1227 = vrot.lane.b32.xlu0 %v1045, 48
  %v1228 = vpop.permute.xlu0 %1227
  %v1229 = vadd.f32 %v1223, %v1228
  %1230 = vrot.lane.b32.xlu0 %v1196, 48
  %v1231 = vpop.permute.xlu0 %1230
  %v1232 = vadd.f32 %v1226, %v1231
  %1233 = vrot.lane.b32.xlu0 %v1045, 56
  %v1234 = vpop.permute.xlu0 %1233
  %v1235 = vadd.f32 %v1229, %v1234
  %1236 = vrot.lane.b32.xlu0 %v1196, 56
  %v1237 = vpop.permute.xlu0 %1236
  %v1238 = vadd.f32 %v1232, %v1237
  %1239 = vrot.lane.b32.xlu0 %v1045, 64
  %v1240 = vpop.permute.xlu0 %1239
  %v1241 = vadd.f32 %v1235, %v1240
  %1242 = vrot.lane.b32.xlu0 %v1196, 64
  %v1243 = vpop.permute.xlu0 %1242
  %v1244 = vadd.f32 %v1238, %v1243
  %1245 = vrot.lane.b32.xlu0 %v1045, 72
  %v1246 = vpop.permute.xlu0 %1245
  %v1247 = vadd.f32 %v1241, %v1246
  %1248 = vrot.lane.b32.xlu0 %v1196, 72
  %v1249 = vpop.permute.xlu0 %1248
  %v1250 = vadd.f32 %v1244, %v1249
  %1251 = vrot.lane.b32.xlu0 %v1045, 80
  %v1252 = vpop.permute.xlu0 %1251
  %v1253 = vadd.f32 %v1247, %v1252
  %1254 = vrot.lane.b32.xlu0 %v1196, 80
  %v1255 = vpop.permute.xlu0 %1254
  %v1256 = vadd.f32 %v1250, %v1255
  %1257 = vrot.lane.b32.xlu0 %v1045, 88
  %v1258 = vpop.permute.xlu0 %1257
  %v1259 = vadd.f32 %v1253, %v1258
  %1260 = vrot.lane.b32.xlu0 %v1196, 88
  %v1261 = vpop.permute.xlu0 %1260
  %v1262 = vadd.f32 %v1256, %v1261
  %1263 = vrot.lane.b32.xlu0 %v1045, 96
  %v1264 = vpop.permute.xlu0 %1263
  %v1265 = vadd.f32 %v1259, %v1264
  %1266 = vrot.lane.b32.xlu0 %v1196, 96
  %v1267 = vpop.permute.xlu0 %1266
  %v1268 = vadd.f32 %v1262, %v1267
  %1269 = vrot.lane.b32.xlu0 %v1045, 104
  %v1270 = vpop.permute.xlu0 %1269
  %v1271 = vadd.f32 %v1265, %v1270
  %1272 = vrot.lane.b32.xlu0 %v1196, 104
  %v1273 = vpop.permute.xlu0 %1272
  %v1274 = vadd.f32 %v1268, %v1273
  %1275 = vrot.lane.b32.xlu0 %v1045, 112
  %v1276 = vpop.permute.xlu0 %1275
  %v1277 = vadd.f32 %v1271, %v1276
  %1278 = vrot.lane.b32.xlu0 %v1196, 112
  %v1279 = vpop.permute.xlu0 %1278
  %v1280 = vadd.f32 %v1274, %v1279
  %1281 = vrot.lane.b32.xlu0 %v1045, 120
  %v1282 = vpop.permute.xlu0 %1281
  %v1283 = vadd.f32 %v1277, %v1282
  %1284 = vrot.lane.b32.xlu0 %v1196, 120
  %v1285 = vpop.permute.xlu0 %1284
  %v1286 = vadd.f32 %v1280, %v1285
  %v1287 = vmul.f32 %v1283, 0.00048828125
  %v1288 = vmul.f32 %v1286, 0.00048828125
  %v1289 = vmul.f32 %v1287, %v1287
  %v1290 = vsub.f32 %v1288, %v1289
  %v1291 = vmax.f32 %v1290, 0.0
  %v1292 = vld [vmem:[%s3] sm:$0x1]
  %v1293 = vadd.f32 %v1291, 1e-05
  %v1294 = vrsqrt.pop %v1293
  %v1295 = vmul.f32 %v1292, %v1294
  %v1296 = vld [vmem:[%s4] sm:$0x1]
  %v1297 = vmul.f32 %v1287, %v1295
  %v1298 = vsub.f32 %v1296, %v1297
  %v1300 = vlaneseq
  %v1301 = vshrl.u32 %v1300, 7
  %v1302 = vsub.s32 0, %v1301
  %v1303 = vrot.slane %v1295, %v1302
  %v1305 = vmul.f32 %v456, %v1303
  %v1306 = vmul.f32 %v459, %v1303
  %v1307 = vmul.f32 %v464, %v1303
  %v1308 = vmul.f32 %v467, %v1303
  %v1309 = vmul.f32 %v472, %v1303
  %v1310 = vmul.f32 %v475, %v1303
  %v1311 = vmul.f32 %v480, %v1303
  %v1312 = vmul.f32 %v483, %v1303
  %v1313 = vmul.f32 %v488, %v1303
  %v1314 = vmul.f32 %v491, %v1303
  %v1315 = vmul.f32 %v496, %v1303
  %v1316 = vmul.f32 %v499, %v1303
  %v1317 = vmul.f32 %v504, %v1303
  %v1318 = vmul.f32 %v507, %v1303
  %v1319 = vmul.f32 %v512, %v1303
  %v1320 = vmul.f32 %v515, %v1303
  %v1321 = vmul.f32 %v520, %v1303
  %v1322 = vmul.f32 %v523, %v1303
  %v1323 = vmul.f32 %v528, %v1303
  %v1324 = vmul.f32 %v531, %v1303
  %v1325 = vmul.f32 %v536, %v1303
  %v1326 = vmul.f32 %v539, %v1303
  %v1327 = vmul.f32 %v544, %v1303
  %v1328 = vmul.f32 %v547, %v1303
  %v1329 = vmul.f32 %v552, %v1303
  %v1330 = vmul.f32 %v555, %v1303
  %v1331 = vmul.f32 %v560, %v1303
  %v1332 = vmul.f32 %v563, %v1303
  %v1333 = vmul.f32 %v568, %v1303
  %v1334 = vmul.f32 %v571, %v1303
  %v1335 = vmul.f32 %v576, %v1303
  %v1336 = vmul.f32 %v579, %v1303
  %v1337 = vmul.f32 %v584, %v1303
  %v1338 = vmul.f32 %v587, %v1303
  %v1339 = vmul.f32 %v592, %v1303
  %v1340 = vmul.f32 %v595, %v1303
  %v1341 = vmul.f32 %v600, %v1303
  %v1342 = vmul.f32 %v603, %v1303
  %v1343 = vmul.f32 %v608, %v1303
  %v1344 = vmul.f32 %v611, %v1303
  %v1345 = vmul.f32 %v616, %v1303
  %v1346 = vmul.f32 %v619, %v1303
  %v1347 = vmul.f32 %v624, %v1303
  %v1348 = vmul.f32 %v627, %v1303
  %v1349 = vmul.f32 %v632, %v1303
  %v1350 = vmul.f32 %v635, %v1303
  %v1351 = vmul.f32 %v640, %v1303
  %v1352 = vmul.f32 %v643, %v1303
  %v1353 = vmul.f32 %v648, %v1303
  %v1354 = vmul.f32 %v651, %v1303
  %v1355 = vmul.f32 %v656, %v1303
  %v1356 = vmul.f32 %v659, %v1303
  %v1357 = vmul.f32 %v664, %v1303
  %v1358 = vmul.f32 %v667, %v1303
  %v1359 = vmul.f32 %v672, %v1303
  %v1360 = vmul.f32 %v675, %v1303
  %v1361 = vmul.f32 %v680, %v1303
  %v1362 = vmul.f32 %v683, %v1303
  %v1363 = vmul.f32 %v688, %v1303
  %v1364 = vmul.f32 %v691, %v1303
  %v1365 = vmul.f32 %v696, %v1303
  %v1366 = vmul.f32 %v699, %v1303
  %v1367 = vmul.f32 %v704, %v1303
  %v1368 = vmul.f32 %v707, %v1303
  %v1369 = vmul.f32 %v712, %v1303
  %v1370 = vmul.f32 %v715, %v1303
  %v1371 = vmul.f32 %v720, %v1303
  %v1372 = vmul.f32 %v723, %v1303
  %v1373 = vmul.f32 %v728, %v1303
  %v1374 = vmul.f32 %v731, %v1303
  %v1375 = vmul.f32 %v736, %v1303
  %v1376 = vmul.f32 %v739, %v1303
  %v1377 = vmul.f32 %v744, %v1303
  %v1379 = vlaneseq
  %v1380 = vshrl.u32 %v1379, 7
  %v1381 = vsub.s32 0, %v1380
  %v1382 = vrot.slane %v1298, %v1381
  %v1384 = vadd.f32 %v1305, %v1382
  %v1385 = vadd.f32 %v1306, %v1382
  %v1386 = vadd.f32 %v1307, %v1382
  %v1387 = vadd.f32 %v1308, %v1382
  %v1388 = vadd.f32 %v1309, %v1382
  %v1389 = vadd.f32 %v1310, %v1382
  %v1390 = vadd.f32 %v1311, %v1382
  %v1391 = vadd.f32 %v1312, %v1382
  %v1392 = vadd.f32 %v1313, %v1382
  %v1393 = vadd.f32 %v1314, %v1382
  %v1394 = vadd.f32 %v1315, %v1382
  %v1395 = vadd.f32 %v1316, %v1382
  %v1396 = vadd.f32 %v1317, %v1382
  %v1397 = vadd.f32 %v1318, %v1382
  %v1398 = vadd.f32 %v1319, %v1382
  %v1399 = vadd.f32 %v1320, %v1382
  %v1400 = vadd.f32 %v1321, %v1382
  %v1401 = vadd.f32 %v1322, %v1382
  %v1402 = vadd.f32 %v1323, %v1382
  %v1403 = vadd.f32 %v1324, %v1382
  %v1404 = vadd.f32 %v1325, %v1382
  %v1405 = vadd.f32 %v1326, %v1382
  %v1406 = vadd.f32 %v1327, %v1382
  %v1407 = vadd.f32 %v1328, %v1382
  %v1408 = vadd.f32 %v1329, %v1382
  %v1409 = vadd.f32 %v1330, %v1382
  %v1410 = vadd.f32 %v1331, %v1382
  %v1411 = vadd.f32 %v1332, %v1382
  %v1412 = vadd.f32 %v1333, %v1382
  %v1413 = vadd.f32 %v1334, %v1382
  %v1414 = vadd.f32 %v1335, %v1382
  %v1415 = vadd.f32 %v1336, %v1382
  %v1416 = vadd.f32 %v1337, %v1382
  %v1417 = vadd.f32 %v1338, %v1382
  %v1418 = vadd.f32 %v1339, %v1382
  %v1419 = vadd.f32 %v1340, %v1382
  %v1420 = vadd.f32 %v1341, %v1382
  %v1421 = vadd.f32 %v1342, %v1382
  %v1422 = vadd.f32 %v1343, %v1382
  %v1423 = vadd.f32 %v1344, %v1382
  %v1424 = vadd.f32 %v1345, %v1382
  %v1425 = vadd.f32 %v1346, %v1382
  %v1426 = vadd.f32 %v1347, %v1382
  %v1427 = vadd.f32 %v1348, %v1382
  %v1428 = vadd.f32 %v1349, %v1382
  %v1429 = vadd.f32 %v1350, %v1382
  %v1430 = vadd.f32 %v1351, %v1382
  %v1431 = vadd.f32 %v1352, %v1382
  %v1432 = vadd.f32 %v1353, %v1382
  %v1433 = vadd.f32 %v1354, %v1382
  %v1434 = vadd.f32 %v1355, %v1382
  %v1435 = vadd.f32 %v1356, %v1382
  %v1436 = vadd.f32 %v1357, %v1382
  %v1437 = vadd.f32 %v1358, %v1382
  %v1438 = vadd.f32 %v1359, %v1382
  %v1439 = vadd.f32 %v1360, %v1382
  %v1440 = vadd.f32 %v1361, %v1382
  %v1441 = vadd.f32 %v1362, %v1382
  %v1442 = vadd.f32 %v1363, %v1382
  %v1443 = vadd.f32 %v1364, %v1382
  %v1444 = vadd.f32 %v1365, %v1382
  %v1445 = vadd.f32 %v1366, %v1382
  %v1446 = vadd.f32 %v1367, %v1382
  %v1447 = vadd.f32 %v1368, %v1382
  %v1448 = vadd.f32 %v1369, %v1382
  %v1449 = vadd.f32 %v1370, %v1382
  %v1450 = vadd.f32 %v1371, %v1382
  %v1451 = vadd.f32 %v1372, %v1382
  %v1452 = vadd.f32 %v1373, %v1382
  %v1453 = vadd.f32 %v1374, %v1382
  %v1454 = vadd.f32 %v1375, %v1382
  %v1455 = vadd.f32 %v1376, %v1382
  %v1456 = vadd.f32 %v1377, %v1382
  %v1457 = vmax.f32 %v1384, 0.0
  %v1458 = vmax.f32 %v1385, 0.0
  %v1459 = vmax.f32 %v1386, 0.0
  %v1460 = vmax.f32 %v1387, 0.0
  %v1461 = vmax.f32 %v1388, 0.0
  %v1462 = vmax.f32 %v1389, 0.0
  %v1463 = vmax.f32 %v1390, 0.0
  %v1464 = vmax.f32 %v1391, 0.0
  %v1465 = vmax.f32 %v1392, 0.0
  %v1466 = vmax.f32 %v1393, 0.0
  %v1467 = vmax.f32 %v1394, 0.0
  %v1468 = vmax.f32 %v1395, 0.0
  %v1469 = vmax.f32 %v1396, 0.0
  %v1470 = vmax.f32 %v1397, 0.0
  %v1471 = vmax.f32 %v1398, 0.0
  %v1472 = vmax.f32 %v1399, 0.0
  %v1473 = vmax.f32 %v1400, 0.0
  %v1474 = vmax.f32 %v1401, 0.0
  %v1475 = vmax.f32 %v1402, 0.0
  %v1476 = vmax.f32 %v1403, 0.0
  %v1477 = vmax.f32 %v1404, 0.0
  %v1478 = vmax.f32 %v1405, 0.0
  %v1479 = vmax.f32 %v1406, 0.0
  %v1480 = vmax.f32 %v1407, 0.0
  %v1481 = vmax.f32 %v1408, 0.0
  %v1482 = vmax.f32 %v1409, 0.0
  %v1483 = vmax.f32 %v1410, 0.0
  %v1484 = vmax.f32 %v1411, 0.0
  %v1485 = vmax.f32 %v1412, 0.0
  %v1486 = vmax.f32 %v1413, 0.0
  %v1487 = vmax.f32 %v1414, 0.0
  %v1488 = vmax.f32 %v1415, 0.0
  %v1489 = vmax.f32 %v1416, 0.0
  %v1490 = vmax.f32 %v1417, 0.0
  %v1491 = vmax.f32 %v1418, 0.0
  %v1492 = vmax.f32 %v1419, 0.0
  %v1493 = vmax.f32 %v1420, 0.0
  %v1494 = vmax.f32 %v1421, 0.0
  %v1495 = vmax.f32 %v1422, 0.0
  %v1496 = vmax.f32 %v1423, 0.0
  %v1497 = vmax.f32 %v1424, 0.0
  %v1498 = vmax.f32 %v1425, 0.0
  %v1499 = vmax.f32 %v1426, 0.0
  %v1500 = vmax.f32 %v1427, 0.0
  %v1501 = vmax.f32 %v1428, 0.0
  %v1502 = vmax.f32 %v1429, 0.0
  %v1503 = vmax.f32 %v1430, 0.0
  %v1504 = vmax.f32 %v1431, 0.0
  %v1505 = vmax.f32 %v1432, 0.0
  %v1506 = vmax.f32 %v1433, 0.0
  %v1507 = vmax.f32 %v1434, 0.0
  %v1508 = vmax.f32 %v1435, 0.0
  %v1509 = vmax.f32 %v1436, 0.0
  %v1510 = vmax.f32 %v1437, 0.0
  %v1511 = vmax.f32 %v1438, 0.0
  %v1512 = vmax.f32 %v1439, 0.0
  %v1513 = vmax.f32 %v1440, 0.0
  %v1514 = vmax.f32 %v1441, 0.0
  %v1515 = vmax.f32 %v1442, 0.0
  %v1516 = vmax.f32 %v1443, 0.0
  %v1517 = vmax.f32 %v1444, 0.0
  %v1518 = vmax.f32 %v1445, 0.0
  %v1519 = vmax.f32 %v1446, 0.0
  %v1520 = vmax.f32 %v1447, 0.0
  %v1521 = vmax.f32 %v1448, 0.0
  %v1522 = vmax.f32 %v1449, 0.0
  %v1523 = vmax.f32 %v1450, 0.0
  %v1524 = vmax.f32 %v1451, 0.0
  %v1525 = vmax.f32 %v1452, 0.0
  %v1526 = vmax.f32 %v1453, 0.0
  %v1527 = vmax.f32 %v1454, 0.0
  %v1528 = vmax.f32 %v1455, 0.0
  %v1529 = vmax.f32 %v1456, 0.0
  %v1530 = vpack.c.bf16 %v1458, %v1457
  %v1531 = vpack.c.bf16 %v1460, %v1459
  %v1532 = vpack.c.bf16 %v1462, %v1461
  %v1533 = vpack.c.bf16 %v1464, %v1463
  %v1534 = vpack.c.bf16 %v1466, %v1465
  %v1535 = vpack.c.bf16 %v1468, %v1467
  %v1536 = vpack.c.bf16 %v1470, %v1469
  %v1537 = vpack.c.bf16 %v1472, %v1471
  %v1538 = vpack.c.bf16 %v1474, %v1473
  %v1539 = vpack.c.bf16 %v1476, %v1475
  %v1540 = vpack.c.bf16 %v1478, %v1477
  %v1541 = vpack.c.bf16 %v1480, %v1479
  %v1542 = vpack.c.bf16 %v1482, %v1481
  %v1543 = vpack.c.bf16 %v1484, %v1483
  %v1544 = vpack.c.bf16 %v1486, %v1485
  %v1545 = vpack.c.bf16 %v1488, %v1487
  %v1546 = vpack.c.bf16 %v1490, %v1489
  %v1547 = vpack.c.bf16 %v1492, %v1491
  %v1548 = vpack.c.bf16 %v1494, %v1493
  %v1549 = vpack.c.bf16 %v1496, %v1495
  %v1550 = vpack.c.bf16 %v1498, %v1497
  %v1551 = vpack.c.bf16 %v1500, %v1499
  %v1552 = vpack.c.bf16 %v1502, %v1501
  %v1553 = vpack.c.bf16 %v1504, %v1503
  %v1554 = vpack.c.bf16 %v1506, %v1505
  %v1555 = vpack.c.bf16 %v1508, %v1507
  %v1556 = vpack.c.bf16 %v1510, %v1509
  %v1557 = vpack.c.bf16 %v1512, %v1511
  %v1558 = vpack.c.bf16 %v1514, %v1513
  %v1559 = vpack.c.bf16 %v1516, %v1515
  %v1560 = vpack.c.bf16 %v1518, %v1517
  %v1561 = vpack.c.bf16 %v1520, %v1519
  %v1562 = vpack.c.bf16 %v1522, %v1521
  %v1563 = vpack.c.bf16 %v1524, %v1523
  %v1564 = vpack.c.bf16 %v1526, %v1525
  %v1565 = vpack.c.bf16 %v1528, %v1527
  %v1566 = vpack.c.bf16 %v1529, %v1529
  %v1604 = vunpack.c.l.b16 %v1530
  %v1605 = vunpack.c.h.b16 %v1530
  %v1606 = vunpack.c.l.b16 %v1531
  %v1607 = vunpack.c.h.b16 %v1531
  %v1608 = vunpack.c.l.b16 %v1532
  %v1609 = vunpack.c.h.b16 %v1532
  %v1610 = vunpack.c.l.b16 %v1533
  %v1611 = vunpack.c.h.b16 %v1533
  %v1612 = vunpack.c.l.b16 %v1534
  %v1613 = vunpack.c.h.b16 %v1534
  %v1614 = vunpack.c.l.b16 %v1535
  %v1615 = vunpack.c.h.b16 %v1535
  %v1616 = vunpack.c.l.b16 %v1536
  %v1617 = vunpack.c.h.b16 %v1536
  %v1618 = vunpack.c.l.b16 %v1537
  %v1619 = vunpack.c.h.b16 %v1537
  %v1620 = vunpack.c.l.b16 %v1538
  %v1621 = vunpack.c.h.b16 %v1538
  %v1622 = vunpack.c.l.b16 %v1539
  %v1623 = vunpack.c.h.b16 %v1539
  %v1624 = vunpack.c.l.b16 %v1540
  %v1625 = vunpack.c.h.b16 %v1540
  %v1626 = vunpack.c.l.b16 %v1541
  %v1627 = vunpack.c.h.b16 %v1541
  %v1628 = vunpack.c.l.b16 %v1542
  %v1629 = vunpack.c.h.b16 %v1542
  %v1630 = vunpack.c.l.b16 %v1543
  %v1631 = vunpack.c.h.b16 %v1543
  %v1632 = vunpack.c.l.b16 %v1544
  %v1633 = vunpack.c.h.b16 %v1544
  %v1634 = vunpack.c.l.b16 %v1545
  %v1635 = vunpack.c.h.b16 %v1545
  %v1636 = vunpack.c.l.b16 %v1546
  %v1637 = vunpack.c.h.b16 %v1546
  %v1638 = vunpack.c.l.b16 %v1547
  %v1639 = vunpack.c.h.b16 %v1547
  %v1640 = vunpack.c.l.b16 %v1548
  %v1641 = vunpack.c.h.b16 %v1548
  %v1642 = vunpack.c.l.b16 %v1549
  %v1643 = vunpack.c.h.b16 %v1549
  %v1644 = vunpack.c.l.b16 %v1550
  %v1645 = vunpack.c.h.b16 %v1550
  %v1646 = vunpack.c.l.b16 %v1551
  %v1647 = vunpack.c.h.b16 %v1551
  %v1648 = vunpack.c.l.b16 %v1552
  %v1649 = vunpack.c.h.b16 %v1552
  %v1650 = vunpack.c.l.b16 %v1553
  %v1651 = vunpack.c.h.b16 %v1553
  %v1652 = vunpack.c.l.b16 %v1554
  %v1653 = vunpack.c.h.b16 %v1554
  %v1654 = vunpack.c.l.b16 %v1555
  %v1655 = vunpack.c.h.b16 %v1555
  %v1656 = vunpack.c.l.b16 %v1556
  %v1657 = vunpack.c.h.b16 %v1556
  %v1658 = vunpack.c.l.b16 %v1557
  %v1659 = vunpack.c.h.b16 %v1557
  %v1660 = vunpack.c.l.b16 %v1558
  %v1661 = vunpack.c.h.b16 %v1558
  %v1662 = vunpack.c.l.b16 %v1559
  %v1663 = vunpack.c.h.b16 %v1559
  %v1664 = vunpack.c.l.b16 %v1560
  %v1665 = vunpack.c.h.b16 %v1560
  %v1666 = vunpack.c.l.b16 %v1561
  %v1667 = vunpack.c.h.b16 %v1561
  %v1668 = vunpack.c.l.b16 %v1562
  %v1669 = vunpack.c.h.b16 %v1562
  %v1670 = vunpack.c.l.b16 %v1563
  %v1671 = vunpack.c.h.b16 %v1563
  %v1672 = vunpack.c.l.b16 %v1564
  %v1673 = vunpack.c.h.b16 %v1564
  %v1674 = vunpack.c.l.b16 %v1565
  %v1675 = vunpack.c.h.b16 %v1565
  %v1676 = vunpack.c.l.b16 %v1566
  %v1677 = vpack.c.b16 %v1604, %v1604
  %v1678 = vpack.c.b16 %v1605, %v1605
  %v1679 = vpack.c.b16 %v1606, %v1606
  %v1680 = vpack.c.b16 %v1607, %v1607
  %v1681 = vpack.c.b16 %v1608, %v1608
  %v1682 = vpack.c.b16 %v1609, %v1609
  %v1683 = vpack.c.b16 %v1610, %v1610
  %v1684 = vpack.c.b16 %v1611, %v1611
  %v1685 = vpack.c.b16 %v1612, %v1612
  %v1686 = vpack.c.b16 %v1613, %v1613
  %v1687 = vpack.c.b16 %v1614, %v1614
  %v1688 = vpack.c.b16 %v1615, %v1615
  %v1689 = vpack.c.b16 %v1616, %v1616
  %v1690 = vpack.c.b16 %v1617, %v1617
  %v1691 = vpack.c.b16 %v1618, %v1618
  %v1692 = vpack.c.b16 %v1619, %v1619
  %v1693 = vpack.c.b16 %v1620, %v1620
  %v1694 = vpack.c.b16 %v1621, %v1621
  %v1695 = vpack.c.b16 %v1622, %v1622
  %v1696 = vpack.c.b16 %v1623, %v1623
  %v1697 = vpack.c.b16 %v1624, %v1624
  %v1698 = vpack.c.b16 %v1625, %v1625
  %v1699 = vpack.c.b16 %v1626, %v1626
  %v1700 = vpack.c.b16 %v1627, %v1627
  %v1701 = vpack.c.b16 %v1628, %v1628
  %v1702 = vpack.c.b16 %v1629, %v1629
  %v1703 = vpack.c.b16 %v1630, %v1630
  %v1704 = vpack.c.b16 %v1631, %v1631
  %v1705 = vpack.c.b16 %v1632, %v1632
  %v1706 = vpack.c.b16 %v1633, %v1633
  %v1707 = vpack.c.b16 %v1634, %v1634
  %v1708 = vpack.c.b16 %v1635, %v1635
  %v1709 = vpack.c.b16 %v1636, %v1636
  %v1710 = vpack.c.b16 %v1637, %v1637
  %v1711 = vpack.c.b16 %v1638, %v1638
  %v1712 = vpack.c.b16 %v1639, %v1639
  %v1713 = vpack.c.b16 %v1640, %v1640
  %v1714 = vpack.c.b16 %v1641, %v1641
  %v1715 = vpack.c.b16 %v1642, %v1642
  %v1716 = vpack.c.b16 %v1643, %v1643
  %v1717 = vpack.c.b16 %v1644, %v1644
  %v1718 = vpack.c.b16 %v1645, %v1645
  %v1719 = vpack.c.b16 %v1646, %v1646
  %v1720 = vpack.c.b16 %v1647, %v1647
  %v1721 = vpack.c.b16 %v1648, %v1648
  %v1722 = vpack.c.b16 %v1649, %v1649
  %v1723 = vpack.c.b16 %v1650, %v1650
  %v1724 = vpack.c.b16 %v1651, %v1651
  %v1725 = vpack.c.b16 %v1652, %v1652
  %v1726 = vpack.c.b16 %v1653, %v1653
  %v1727 = vpack.c.b16 %v1654, %v1654
  %v1728 = vpack.c.b16 %v1655, %v1655
  %v1729 = vpack.c.b16 %v1656, %v1656
  %v1730 = vpack.c.b16 %v1657, %v1657
  %v1731 = vpack.c.b16 %v1658, %v1658
  %v1732 = vpack.c.b16 %v1659, %v1659
  %v1733 = vpack.c.b16 %v1660, %v1660
  %v1734 = vpack.c.b16 %v1661, %v1661
  %v1735 = vpack.c.b16 %v1662, %v1662
  %v1736 = vpack.c.b16 %v1663, %v1663
  %v1737 = vpack.c.b16 %v1664, %v1664
  %v1738 = vpack.c.b16 %v1665, %v1665
  %v1739 = vpack.c.b16 %v1666, %v1666
  %v1740 = vpack.c.b16 %v1667, %v1667
  %v1741 = vpack.c.b16 %v1668, %v1668
  %v1742 = vpack.c.b16 %v1669, %v1669
  %v1743 = vpack.c.b16 %v1670, %v1670
  %v1744 = vpack.c.b16 %v1671, %v1671
  %v1745 = vpack.c.b16 %v1672, %v1672
  %v1746 = vpack.c.b16 %v1673, %v1673
  %v1747 = vpack.c.b16 %v1674, %v1674
  %v1748 = vpack.c.b16 %v1675, %v1675
  %v1749 = vpack.c.b16 %v1676, %v1676
  %1823 = vst [vmem:[%s5] sm:$0xf] %v1677
  %1824 = vst [vmem:[%s5 + $0x4] sm:$0xf] %v1678
  %1825 = vst [vmem:[%s5 + $0x8] sm:$0xf] %v1679
  %1826 = vst [vmem:[%s5 + $0xc] sm:$0xf] %v1680
  %1827 = vst [vmem:[%s5 + $0x10] sm:$0xf] %v1681
  %1828 = vst [vmem:[%s5 + $0x14] sm:$0xf] %v1682
  %1829 = vst [vmem:[%s5 + $0x18] sm:$0xf] %v1683
  %1830 = vst [vmem:[%s5 + $0x1c] sm:$0xf] %v1684
  %1831 = vst [vmem:[%s5 + $0x20] sm:$0xf] %v1685
  %1832 = vst [vmem:[%s5 + $0x24] sm:$0xf] %v1686
  %1833 = vst [vmem:[%s5 + $0x28] sm:$0xf] %v1687
  %1834 = vst [vmem:[%s5 + $0x2c] sm:$0xf] %v1688
  %1835 = vst [vmem:[%s5 + $0x30] sm:$0xf] %v1689
  %1836 = vst [vmem:[%s5 + $0x34] sm:$0xf] %v1690
  %1837 = vst [vmem:[%s5 + $0x38] sm:$0xf] %v1691
  %1838 = vst [vmem:[%s5 + $0x3c] sm:$0xf] %v1692
  %1839 = vst [vmem:[%s5 + $0x40] sm:$0xf] %v1693
  %1840 = vst [vmem:[%s5 + $0x44] sm:$0xf] %v1694
  %1841 = vst [vmem:[%s5 + $0x48] sm:$0xf] %v1695
  %1842 = vst [vmem:[%s5 + $0x4c] sm:$0xf] %v1696
  %1843 = vst [vmem:[%s5 + $0x50] sm:$0xf] %v1697
  %1844 = vst [vmem:[%s5 + $0x54] sm:$0xf] %v1698
  %1845 = vst [vmem:[%s5 + $0x58] sm:$0xf] %v1699
  %1846 = vst [vmem:[%s5 + $0x5c] sm:$0xf] %v1700
  %1847 = vst [vmem:[%s5 + $0x60] sm:$0xf] %v1701
  %1848 = vst [vmem:[%s5 + $0x64] sm:$0xf] %v1702
  %1849 = vst [vmem:[%s5 + $0x68] sm:$0xf] %v1703
  %1850 = vst [vmem:[%s5 + $0x6c] sm:$0xf] %v1704
  %1851 = vst [vmem:[%s5 + $0x70] sm:$0xf] %v1705
  %1852 = vst [vmem:[%s5 + $0x74] sm:$0xf] %v1706
  %1853 = vst [vmem:[%s5 + $0x78] sm:$0xf] %v1707
  %1854 = vst [vmem:[%s5 + $0x7c] sm:$0xf] %v1708
  %1855 = vst [vmem:[%s5 + $0x80] sm:$0xf] %v1709
  %1856 = vst [vmem:[%s5 + $0x84] sm:$0xf] %v1710
  %1857 = vst [vmem:[%s5 + $0x88] sm:$0xf] %v1711
  %1858 = vst [vmem:[%s5 + $0x8c] sm:$0xf] %v1712
  %1859 = vst [vmem:[%s5 + $0x90] sm:$0xf] %v1713
  %1860 = vst [vmem:[%s5 + $0x94] sm:$0xf] %v1714
  %1861 = vst [vmem:[%s5 + $0x98] sm:$0xf] %v1715
  %1862 = vst [vmem:[%s5 + $0x9c] sm:$0xf] %v1716
  %1863 = vst [vmem:[%s5 + $0xa0] sm:$0xf] %v1717
  %1864 = vst [vmem:[%s5 + $0xa4] sm:$0xf] %v1718
  %1865 = vst [vmem:[%s5 + $0xa8] sm:$0xf] %v1719
  %1866 = vst [vmem:[%s5 + $0xac] sm:$0xf] %v1720
  %1867 = vst [vmem:[%s5 + $0xb0] sm:$0xf] %v1721
  %1868 = vst [vmem:[%s5 + $0xb4] sm:$0xf] %v1722
  %1869 = vst [vmem:[%s5 + $0xb8] sm:$0xf] %v1723
  %1870 = vst [vmem:[%s5 + $0xbc] sm:$0xf] %v1724
  %1871 = vst [vmem:[%s5 + $0xc0] sm:$0xf] %v1725
  %1872 = vst [vmem:[%s5 + $0xc4] sm:$0xf] %v1726
  %1873 = vst [vmem:[%s5 + $0xc8] sm:$0xf] %v1727
  %1874 = vst [vmem:[%s5 + $0xcc] sm:$0xf] %v1728
  %1875 = vst [vmem:[%s5 + $0xd0] sm:$0xf] %v1729
  %1876 = vst [vmem:[%s5 + $0xd4] sm:$0xf] %v1730
  %1877 = vst [vmem:[%s5 + $0xd8] sm:$0xf] %v1731
  %1878 = vst [vmem:[%s5 + $0xdc] sm:$0xf] %v1732
  %1879 = vst [vmem:[%s5 + $0xe0] sm:$0xf] %v1733
  %1880 = vst [vmem:[%s5 + $0xe4] sm:$0xf] %v1734
  %1881 = vst [vmem:[%s5 + $0xe8] sm:$0xf] %v1735
  %1882 = vst [vmem:[%s5 + $0xec] sm:$0xf] %v1736
  %1883 = vst [vmem:[%s5 + $0xf0] sm:$0xf] %v1737
  %1884 = vst [vmem:[%s5 + $0xf4] sm:$0xf] %v1738
  %1885 = vst [vmem:[%s5 + $0xf8] sm:$0xf] %v1739
  %1886 = vst [vmem:[%s5 + $0xfc] sm:$0xf] %v1740
  %1887 = vst [vmem:[%s5 + $0x100] sm:$0xf] %v1741
  %1888 = vst [vmem:[%s5 + $0x104] sm:$0xf] %v1742
  %1889 = vst [vmem:[%s5 + $0x108] sm:$0xf] %v1743
  %1890 = vst [vmem:[%s5 + $0x10c] sm:$0xf] %v1744
  %1891 = vst [vmem:[%s5 + $0x110] sm:$0xf] %v1745
  %1892 = vst [vmem:[%s5 + $0x114] sm:$0xf] %v1746
  %1893 = vst [vmem:[%s5 + $0x118] sm:$0xf] %v1747
  %1894 = vst [vmem:[%s5 + $0x11c] sm:$0xf] %v1748
  %1895 = vst [vmem:[%s5 + $0x120] sm:$0xf] %v1749
  // Predicated region
  $region22: #{generator_forward.8} parent=0 // pred_check
    _
  $region23: #{generator_forward.8} parent=0 // pred_check_branch
    %1897 = sbr.rel (0) target = $region25
  $region24: #{generator_forward.8} parent=0 // pred_region
    _
  $region25: #{generator_forward.8} parent=0 // pred_fallthru
    _
  // Predicated region
  $region26: #{generator_forward.8} parent=0 // pred_check
    _
  $region27: #{generator_forward.8} parent=0 // pred_check_branch
    %1899 = sbr.rel (0) target = $region29
  $region28: #{generator_forward.8} parent=0 // pred_region
    _
  $region29: #{generator_forward.8} parent=0 // pred_fallthru
    _

// kernel: generator_forward.9
$region0: #{generator_forward.9}
  #allocation0 [shape = 'u32[]', space=smem, size = 0x4, offset = 0x4, fixed_abs, tag = 'smem constant byte address 0x4 - core index']
  #allocation1 [shape = 'u32[144,128]{1,0:T(1,128)}', space=vmem, size = 0x12000, scoped, tag = 'internal scratch']
  %s0 = inlined_call_operand.vmem [shape: bf16[2192,32], index: 0, kind: input, shape index: {}]
  %s1 = inlined_call_operand.vmem [shape: bf16[32,128], index: 1, kind: input, shape index: {}]
  %s2 = inlined_call_operand.vmem [shape: f32[2192,128], index: 2, kind: output, shape index: {}]
  %s3 = sld [smem:[#allocation0]]
  $region41: #{generator_forward.9} parent=0
    _
  %s5 = ssub.s32 1, %s3
  %s6 = scalar_select 0, %s5, %s3
  loop: start=0, step=1, limit=4
  $region2: #{generator_forward.9} parent=0 // loop_pre_header
    _
  $region3: #{generator_forward.9} parent=0 // loop_header
    %s8 = sphi 0, %s12
    %p9 = scmp.ge.s32.totalorder %s8, 4
    %s18 = sphi 0, %s20
    %s21 = sphi 0, %s18
    %s22 = sphi 0, %s21
    %s38 = sphi 0, %s22
    %s42 = sphi 0, %s42
    %s44 = sphi 0, %s42
    %s45 = sphi 0, %s44
    %s59 = sphi 0, %s45
    %s65 = sphi 0, %s67
    %s68 = sphi 0, %s65
    %s69 = sphi 0, %s68
    %s85 = sphi 0, %s69
  $region4: #{generator_forward.9} parent=0 // loop_header_branch
    %11 = sbr.rel (%p9) target = $region8
  $region5: #{generator_forward.9} parent=0 // loop_body
    %s13 = ssub.s32 %s8, 1
    %s14 = ssub.s32 %s8, 2
    %s15 = sadd.s32 %s8, 1
    %s16 = ssub.s32 %s8, %s15
    %p17 = scmp.eq.s32.totalorder %s16, 0
    %s19 = sadd.s32 %s18, 1
    %s20 = scalar_select %p17, %s18, %s19
    %p23 = pneg %p17
    %p24 = scmp.eq.s32.totalorder %s8, 1
    %p25 = por %p23, %p24
    %p26 = scmp.ne.s32.totalorder %s18, %s21
    %p27 = scmp.eq.s32.totalorder %s8, 0
    %p28 = por %p26, %p27
    %p29 = scmp.ne.s32.totalorder %s18, %s21
    %p30 = scmp.eq.s32.totalorder %s13, 1
    %p31 = por %p29, %p30
    %p32 = scmp.ne.s32.totalorder %s21, %s22
    %p33 = scmp.eq.s32.totalorder %s13, 0
    %p34 = por %p32, %p33
    %p35 = scmp.ne.s32.totalorder %s21, %s22
    %p36 = scmp.eq.s32.totalorder %s14, 1
    %p37 = por %p35, %p36
    %p39 = scmp.ne.s32.totalorder %s22, %s38
    %p40 = scmp.eq.s32.totalorder %s14, 0
    %p41 = por %p39, %p40
    %s43 = sadd.s32 %s42, 1
    %p46 = scmp.eq.s32.totalorder %s8, 1
    %p47 = scmp.ne.s32.totalorder %s42, %s44
    %p48 = scmp.eq.s32.totalorder %s8, 0
    %p49 = por %p47, %p48
    %p50 = scmp.ne.s32.totalorder %s42, %s44
    %p51 = scmp.eq.s32.totalorder %s13, 1
    %p52 = por %p50, %p51
    %p53 = scmp.ne.s32.totalorder %s44, %s45
    %p54 = scmp.eq.s32.totalorder %s13, 0
    %p55 = por %p53, %p54
    %p56 = scmp.ne.s32.totalorder %s44, %s45
    %p57 = scmp.eq.s32.totalorder %s14, 1
    %p58 = por %p56, %p57
    %p60 = scmp.ne.s32.totalorder %s45, %s59
    %p61 = scmp.eq.s32.totalorder %s14, 0
    %p62 = por %p60, %p61
    %s63 = ssub.s32 %s8, %s15
    %p64 = scmp.eq.s32.totalorder %s63, 0
    %s66 = sadd.s32 %s65, 1
    %s67 = scalar_select %p64, %s65, %s66
    %p70 = pneg %p64
    %p71 = scmp.eq.s32.totalorder %s8, 1
    %p72 = por %p70, %p71
    %p73 = scmp.ne.s32.totalorder %s65, %s68
    %p74 = scmp.eq.s32.totalorder %s8, 0
    %p75 = por %p73, %p74
    %p76 = scmp.ne.s32.totalorder %s65, %s68
    %p77 = scmp.eq.s32.totalorder %s13, 1
    %p78 = por %p76, %p77
    %p79 = scmp.ne.s32.totalorder %s68, %s69
    %p80 = scmp.eq.s32.totalorder %s13, 0
    %p81 = por %p79, %p80
    %p82 = scmp.ne.s32.totalorder %s68, %s69
    %p83 = scmp.eq.s32.totalorder %s14, 1
    %p84 = por %p82, %p83
    %p86 = scmp.ne.s32.totalorder %s69, %s85
    %p87 = scmp.eq.s32.totalorder %s14, 0
    %p88 = por %p86, %p87
    %p89 = scmp.le.s32.totalorder 1, %s8
    %p90 = scmp.lt.s32.totalorder %s8, 3
    %p91 = pnand %p89, %p90
    %p92 = pneg %p91
    // Predicated region
    $region9: #{generator_forward.9} parent=5 // pred_check
      _
    $region10: #{generator_forward.9} parent=5 // pred_check_branch
      %94 = sbr.rel (%p91) target = $region12
    $region11: #{generator_forward.9} parent=5 // pred_region
      %s95 = ssub.s32 %s8, 1
      // Predicated region
      $region13: #{generator_forward.9} parent=11 // pred_check
        %p96 = pneg %p55
      $region14: #{generator_forward.9} parent=11 // pred_check_branch
        %98 = sbr.rel (%p96) target = $region16
      $region15: #{generator_forward.9} parent=11 // pred_region
        _
      $region16: #{generator_forward.9} parent=11 // pred_fallthru
        _
    $region12: #{generator_forward.9} parent=5 // pred_fallthru
      _
    %p99 = scmp.lt.s32.totalorder %s8, 2
    // Predicated region
    $region17: #{generator_forward.9} parent=5 // pred_check
      %p100 = pneg %p99
    $region18: #{generator_forward.9} parent=5 // pred_check_branch
      %102 = sbr.rel (%p100) target = $region20
    $region19: #{generator_forward.9} parent=5 // pred_region
      // Predicated region
      $region21: #{generator_forward.9} parent=19 // pred_check
        %p103 = pneg %p28
      $region22: #{generator_forward.9} parent=19 // pred_check_branch
        %105 = sbr.rel (%p103) target = $region24
      $region23: #{generator_forward.9} parent=19 // pred_region
        %s106 = smul.u32 137, %s8
        %p107 = scmp.lt.s32.totalorder %s106, 273
        %s108 = scalar_select %p107, %s106, 273
        %s109 = smul.addr %s108, 4
        %s110 = scalar_lea.vmem %s0, %s109
        %s111 = smul.u32 137, %s8
      $region24: #{generator_forward.9} parent=19 // pred_fallthru
        _
    $region20: #{generator_forward.9} parent=5 // pred_fallthru
      _
    %p112 = scmp.le.s32.totalorder 1, %s8
    %p113 = scmp.lt.s32.totalorder %s8, 3
    %p114 = pnand %p112, %p113
    %p115 = pneg %p114
    // Predicated region
    $region25: #{generator_forward.9} parent=5 // pred_check
      _
    $region26: #{generator_forward.9} parent=5 // pred_check_branch
      %117 = sbr.rel (%p114) target = $region28
    $region27: #{generator_forward.9} parent=5 // pred_region
      %s118 = ssub.s32 %s8, 1
      %s119 = smul.u32 137, %s13
      %p120 = scmp.lt.s32.totalorder %s119, 273
      %s121 = scalar_select %p120, %s119, 273
      %s122 = smul.addr %s121, 4
      %s123 = scalar_lea.vmem %s0, %s122
      %p124 = pneg %p34
      %p125 = pneg %p31
      %p126 = pneg %p55
      %p127 = pneg %p52
      %p128 = pneg %p81
      %p129 = pneg %p78
      %s130 = smul.u32 137, %s13
      %p131 = scmp.lt.s32.totalorder %s130, 273
      %s132 = scalar_select %p131, %s130, 273
      %s133 = smul.addr %s132, 8
      %s134 = scalar_lea.vmem %s2, %s133
      %s135 = smul.u32 137, %s13
      %p136 = scmp.lt.s32.totalorder %s135, 273
      %s137 = scalar_select %p136, %s135, 273
      %s138 = smul.addr %s137, 4
      %s139 = scalar_lea.vmem %s0, %s138
      %s140 = smul.u32 137, %s13
      %s141 = smul.u32 137, %s13
      %p142 = scmp.lt.s32.totalorder %s141, 273
      %s143 = scalar_select %p142, %s141, 273
      %s144 = smul.addr %s143, 8
      %s145 = scalar_lea.vmem %s2, %s144
      %s146 = smul.u32 137, %s13
      %v148 = vld [vmem:[%s139] sm:$0xf]
      %v149 = vld [vmem:[%s139 + $0x4] sm:$0xf]
      %v150 = vld [vmem:[%s139 + $0x8] sm:$0xf]
      %v151 = vld [vmem:[%s139 + $0xc] sm:$0xf]
      %v152 = vld [vmem:[%s139 + $0x10] sm:$0xf]
      %v153 = vld [vmem:[%s139 + $0x14] sm:$0xf]
      %v154 = vld [vmem:[%s139 + $0x18] sm:$0xf]
      %v155 = vld [vmem:[%s139 + $0x1c] sm:$0xf]
      %v156 = vld [vmem:[%s139 + $0x20] sm:$0xf]
      %v157 = vld [vmem:[%s139 + $0x24] sm:$0xf]
      %v158 = vld [vmem:[%s139 + $0x28] sm:$0xf]
      %v159 = vld [vmem:[%s139 + $0x2c] sm:$0xf]
      %v160 = vld [vmem:[%s139 + $0x30] sm:$0xf]
      %v161 = vld [vmem:[%s139 + $0x34] sm:$0xf]
      %v162 = vld [vmem:[%s139 + $0x38] sm:$0xf]
      %v163 = vld [vmem:[%s139 + $0x3c] sm:$0xf]
      %v164 = vld [vmem:[%s139 + $0x40] sm:$0xf]
      %v165 = vld [vmem:[%s139 + $0x44] sm:$0xf]
      %v166 = vld [vmem:[%s139 + $0x48] sm:$0xf]
      %v167 = vld [vmem:[%s139 + $0x4c] sm:$0xf]
      %v168 = vld [vmem:[%s139 + $0x50] sm:$0xf]
      %v169 = vld [vmem:[%s139 + $0x54] sm:$0xf]
      %v170 = vld [vmem:[%s139 + $0x58] sm:$0xf]
      %v171 = vld [vmem:[%s139 + $0x5c] sm:$0xf]
      %v172 = vld [vmem:[%s139 + $0x60] sm:$0xf]
      %v173 = vld [vmem:[%s139 + $0x64] sm:$0xf]
      %v174 = vld [vmem:[%s139 + $0x68] sm:$0xf]
      %v175 = vld [vmem:[%s139 + $0x6c] sm:$0xf]
      %v176 = vld [vmem:[%s139 + $0x70] sm:$0xf]
      %v177 = vld [vmem:[%s139 + $0x74] sm:$0xf]
      %v178 = vld [vmem:[%s139 + $0x78] sm:$0xf]
      %v179 = vld [vmem:[%s139 + $0x7c] sm:$0xf]
      %v180 = vld [vmem:[%s139 + $0x80] sm:$0xf]
      %v181 = vld [vmem:[%s139 + $0x84] sm:$0xf]
      %v182 = vld [vmem:[%s139 + $0x88] sm:$0xf]
      %v183 = vld [vmem:[%s139 + $0x8c] sm:$0xf]
      %v184 = vld [vmem:[%s139 + $0x90] sm:$0xf]
      %v185 = vld [vmem:[%s139 + $0x94] sm:$0xf]
      %v186 = vld [vmem:[%s139 + $0x98] sm:$0xf]
      %v187 = vld [vmem:[%s139 + $0x9c] sm:$0xf]
      %v188 = vld [vmem:[%s139 + $0xa0] sm:$0xf]
      %v189 = vld [vmem:[%s139 + $0xa4] sm:$0xf]
      %v190 = vld [vmem:[%s139 + $0xa8] sm:$0xf]
      %v191 = vld [vmem:[%s139 + $0xac] sm:$0xf]
      %v192 = vld [vmem:[%s139 + $0xb0] sm:$0xf]
      %v193 = vld [vmem:[%s139 + $0xb4] sm:$0xf]
      %v194 = vld [vmem:[%s139 + $0xb8] sm:$0xf]
      %v195 = vld [vmem:[%s139 + $0xbc] sm:$0xf]
      %v196 = vld [vmem:[%s139 + $0xc0] sm:$0xf]
      %v197 = vld [vmem:[%s139 + $0xc4] sm:$0xf]
      %v198 = vld [vmem:[%s139 + $0xc8] sm:$0xf]
      %v199 = vld [vmem:[%s139 + $0xcc] sm:$0xf]
      %v200 = vld [vmem:[%s139 + $0xd0] sm:$0xf]
      %v201 = vld [vmem:[%s139 + $0xd4] sm:$0xf]
      %v202 = vld [vmem:[%s139 + $0xd8] sm:$0xf]
      %v203 = vld [vmem:[%s139 + $0xdc] sm:$0xf]
      %v204 = vld [vmem:[%s139 + $0xe0] sm:$0xf]
      %v205 = vld [vmem:[%s139 + $0xe4] sm:$0xf]
      %v206 = vld [vmem:[%s139 + $0xe8] sm:$0xf]
      %v207 = vld [vmem:[%s139 + $0xec] sm:$0xf]
      %v208 = vld [vmem:[%s139 + $0xf0] sm:$0xf]
      %v209 = vld [vmem:[%s139 + $0xf4] sm:$0xf]
      %v210 = vld [vmem:[%s139 + $0xf8] sm:$0xf]
      %v211 = vld [vmem:[%s139 + $0xfc] sm:$0xf]
      %v212 = vld [vmem:[%s139 + $0x100] sm:$0xf]
      %v213 = vld [vmem:[%s139 + $0x104] sm:$0xf]
      %v214 = vld [vmem:[%s139 + $0x108] sm:$0xf]
      %v215 = vld [vmem:[%s139 + $0x10c] sm:$0xf]
      %v216 = vld [vmem:[%s139 + $0x110] sm:$0xf]
      %v217 = vld [vmem:[%s139 + $0x114] sm:$0xf]
      %v218 = vld [vmem:[%s139 + $0x118] sm:$0xf]
      %v219 = vld [vmem:[%s139 + $0x11c] sm:$0xf]
      %v220 = vld [vmem:[%s139 + $0x120] sm:$0xf]
      %v221 = vld [vmem:[%s139 + $0x124] sm:$0xf]
      %v222 = vld [vmem:[%s139 + $0x128] sm:$0xf]
      %v223 = vld [vmem:[%s139 + $0x12c] sm:$0xf]
      %v224 = vld [vmem:[%s139 + $0x130] sm:$0xf]
      %v225 = vld [vmem:[%s139 + $0x134] sm:$0xf]
      %v226 = vld [vmem:[%s139 + $0x138] sm:$0xf]
      %v227 = vld [vmem:[%s139 + $0x13c] sm:$0xf]
      %v228 = vld [vmem:[%s139 + $0x140] sm:$0xf]
      %v229 = vld [vmem:[%s139 + $0x144] sm:$0xf]
      %v230 = vld [vmem:[%s139 + $0x148] sm:$0xf]
      %v231 = vld [vmem:[%s139 + $0x14c] sm:$0xf]
      %v232 = vld [vmem:[%s139 + $0x150] sm:$0xf]
      %v233 = vld [vmem:[%s139 + $0x154] sm:$0xf]
      %v234 = vld [vmem:[%s139 + $0x158] sm:$0xf]
      %v235 = vld [vmem:[%s139 + $0x15c] sm:$0xf]
      %v236 = vld [vmem:[%s139 + $0x160] sm:$0xf]
      %v237 = vld [vmem:[%s139 + $0x164] sm:$0xf]
      %v238 = vld [vmem:[%s139 + $0x168] sm:$0xf]
      %v239 = vld [vmem:[%s139 + $0x16c] sm:$0xf]
      %v240 = vld [vmem:[%s139 + $0x170] sm:$0xf]
      %v241 = vld [vmem:[%s139 + $0x174] sm:$0xf]
      %v242 = vld [vmem:[%s139 + $0x178] sm:$0xf]
      %v243 = vld [vmem:[%s139 + $0x17c] sm:$0xf]
      %v244 = vld [vmem:[%s139 + $0x180] sm:$0xf]
      %v245 = vld [vmem:[%s139 + $0x184] sm:$0xf]
      %v246 = vld [vmem:[%s139 + $0x188] sm:$0xf]
      %v247 = vld [vmem:[%s139 + $0x18c] sm:$0xf]
      %v248 = vld [vmem:[%s139 + $0x190] sm:$0xf]
      %v249 = vld [vmem:[%s139 + $0x194] sm:$0xf]
      %v250 = vld [vmem:[%s139 + $0x198] sm:$0xf]
      %v251 = vld [vmem:[%s139 + $0x19c] sm:$0xf]
      %v252 = vld [vmem:[%s139 + $0x1a0] sm:$0xf]
      %v253 = vld [vmem:[%s139 + $0x1a4] sm:$0xf]
      %v254 = vld [vmem:[%s139 + $0x1a8] sm:$0xf]
      %v255 = vld [vmem:[%s139 + $0x1ac] sm:$0xf]
      %v256 = vld [vmem:[%s139 + $0x1b0] sm:$0xf]
      %v257 = vld [vmem:[%s139 + $0x1b4] sm:$0xf]
      %v258 = vld [vmem:[%s139 + $0x1b8] sm:$0xf]
      %v259 = vld [vmem:[%s139 + $0x1bc] sm:$0xf]
      %v260 = vld [vmem:[%s139 + $0x1c0] sm:$0xf]
      %v261 = vld [vmem:[%s139 + $0x1c4] sm:$0xf]
      %v262 = vld [vmem:[%s139 + $0x1c8] sm:$0xf]
      %v263 = vld [vmem:[%s139 + $0x1cc] sm:$0xf]
      %v264 = vld [vmem:[%s139 + $0x1d0] sm:$0xf]
      %v265 = vld [vmem:[%s139 + $0x1d4] sm:$0xf]
      %v266 = vld [vmem:[%s139 + $0x1d8] sm:$0xf]
      %v267 = vld [vmem:[%s139 + $0x1dc] sm:$0xf]
      %v268 = vld [vmem:[%s139 + $0x1e0] sm:$0xf]
      %v269 = vld [vmem:[%s139 + $0x1e4] sm:$0xf]
      %v270 = vld [vmem:[%s139 + $0x1e8] sm:$0xf]
      %v271 = vld [vmem:[%s139 + $0x1ec] sm:$0xf]
      %v272 = vld [vmem:[%s139 + $0x1f0] sm:$0xf]
      %v273 = vld [vmem:[%s139 + $0x1f4] sm:$0xf]
      %v274 = vld [vmem:[%s139 + $0x1f8] sm:$0xf]
      %v275 = vld [vmem:[%s139 + $0x1fc] sm:$0xf]
      %v276 = vld [vmem:[%s139 + $0x200] sm:$0xf]
      %v277 = vld [vmem:[%s139 + $0x204] sm:$0xf]
      %v278 = vld [vmem:[%s139 + $0x208] sm:$0xf]
      %v279 = vld [vmem:[%s139 + $0x20c] sm:$0xf]
      %v280 = vld [vmem:[%s139 + $0x210] sm:$0xf]
      %v281 = vld [vmem:[%s139 + $0x214] sm:$0xf]
      %v282 = vld [vmem:[%s139 + $0x218] sm:$0xf]
      %v283 = vld [vmem:[%s139 + $0x21c] sm:$0xf]
      %v284 = vld [vmem:[%s139 + $0x220] sm:$0xf]
      %v285 = vld [vmem:[%s1] sm:$0xf]
      %v286 = vld [vmem:[%s1 + $0x4] sm:$0xf]
      %v287 = vld [vmem:[%s1 + $0x8] sm:$0xf]
      %v288 = vld [vmem:[%s1 + $0xc] sm:$0xf]
      %v426 = vunpack.c.l.b16 %v148
      %v427 = vunpack.c.l.b16 %v149
      %v428 = vunpack.c.l.b16 %v150
      %v429 = vunpack.c.l.b16 %v151
      %v430 = vunpack.c.l.b16 %v152
      %v431 = vunpack.c.l.b16 %v153
      %v432 = vunpack.c.l.b16 %v154
      %v433 = vunpack.c.l.b16 %v155
      %v434 = vunpack.c.l.b16 %v156
      %v435 = vunpack.c.l.b16 %v157
      %v436 = vunpack.c.l.b16 %v158
      %v437 = vunpack.c.l.b16 %v159
      %v438 = vunpack.c.l.b16 %v160
      %v439 = vunpack.c.l.b16 %v161
      %v440 = vunpack.c.l.b16 %v162
      %v441 = vunpack.c.l.b16 %v163
      %v442 = vunpack.c.l.b16 %v164
      %v443 = vunpack.c.l.b16 %v165
      %v444 = vunpack.c.l.b16 %v166
      %v445 = vunpack.c.l.b16 %v167
      %v446 = vunpack.c.l.b16 %v168
      %v447 = vunpack.c.l.b16 %v169
      %v448 = vunpack.c.l.b16 %v170
      %v449 = vunpack.c.l.b16 %v171
      %v450 = vunpack.c.l.b16 %v172
      %v451 = vunpack.c.l.b16 %v173
      %v452 = vunpack.c.l.b16 %v174
      %v453 = vunpack.c.l.b16 %v175
      %v454 = vunpack.c.l.b16 %v176
      %v455 = vunpack.c.l.b16 %v177
      %v456 = vunpack.c.l.b16 %v178
      %v457 = vunpack.c.l.b16 %v179
      %v458 = vunpack.c.l.b16 %v180
      %v459 = vunpack.c.l.b16 %v181
      %v460 = vunpack.c.l.b16 %v182
      %v461 = vunpack.c.l.b16 %v183
      %v462 = vunpack.c.l.b16 %v184
      %v463 = vunpack.c.l.b16 %v185
      %v464 = vunpack.c.l.b16 %v186
      %v465 = vunpack.c.l.b16 %v187
      %v466 = vunpack.c.l.b16 %v188
      %v467 = vunpack.c.l.b16 %v189
      %v468 = vunpack.c.l.b16 %v190
      %v469 = vunpack.c.l.b16 %v191
      %v470 = vunpack.c.l.b16 %v192
      %v471 = vunpack.c.l.b16 %v193
      %v472 = vunpack.c.l.b16 %v194
      %v473 = vunpack.c.l.b16 %v195
      %v474 = vunpack.c.l.b16 %v196
      %v475 = vunpack.c.l.b16 %v197
      %v476 = vunpack.c.l.b16 %v198
      %v477 = vunpack.c.l.b16 %v199
      %v478 = vunpack.c.l.b16 %v200
      %v479 = vunpack.c.l.b16 %v201
      %v480 = vunpack.c.l.b16 %v202
      %v481 = vunpack.c.l.b16 %v203
      %v482 = vunpack.c.l.b16 %v204
      %v483 = vunpack.c.l.b16 %v205
      %v484 = vunpack.c.l.b16 %v206
      %v485 = vunpack.c.l.b16 %v207
      %v486 = vunpack.c.l.b16 %v208
      %v487 = vunpack.c.l.b16 %v209
      %v488 = vunpack.c.l.b16 %v210
      %v489 = vunpack.c.l.b16 %v211
      %v490 = vunpack.c.l.b16 %v212
      %v491 = vunpack.c.l.b16 %v213
      %v492 = vunpack.c.l.b16 %v214
      %v493 = vunpack.c.l.b16 %v215
      %v494 = vunpack.c.l.b16 %v216
      %v495 = vunpack.c.l.b16 %v217
      %v496 = vunpack.c.l.b16 %v218
      %v497 = vunpack.c.l.b16 %v219
      %v498 = vunpack.c.l.b16 %v220
      %v499 = vunpack.c.l.b16 %v221
      %v500 = vunpack.c.l.b16 %v222
      %v501 = vunpack.c.l.b16 %v223
      %v502 = vunpack.c.l.b16 %v224
      %v503 = vunpack.c.l.b16 %v225
      %v504 = vunpack.c.l.b16 %v226
      %v505 = vunpack.c.l.b16 %v227
      %v506 = vunpack.c.l.b16 %v228
      %v507 = vunpack.c.l.b16 %v229
      %v508 = vunpack.c.l.b16 %v230
      %v509 = vunpack.c.l.b16 %v231
      %v510 = vunpack.c.l.b16 %v232
      %v511 = vunpack.c.l.b16 %v233
      %v512 = vunpack.c.l.b16 %v234
      %v513 = vunpack.c.l.b16 %v235
      %v514 = vunpack.c.l.b16 %v236
      %v515 = vunpack.c.l.b16 %v237
      %v516 = vunpack.c.l.b16 %v238
      %v517 = vunpack.c.l.b16 %v239
      %v518 = vunpack.c.l.b16 %v240
      %v519 = vunpack.c.l.b16 %v241
      %v520 = vunpack.c.l.b16 %v242
      %v521 = vunpack.c.l.b16 %v243
      %v522 = vunpack.c.l.b16 %v244
      %v523 = vunpack.c.l.b16 %v245
      %v524 = vunpack.c.l.b16 %v246
      %v525 = vunpack.c.l.b16 %v247
      %v526 = vunpack.c.l.b16 %v248
      %v527 = vunpack.c.l.b16 %v249
      %v528 = vunpack.c.l.b16 %v250
      %v529 = vunpack.c.l.b16 %v251
      %v530 = vunpack.c.l.b16 %v252
      %v531 = vunpack.c.l.b16 %v253
      %v532 = vunpack.c.l.b16 %v254
      %v533 = vunpack.c.l.b16 %v255
      %v534 = vunpack.c.l.b16 %v256
      %v535 = vunpack.c.l.b16 %v257
      %v536 = vunpack.c.l.b16 %v258
      %v537 = vunpack.c.l.b16 %v259
      %v538 = vunpack.c.l.b16 %v260
      %v539 = vunpack.c.l.b16 %v261
      %v540 = vunpack.c.l.b16 %v262
      %v541 = vunpack.c.l.b16 %v263
      %v542 = vunpack.c.l.b16 %v264
      %v543 = vunpack.c.l.b16 %v265
      %v544 = vunpack.c.l.b16 %v266
      %v545 = vunpack.c.l.b16 %v267
      %v546 = vunpack.c.l.b16 %v268
      %v547 = vunpack.c.l.b16 %v269
      %v548 = vunpack.c.l.b16 %v270
      %v549 = vunpack.c.l.b16 %v271
      %v550 = vunpack.c.l.b16 %v272
      %v551 = vunpack.c.l.b16 %v273
      %v552 = vunpack.c.l.b16 %v274
      %v553 = vunpack.c.l.b16 %v275
      %v554 = vunpack.c.l.b16 %v276
      %v555 = vunpack.c.l.b16 %v277
      %v556 = vunpack.c.l.b16 %v278
      %v557 = vunpack.c.l.b16 %v279
      %v558 = vunpack.c.l.b16 %v280
      %v559 = vunpack.c.l.b16 %v281
      %v560 = vunpack.c.l.b16 %v282
      %v561 = vunpack.c.l.b16 %v283
      %v562 = vunpack.c.l.b16 %v284
      %v563 = vpack.c.b16 %v427, %v426
      %v564 = vpack.c.b16 %v429, %v428
      %v565 = vpack.c.b16 %v431, %v430
      %v566 = vpack.c.b16 %v433, %v432
      %v567 = vpack.c.b16 %v435, %v434
      %v568 = vpack.c.b16 %v437, %v436
      %v569 = vpack.c.b16 %v439, %v438
      %v570 = vpack.c.b16 %v441, %v440
      %v571 = vpack.c.b16 %v443, %v442
      %v572 = vpack.c.b16 %v445, %v444
      %v573 = vpack.c.b16 %v447, %v446
      %v574 = vpack.c.b16 %v449, %v448
      %v575 = vpack.c.b16 %v451, %v450
      %v576 = vpack.c.b16 %v453, %v452
      %v577 = vpack.c.b16 %v455, %v454
      %v578 = vpack.c.b16 %v457, %v456
      %v579 = vpack.c.b16 %v459, %v458
      %v580 = vpack.c.b16 %v461, %v460
      %v581 = vpack.c.b16 %v463, %v462
      %v582 = vpack.c.b16 %v465, %v464
      %v583 = vpack.c.b16 %v467, %v466
      %v584 = vpack.c.b16 %v469, %v468
      %v585 = vpack.c.b16 %v471, %v470
      %v586 = vpack.c.b16 %v473, %v472
      %v587 = vpack.c.b16 %v475, %v474
      %v588 = vpack.c.b16 %v477, %v476
      %v589 = vpack.c.b16 %v479, %v478
      %v590 = vpack.c.b16 %v481, %v480
      %v591 = vpack.c.b16 %v483, %v482
      %v592 = vpack.c.b16 %v485, %v484
      %v593 = vpack.c.b16 %v487, %v486
      %v594 = vpack.c.b16 %v489, %v488
      %v595 = vpack.c.b16 %v491, %v490
      %v596 = vpack.c.b16 %v493, %v492
      %v597 = vpack.c.b16 %v495, %v494
      %v598 = vpack.c.b16 %v497, %v496
      %v599 = vpack.c.b16 %v499, %v498
      %v600 = vpack.c.b16 %v501, %v500
      %v601 = vpack.c.b16 %v503, %v502
      %v602 = vpack.c.b16 %v505, %v504
      %v603 = vpack.c.b16 %v507, %v506
      %v604 = vpack.c.b16 %v509, %v508
      %v605 = vpack.c.b16 %v511, %v510
      %v606 = vpack.c.b16 %v513, %v512
      %v607 = vpack.c.b16 %v515, %v514
      %v608 = vpack.c.b16 %v517, %v516
      %v609 = vpack.c.b16 %v519, %v518
      %v610 = vpack.c.b16 %v521, %v520
      %v611 = vpack.c.b16 %v523, %v522
      %v612 = vpack.c.b16 %v525, %v524
      %v613 = vpack.c.b16 %v527, %v526
      %v614 = vpack.c.b16 %v529, %v528
      %v615 = vpack.c.b16 %v531, %v530
      %v616 = vpack.c.b16 %v533, %v532
      %v617 = vpack.c.b16 %v535, %v534
      %v618 = vpack.c.b16 %v537, %v536
      %v619 = vpack.c.b16 %v539, %v538
      %v620 = vpack.c.b16 %v541, %v540
      %v621 = vpack.c.b16 %v543, %v542
      %v622 = vpack.c.b16 %v545, %v544
      %v623 = vpack.c.b16 %v547, %v546
      %v624 = vpack.c.b16 %v549, %v548
      %v625 = vpack.c.b16 %v551, %v550
      %v626 = vpack.c.b16 %v553, %v552
      %v627 = vpack.c.b16 %v555, %v554
      %v628 = vpack.c.b16 %v557, %v556
      %v629 = vpack.c.b16 %v559, %v558
      %v630 = vpack.c.b16 %v561, %v560
      %v631 = vpack.c.b16 %v562, %v562
      %v636 = vunpack.c.l.b16 %v285
      %v637 = vunpack.c.l.b16 %v286
      %v638 = vunpack.c.l.b16 %v287
      %v639 = vunpack.c.l.b16 %v288
      %v640 = vpack.c.b16 %v637, %v636
      %v641 = vpack.c.b16 %v639, %v638
      %vm644 = vcmask 261120
      %v646 = vsel %vm644, %v563, 0
      %v649 = vsel %vm644, %v564, 0
      %v652 = vsel %vm644, %v565, 0
      %v655 = vsel %vm644, %v566, 0
      %v658 = vsel %vm644, %v567, 0
      %v661 = vsel %vm644, %v568, 0
      %v664 = vsel %vm644, %v569, 0
      %v667 = vsel %vm644, %v570, 0
      %v670 = vsel %vm644, %v571, 0
      %v673 = vsel %vm644, %v572, 0
      %v676 = vsel %vm644, %v573, 0
      %v679 = vsel %vm644, %v574, 0
      %v682 = vsel %vm644, %v575, 0
      %v685 = vsel %vm644, %v576, 0
      %v688 = vsel %vm644, %v577, 0
      %v691 = vsel %vm644, %v578, 0
      %v694 = vsel %vm644, %v579, 0
      %v697 = vsel %vm644, %v580, 0
      %v700 = vsel %vm644, %v581, 0
      %v703 = vsel %vm644, %v582, 0
      %v706 = vsel %vm644, %v583, 0
      %v709 = vsel %vm644, %v584, 0
      %v712 = vsel %vm644, %v585, 0
      %v715 = vsel %vm644, %v586, 0
      %v718 = vsel %vm644, %v587, 0
      %v721 = vsel %vm644, %v588, 0
      %v724 = vsel %vm644, %v589, 0
      %v727 = vsel %vm644, %v590, 0
      %v730 = vsel %vm644, %v591, 0
      %v733 = vsel %vm644, %v592, 0
      %v736 = vsel %vm644, %v593, 0
      %v739 = vsel %vm644, %v594, 0
      %v742 = vsel %vm644, %v595, 0
      %v745 = vsel %vm644, %v596, 0
      %v748 = vsel %vm644, %v597, 0
      %v751 = vsel %vm644, %v598, 0
      %v754 = vsel %vm644, %v599, 0
      %v757 = vsel %vm644, %v600, 0
      %v760 = vsel %vm644, %v601, 0
      %v763 = vsel %vm644, %v602, 0
      %v766 = vsel %vm644, %v603, 0
      %v769 = vsel %vm644, %v604, 0
      %v772 = vsel %vm644, %v605, 0
      %v775 = vsel %vm644, %v606, 0
      %v778 = vsel %vm644, %v607, 0
      %v781 = vsel %vm644, %v608, 0
      %v784 = vsel %vm644, %v609, 0
      %v787 = vsel %vm644, %v610, 0
      %v790 = vsel %vm644, %v611, 0
      %v793 = vsel %vm644, %v612, 0
      %v796 = vsel %vm644, %v613, 0
      %v799 = vsel %vm644, %v614, 0
      %v802 = vsel %vm644, %v615, 0
      %v805 = vsel %vm644, %v616, 0
      %v808 = vsel %vm644, %v617, 0
      %v811 = vsel %vm644, %v618, 0
      %v814 = vsel %vm644, %v619, 0
      %v817 = vsel %vm644, %v620, 0
      %v820 = vsel %vm644, %v621, 0
      %v823 = vsel %vm644, %v622, 0
      %v826 = vsel %vm644, %v623, 0
      %v829 = vsel %vm644, %v624, 0
      %v832 = vsel %vm644, %v625, 0
      %v835 = vsel %vm644, %v626, 0
      %v838 = vsel %vm644, %v627, 0
      %v841 = vsel %vm644, %v628, 0
      %v844 = vsel %vm644, %v629, 0
      %v847 = vsel %vm644, %v630, 0
      %v850 = vsel %vm644, %v631, 0
      %852 = vmatprep.subr.bf16.mxu0 0
      %853 = vmatpush1.bf16.msra.mxu0 %v640
      %854 = vmatprep.subr.bf16.mxu0 0
      %855 = vmatpush1.bf16.msra.mxu0 %v641
      %856 = vmatprep.subr.bf16.mxu0 0
      %857 = vmatpush1.bf16.msra.mxu0 0
      %858 = vmatprep.subr.bf16.mxu0 0
      %859 = vmatpush1.bf16.msra.mxu0 0
      %860 = vmatprep.subr.bf16.mxu0 0
      %861 = vmatpush1.bf16.msra.mxu0 0
      %862 = vmatprep.subr.bf16.mxu0 0
      %863 = vmatpush1.bf16.msra.mxu0 0
      %864 = vmatprep.subr.bf16.mxu0 0
      %865 = vmatpush1.bf16.msra.mxu0 0
      %866 = vmatprep.subr.bf16.mxu0 0
      %867 = vmatpush1.bf16.msra.mxu0 0
      %868 = vmatprep.subr.bf16.mxu0 0
      %869 = vmatpush1.bf16.msra.mxu0 0
      %870 = vmatprep.subr.bf16.mxu0 0
      %871 = vmatpush1.bf16.msra.mxu0 0
      %872 = vmatprep.subr.bf16.mxu0 0
      %873 = vmatpush1.bf16.msra.mxu0 0
      %874 = vmatprep.subr.bf16.mxu0 0
      %875 = vmatpush1.bf16.msra.mxu0 0
      %876 = vmatprep.subr.bf16.mxu0 0
      %877 = vmatpush1.bf16.msra.mxu0 0
      %878 = vmatprep.subr.bf16.mxu0 0
      %879 = vmatpush1.bf16.msra.mxu0 0
      %880 = vmatprep.subr.bf16.mxu0 0
      %881 = vmatpush1.bf16.msra.mxu0 0
      %882 = vmatprep.subr.bf16.mxu0 0
      %883 = vmatpush1.bf16.msra.mxu0 0
      %884 = vmatprep.mubr.bf16.mxu0 0
      %885 = vmatmul.mubr.bf16.gmra.mrb[0].mxu0 %v646
      %v886 = vpop.f32.mrb[0].mxu0
      %v887 = vadd.f32 0.0, %v886
      %v888 = vpop.f32.mrb[0].mxu0
      %v889 = vpop.f32.mrb[0].mxu0
      %v890 = vadd.f32 0.0, %v889
      %v891 = vpop.f32.mrb[0].mxu0
      %892 = vmatprep.mubr.bf16.mxu0 0
      %893 = vmatmul.mubr.bf16.gmra.mrb[0].mxu0 %v649
      %v894 = vpop.f32.mrb[0].mxu0
      %v895 = vadd.f32 0.0, %v894
      %v896 = vpop.f32.mrb[0].mxu0
      %v897 = vpop.f32.mrb[0].mxu0
      %v898 = vadd.f32 0.0, %v897
      %v899 = vpop.f32.mrb[0].mxu0
      %900 = vmatprep.mubr.bf16.mxu0 0
      %901 = vmatmul.mubr.bf16.gmra.mrb[0].mxu0 %v652
      %v902 = vpop.f32.mrb[0].mxu0
      %v903 = vadd.f32 0.0, %v902
      %v904 = vpop.f32.mrb[0].mxu0
      %v905 = vpop.f32.mrb[0].mxu0
      %v906 = vadd.f32 0.0, %v905
      %v907 = vpop.f32.mrb[0].mxu0
      %908 = vmatprep.mubr.bf16.mxu0 0
      %909 = vmatmul.mubr.bf16.gmra.mrb[0].mxu0 %v655
      %v910 = vpop.f32.mrb[0].mxu0
      %v911 = vadd.f32 0.0, %v910
      %v912 = vpop.f32.mrb[0].mxu0
      %v913 = vpop.f32.mrb[0].mxu0
      %v914 = vadd.f32 0.0, %v913
      %v915 = vpop.f32.mrb[0].mxu0
      %916 = vmatprep.mubr.bf16.mxu0 0
      %917 = vmatmul.mubr.bf16.gmra.mrb[0].mxu0 %v658
      %v918 = vpop.f32.mrb[0].mxu0
      %v919 = vadd.f32 0.0, %v918
      %v920 = vpop.f32.mrb[0].mxu0
      %v921 = vpop.f32.mrb[0].mxu0
      %v922 = vadd.f32 0.0, %v921
      %v923 = vpop.f32.mrb[0].mxu0
      %924 = vmatprep.mubr.bf16.mxu0 0
      %925 = vmatmul.mubr.bf16.gmra.mrb[0].mxu0 %v661
      %v926 = vpop.f32.mrb[0].mxu0
      %v927 = vadd.f32 0.0, %v926
      %v928 = vpop.f32.mrb[0].mxu0
      %v929 = vpop.f32.mrb[0].mxu0
      %v930 = vadd.f32 0.0, %v929
      %v931 = vpop.f32.mrb[0].mxu0
      %932 = vmatprep.mubr.bf16.mxu0 0
      %933 = vmatmul.mubr.bf16.gmra.mrb[0].mxu0 %v664
      %v934 = vpop.f32.mrb[0].mxu0
      %v935 = vadd.f32 0.0, %v934
      %v936 = vpop.f32.mrb[0].mxu0
      %v937 = vpop.f32.mrb[0].mxu0
      %v938 = vadd.f32 0.0, %v937
      %v939 = vpop.f32.mrb[0].mxu0
      %940 = vmatprep.mubr.bf16.mxu0 0
      %941 = vmatmul.mubr.bf16.gmra.mrb[0].mxu0 %v667
      %v942 = vpop.f32.mrb[0].mxu0
      %v943 = vadd.f32 0.0, %v942
      %v944 = vpop.f32.mrb[0].mxu0
      %v945 = vpop.f32.mrb[0].mxu0
      %v946 = vadd.f32 0.0, %v945
      %v947 = vpop.f32.mrb[0].mxu0
      %948 = vmatprep.mubr.bf16.mxu0 0
      %949 = vmatmul.mubr.bf16.gmra.mrb[0].mxu0 %v670
      %v950 = vpop.f32.mrb[0].mxu0
      %v951 = vadd.f32 0.0, %v950
      %v952 = vpop.f32.mrb[0].mxu0
      %v953 = vpop.f32.mrb[0].mxu0
      %v954 = vadd.f32 0.0, %v953
      %v955 = vpop.f32.mrb[0].mxu0
      %956 = vmatprep.mubr.bf16.mxu0 0
      %957 = vmatmul.mubr.bf16.gmra.mrb[0].mxu0 %v673
      %v958 = vpop.f32.mrb[0].mxu0
      %v959 = vadd.f32 0.0, %v958
      %v960 = vpop.f32.mrb[0].mxu0
      %v961 = vpop.f32.mrb[0].mxu0
      %v962 = vadd.f32 0.0, %v961
      %v963 = vpop.f32.mrb[0].mxu0
      %964 = vmatprep.mubr.bf16.mxu0 0
      %965 = vmatmul.mubr.bf16.gmra.mrb[0].mxu0 %v676
      %v966 = vpop.f32.mrb[0].mxu0
      %v967 = vadd.f32 0.0, %v966
      %v968 = vpop.f32.mrb[0].mxu0
      %v969 = vpop.f32.mrb[0].mxu0
      %v970 = vadd.f32 0.0, %v969
      %v971 = vpop.f32.mrb[0].mxu0
      %972 = vmatprep.mubr.bf16.mxu0 0
      %973 = vmatmul.mubr.bf16.gmra.mrb[0].mxu0 %v679
      %v974 = vpop.f32.mrb[0].mxu0
      %v975 = vadd.f32 0.0, %v974
      %v976 = vpop.f32.mrb[0].mxu0
      %v977 = vpop.f32.mrb[0].mxu0
      %v978 = vadd.f32 0.0, %v977
      %v979 = vpop.f32.mrb[0].mxu0
      %980 = vmatprep.mubr.bf16.mxu0 0
      %981 = vmatmul.mubr.bf16.gmra.mrb[0].mxu0 %v682
      %v982 = vpop.f32.mrb[0].mxu0
      %v983 = vadd.f32 0.0, %v982
      %v984 = vpop.f32.mrb[0].mxu0
      %v985 = vpop.f32.mrb[0].mxu0
      %v986 = vadd.f32 0.0, %v985
      %v987 = vpop.f32.mrb[0].mxu0
      %988 = vmatprep.mubr.bf16.mxu0 0
      %989 = vmatmul.mubr.bf16.gmra.mrb[0].mxu0 %v685
      %v990 = vpop.f32.mrb[0].mxu0
      %v991 = vadd.f32 0.0, %v990
      %v992 = vpop.f32.mrb[0].mxu0
      %v993 = vpop.f32.mrb[0].mxu0
      %v994 = vadd.f32 0.0, %v993
      %v995 = vpop.f32.mrb[0].mxu0
      %996 = vmatprep.mubr.bf16.mxu0 0
      %997 = vmatmul.mubr.bf16.gmra.mrb[0].mxu0 %v688
      %v998 = vpop.f32.mrb[0].mxu0
      %v999 = vadd.f32 0.0, %v998
      %v1000 = vpop.f32.mrb[0].mxu0
      %v1001 = vpop.f32.mrb[0].mxu0
      %v1002 = vadd.f32 0.0, %v1001
      %v1003 = vpop.f32.mrb[0].mxu0
      %1004 = vmatprep.mubr.bf16.mxu0 0
      %1005 = vmatmul.mubr.bf16.gmra.mrb[0].mxu0 %v691
      %v1006 = vpop.f32.mrb[0].mxu0
      %v1007 = vadd.f32 0.0, %v1006
      %v1008 = vpop.f32.mrb[0].mxu0
      %v1009 = vpop.f32.mrb[0].mxu0
      %v1010 = vadd.f32 0.0, %v1009
      %v1011 = vpop.f32.mrb[0].mxu0
      %1012 = vmatprep.mubr.bf16.mxu0 0
      %1013 = vmatmul.mubr.bf16.gmra.mrb[0].mxu0 %v694
      %v1014 = vpop.f32.mrb[0].mxu0
      %v1015 = vadd.f32 0.0, %v1014
      %v1016 = vpop.f32.mrb[0].mxu0
      %v1017 = vpop.f32.mrb[0].mxu0
      %v1018 = vadd.f32 0.0, %v1017
      %v1019 = vpop.f32.mrb[0].mxu0
      %1020 = vmatprep.mubr.bf16.mxu0 0
      %1021 = vmatmul.mubr.bf16.gmra.mrb[0].mxu0 %v697
      %v1022 = vpop.f32.mrb[0].mxu0
      %v1023 = vadd.f32 0.0, %v1022
      %v1024 = vpop.f32.mrb[0].mxu0
      %v1025 = vpop.f32.mrb[0].mxu0
      %v1026 = vadd.f32 0.0, %v1025
      %v1027 = vpop.f32.mrb[0].mxu0
      %1028 = vmatprep.mubr.bf16.mxu0 0
      %1029 = vmatmul.mubr.bf16.gmra.mrb[0].mxu0 %v700
      %v1030 = vpop.f32.mrb[0].mxu0
      %v1031 = vadd.f32 0.0, %v1030
      %v1032 = vpop.f32.mrb[0].mxu0
      %v1033 = vpop.f32.mrb[0].mxu0
      %v1034 = vadd.f32 0.0, %v1033
      %v1035 = vpop.f32.mrb[0].mxu0
      %1036 = vmatprep.mubr.bf16.mxu0 0
      %1037 = vmatmul.mubr.bf16.gmra.mrb[0].mxu0 %v703
      %v1038 = vpop.f32.mrb[0].mxu0
      %v1039 = vadd.f32 0.0, %v1038
      %v1040 = vpop.f32.mrb[0].mxu0
      %v1041 = vpop.f32.mrb[0].mxu0
      %v1042 = vadd.f32 0.0, %v1041
      %v1043 = vpop.f32.mrb[0].mxu0
      %1044 = vmatprep.mubr.bf16.mxu0 0
      %1045 = vmatmul.mubr.bf16.gmra.mrb[0].mxu0 %v706
      %v1046 = vpop.f32.mrb[0].mxu0
      %v1047 = vadd.f32 0.0, %v1046
      %v1048 = vpop.f32.mrb[0].mxu0
      %v1049 = vpop.f32.mrb[0].mxu0
      %v1050 = vadd.f32 0.0, %v1049
      %v1051 = vpop.f32.mrb[0].mxu0
      %1052 = vmatprep.mubr.bf16.mxu0 0
      %1053 = vmatmul.mubr.bf16.gmra.mrb[0].mxu0 %v709
      %v1054 = vpop.f32.mrb[0].mxu0
      %v1055 = vadd.f32 0.0, %v1054
      %v1056 = vpop.f32.mrb[0].mxu0
      %v1057 = vpop.f32.mrb[0].mxu0
      %v1058 = vadd.f32 0.0, %v1057
      %v1059 = vpop.f32.mrb[0].mxu0
      %1060 = vmatprep.mubr.bf16.mxu0 0
      %1061 = vmatmul.mubr.bf16.gmra.mrb[0].mxu0 %v712
      %v1062 = vpop.f32.mrb[0].mxu0
      %v1063 = vadd.f32 0.0, %v1062
      %v1064 = vpop.f32.mrb[0].mxu0
      %v1065 = vpop.f32.mrb[0].mxu0
      %v1066 = vadd.f32 0.0, %v1065
      %v1067 = vpop.f32.mrb[0].mxu0
      %1068 = vmatprep.mubr.bf16.mxu0 0
      %1069 = vmatmul.mubr.bf16.gmra.mrb[0].mxu0 %v715
      %v1070 = vpop.f32.mrb[0].mxu0
      %v1071 = vadd.f32 0.0, %v1070
      %v1072 = vpop.f32.mrb[0].mxu0
      %v1073 = vpop.f32.mrb[0].mxu0
      %v1074 = vadd.f32 0.0, %v1073
      %v1075 = vpop.f32.mrb[0].mxu0
      %1076 = vmatprep.mubr.bf16.mxu0 0
      %1077 = vmatmul.mubr.bf16.gmra.mrb[0].mxu0 %v718
      %v1078 = vpop.f32.mrb[0].mxu0
      %v1079 = vadd.f32 0.0, %v1078
      %v1080 = vpop.f32.mrb[0].mxu0
      %v1081 = vpop.f32.mrb[0].mxu0
      %v1082 = vadd.f32 0.0, %v1081
      %v1083 = vpop.f32.mrb[0].mxu0
      %1084 = vmatprep.mubr.bf16.mxu0 0
      %1085 = vmatmul.mubr.bf16.gmra.mrb[0].mxu0 %v721
      %v1086 = vpop.f32.mrb[0].mxu0
      %v1087 = vadd.f32 0.0, %v1086
      %v1088 = vpop.f32.mrb[0].mxu0
      %v1089 = vpop.f32.mrb[0].mxu0
      %v1090 = vadd.f32 0.0, %v1089
      %v1091 = vpop.f32.mrb[0].mxu0
      %1092 = vmatprep.mubr.bf16.mxu0 0
      %1093 = vmatmul.mubr.bf16.gmra.mrb[0].mxu0 %v724
      %v1094 = vpop.f32.mrb[0].mxu0
      %v1095 = vadd.f32 0.0, %v1094
      %v1096 = vpop.f32.mrb[0].mxu0
      %v1097 = vpop.f32.mrb[0].mxu0
      %v1098 = vadd.f32 0.0, %v1097
      %v1099 = vpop.f32.mrb[0].mxu0
      %1100 = vmatprep.mubr.bf16.mxu0 0
      %1101 = vmatmul.mubr.bf16.gmra.mrb[0].mxu0 %v727
      %v1102 = vpop.f32.mrb[0].mxu0
      %v1103 = vadd.f32 0.0, %v1102
      %v1104 = vpop.f32.mrb[0].mxu0
      %v1105 = vpop.f32.mrb[0].mxu0
      %v1106 = vadd.f32 0.0, %v1105
      %v1107 = vpop.f32.mrb[0].mxu0
      %1108 = vmatprep.mubr.bf16.mxu0 0
      %1109 = vmatmul.mubr.bf16.gmra.mrb[0].mxu0 %v730
      %v1110 = vpop.f32.mrb[0].mxu0
      %v1111 = vadd.f32 0.0, %v1110
      %v1112 = vpop.f32.mrb[0].mxu0
      %v1113 = vpop.f32.mrb[0].mxu0
      %v1114 = vadd.f32 0.0, %v1113
      %v1115 = vpop.f32.mrb[0].mxu0
      %1116 = vmatprep.mubr.bf16.mxu0 0
      %1117 = vmatmul.mubr.bf16.gmra.mrb[0].mxu0 %v733
      %v1118 = vpop.f32.mrb[0].mxu0
      %v1119 = vadd.f32 0.0, %v1118
      %v1120 = vpop.f32.mrb[0].mxu0
      %v1121 = vpop.f32.mrb[0].mxu0
      %v1122 = vadd.f32 0.0, %v1121
      %v1123 = vpop.f32.mrb[0].mxu0
      %1124 = vmatprep.mubr.bf16.mxu0 0
      %1125 = vmatmul.mubr.bf16.gmra.mrb[0].mxu0 %v736
      %v1126 = vpop.f32.mrb[0].mxu0
      %v1127 = vadd.f32 0.0, %v1126
      %v1128 = vpop.f32.mrb[0].mxu0
      %v1129 = vpop.f32.mrb[0].mxu0
      %v1130 = vadd.f32 0.0, %v1129
      %v1131 = vpop.f32.mrb[0].mxu0
      %1132 = vmatprep.mubr.bf16.mxu0 0
      %1133 = vmatmul.mubr.bf16.gmra.mrb[0].mxu0 %v739
      %v1134 = vpop.f32.mrb[0].mxu0
      %v1135 = vadd.f32 0.0, %v1134
      %v1136 = vpop.f32.mrb[0].mxu0
      %v1137 = vpop.f32.mrb[0].mxu0
      %v1138 = vadd.f32 0.0, %v1137
      %v1139 = vpop.f32.mrb[0].mxu0
      %1140 = vmatprep.mubr.bf16.mxu0 0
      %1141 = vmatmul.mubr.bf16.gmra.mrb[0].mxu0 %v742
      %v1142 = vpop.f32.mrb[0].mxu0
      %v1143 = vadd.f32 0.0, %v1142
      %v1144 = vpop.f32.mrb[0].mxu0
      %v1145 = vpop.f32.mrb[0].mxu0
      %v1146 = vadd.f32 0.0, %v1145
      %v1147 = vpop.f32.mrb[0].mxu0
      %1148 = vmatprep.mubr.bf16.mxu0 0
      %1149 = vmatmul.mubr.bf16.gmra.mrb[0].mxu0 %v745
      %v1150 = vpop.f32.mrb[0].mxu0
      %v1151 = vadd.f32 0.0, %v1150
      %v1152 = vpop.f32.mrb[0].mxu0
      %v1153 = vpop.f32.mrb[0].mxu0
      %v1154 = vadd.f32 0.0, %v1153
      %v1155 = vpop.f32.mrb[0].mxu0
      %1156 = vmatprep.mubr.bf16.mxu0 0
      %1157 = vmatmul.mubr.bf16.gmra.mrb[0].mxu0 %v748
      %v1158 = vpop.f32.mrb[0].mxu0
      %v1159 = vadd.f32 0.0, %v1158
      %v1160 = vpop.f32.mrb[0].mxu0
      %v1161 = vpop.f32.mrb[0].mxu0
      %v1162 = vadd.f32 0.0, %v1161
      %v1163 = vpop.f32.mrb[0].mxu0
      %1164 = vmatprep.mubr.bf16.mxu0 0
      %1165 = vmatmul.mubr.bf16.gmra.mrb[0].mxu0 %v751
      %v1166 = vpop.f32.mrb[0].mxu0
      %v1167 = vadd.f32 0.0, %v1166
      %v1168 = vpop.f32.mrb[0].mxu0
      %v1169 = vpop.f32.mrb[0].mxu0
      %v1170 = vadd.f32 0.0, %v1169
      %v1171 = vpop.f32.mrb[0].mxu0
      %1172 = vmatprep.mubr.bf16.mxu0 0
      %1173 = vmatmul.mubr.bf16.gmra.mrb[0].mxu0 %v754
      %v1174 = vpop.f32.mrb[0].mxu0
      %v1175 = vadd.f32 0.0, %v1174
      %v1176 = vpop.f32.mrb[0].mxu0
      %v1177 = vpop.f32.mrb[0].mxu0
      %v1178 = vadd.f32 0.0, %v1177
      %v1179 = vpop.f32.mrb[0].mxu0
      %1180 = vmatprep.mubr.bf16.mxu0 0
      %1181 = vmatmul.mubr.bf16.gmra.mrb[0].mxu0 %v757
      %v1182 = vpop.f32.mrb[0].mxu0
      %v1183 = vadd.f32 0.0, %v1182
      %v1184 = vpop.f32.mrb[0].mxu0
      %v1185 = vpop.f32.mrb[0].mxu0
      %v1186 = vadd.f32 0.0, %v1185
      %v1187 = vpop.f32.mrb[0].mxu0
      %1188 = vmatprep.mubr.bf16.mxu0 0
      %1189 = vmatmul.mubr.bf16.gmra.mrb[0].mxu0 %v760
      %v1190 = vpop.f32.mrb[0].mxu0
      %v1191 = vadd.f32 0.0, %v1190
      %v1192 = vpop.f32.mrb[0].mxu0
      %v1193 = vpop.f32.mrb[0].mxu0
      %v1194 = vadd.f32 0.0, %v1193
      %v1195 = vpop.f32.mrb[0].mxu0
      %1196 = vmatprep.mubr.bf16.mxu0 0
      %1197 = vmatmul.mubr.bf16.gmra.mrb[0].mxu0 %v763
      %v1198 = vpop.f32.mrb[0].mxu0
      %v1199 = vadd.f32 0.0, %v1198
      %v1200 = vpop.f32.mrb[0].mxu0
      %v1201 = vpop.f32.mrb[0].mxu0
      %v1202 = vadd.f32 0.0, %v1201
      %v1203 = vpop.f32.mrb[0].mxu0
      %1204 = vmatprep.mubr.bf16.mxu0 0
      %1205 = vmatmul.mubr.bf16.gmra.mrb[0].mxu0 %v766
      %v1206 = vpop.f32.mrb[0].mxu0
      %v1207 = vadd.f32 0.0, %v1206
      %v1208 = vpop.f32.mrb[0].mxu0
      %v1209 = vpop.f32.mrb[0].mxu0
      %v1210 = vadd.f32 0.0, %v1209
      %v1211 = vpop.f32.mrb[0].mxu0
      %1212 = vmatprep.mubr.bf16.mxu0 0
      %1213 = vmatmul.mubr.bf16.gmra.mrb[0].mxu0 %v769
      %v1214 = vpop.f32.mrb[0].mxu0
      %v1215 = vadd.f32 0.0, %v1214
      %v1216 = vpop.f32.mrb[0].mxu0
      %v1217 = vpop.f32.mrb[0].mxu0
      %v1218 = vadd.f32 0.0, %v1217
      %v1219 = vpop.f32.mrb[0].mxu0
      %1220 = vmatprep.mubr.bf16.mxu0 0
      %1221 = vmatmul.mubr.bf16.gmra.mrb[0].mxu0 %v772
      %v1222 = vpop.f32.mrb[0].mxu0
      %v1223 = vadd.f32 0.0, %v1222
      %v1224 = vpop.f32.mrb[0].mxu0
      %v1225 = vpop.f32.mrb[0].mxu0
      %v1226 = vadd.f32 0.0, %v1225
      %v1227 = vpop.f32.mrb[0].mxu0
      %1228 = vmatprep.mubr.bf16.mxu0 0
      %1229 = vmatmul.mubr.bf16.gmra.mrb[0].mxu0 %v775
      %v1230 = vpop.f32.mrb[0].mxu0
      %v1231 = vadd.f32 0.0, %v1230
      %v1232 = vpop.f32.mrb[0].mxu0
      %v1233 = vpop.f32.mrb[0].mxu0
      %v1234 = vadd.f32 0.0, %v1233
      %v1235 = vpop.f32.mrb[0].mxu0
      %1236 = vmatprep.mubr.bf16.mxu0 0
      %1237 = vmatmul.mubr.bf16.gmra.mrb[0].mxu0 %v778
      %v1238 = vpop.f32.mrb[0].mxu0
      %v1239 = vadd.f32 0.0, %v1238
      %v1240 = vpop.f32.mrb[0].mxu0
      %v1241 = vpop.f32.mrb[0].mxu0
      %v1242 = vadd.f32 0.0, %v1241
      %v1243 = vpop.f32.mrb[0].mxu0
      %1244 = vmatprep.mubr.bf16.mxu0 0
      %1245 = vmatmul.mubr.bf16.gmra.mrb[0].mxu0 %v781
      %v1246 = vpop.f32.mrb[0].mxu0
      %v1247 = vadd.f32 0.0, %v1246
      %v1248 = vpop.f32.mrb[0].mxu0
      %v1249 = vpop.f32.mrb[0].mxu0
      %v1250 = vadd.f32 0.0, %v1249
      %v1251 = vpop.f32.mrb[0].mxu0
      %1252 = vmatprep.mubr.bf16.mxu0 0
      %1253 = vmatmul.mubr.bf16.gmra.mrb[0].mxu0 %v784
      %v1254 = vpop.f32.mrb[0].mxu0
      %v1255 = vadd.f32 0.0, %v1254
      %v1256 = vpop.f32.mrb[0].mxu0
      %v1257 = vpop.f32.mrb[0].mxu0
      %v1258 = vadd.f32 0.0, %v1257
      %v1259 = vpop.f32.mrb[0].mxu0
      %1260 = vmatprep.mubr.bf16.mxu0 0
      %1261 = vmatmul.mubr.bf16.gmra.mrb[0].mxu0 %v787
      %v1262 = vpop.f32.mrb[0].mxu0
      %v1263 = vadd.f32 0.0, %v1262
      %v1264 = vpop.f32.mrb[0].mxu0
      %v1265 = vpop.f32.mrb[0].mxu0
      %v1266 = vadd.f32 0.0, %v1265
      %v1267 = vpop.f32.mrb[0].mxu0
      %1268 = vmatprep.mubr.bf16.mxu0 0
      %1269 = vmatmul.mubr.bf16.gmra.mrb[0].mxu0 %v790
      %v1270 = vpop.f32.mrb[0].mxu0
      %v1271 = vadd.f32 0.0, %v1270
      %v1272 = vpop.f32.mrb[0].mxu0
      %v1273 = vpop.f32.mrb[0].mxu0
      %v1274 = vadd.f32 0.0, %v1273
      %v1275 = vpop.f32.mrb[0].mxu0
      %1276 = vmatprep.mubr.bf16.mxu0 0
      %1277 = vmatmul.mubr.bf16.gmra.mrb[0].mxu0 %v793
      %v1278 = vpop.f32.mrb[0].mxu0
      %v1279 = vadd.f32 0.0, %v1278
      %v1280 = vpop.f32.mrb[0].mxu0
      %v1281 = vpop.f32.mrb[0].mxu0
      %v1282 = vadd.f32 0.0, %v1281
      %v1283 = vpop.f32.mrb[0].mxu0
      %1284 = vmatprep.mubr.bf16.mxu0 0
      %1285 = vmatmul.mubr.bf16.gmra.mrb[0].mxu0 %v796
      %v1286 = vpop.f32.mrb[0].mxu0
      %v1287 = vadd.f32 0.0, %v1286
      %v1288 = vpop.f32.mrb[0].mxu0
      %v1289 = vpop.f32.mrb[0].mxu0
      %v1290 = vadd.f32 0.0, %v1289
      %v1291 = vpop.f32.mrb[0].mxu0
      %1292 = vmatprep.mubr.bf16.mxu0 0
      %1293 = vmatmul.mubr.bf16.gmra.mrb[0].mxu0 %v799
      %v1294 = vpop.f32.mrb[0].mxu0
      %v1295 = vadd.f32 0.0, %v1294
      %v1296 = vpop.f32.mrb[0].mxu0
      %v1297 = vpop.f32.mrb[0].mxu0
      %v1298 = vadd.f32 0.0, %v1297
      %v1299 = vpop.f32.mrb[0].mxu0
      %1300 = vmatprep.mubr.bf16.mxu0 0
      %1301 = vmatmul.mubr.bf16.gmra.mrb[0].mxu0 %v802
      %v1302 = vpop.f32.mrb[0].mxu0
      %v1303 = vadd.f32 0.0, %v1302
      %v1304 = vpop.f32.mrb[0].mxu0
      %v1305 = vpop.f32.mrb[0].mxu0
      %v1306 = vadd.f32 0.0, %v1305
      %v1307 = vpop.f32.mrb[0].mxu0
      %1308 = vmatprep.mubr.bf16.mxu0 0
      %1309 = vmatmul.mubr.bf16.gmra.mrb[0].mxu0 %v805
      %v1310 = vpop.f32.mrb[0].mxu0
      %v1311 = vadd.f32 0.0, %v1310
      %v1312 = vpop.f32.mrb[0].mxu0
      %v1313 = vpop.f32.mrb[0].mxu0
      %v1314 = vadd.f32 0.0, %v1313
      %v1315 = vpop.f32.mrb[0].mxu0
      %1316 = vmatprep.mubr.bf16.mxu0 0
      %1317 = vmatmul.mubr.bf16.gmra.mrb[0].mxu0 %v808
      %v1318 = vpop.f32.mrb[0].mxu0
      %v1319 = vadd.f32 0.0, %v1318
      %v1320 = vpop.f32.mrb[0].mxu0
      %v1321 = vpop.f32.mrb[0].mxu0
      %v1322 = vadd.f32 0.0, %v1321
      %v1323 = vpop.f32.mrb[0].mxu0
      %1324 = vmatprep.mubr.bf16.mxu0 0
      %1325 = vmatmul.mubr.bf16.gmra.mrb[0].mxu0 %v811
      %v1326 = vpop.f32.mrb[0].mxu0
      %v1327 = vadd.f32 0.0, %v1326
      %v1328 = vpop.f32.mrb[0].mxu0
      %v1329 = vpop.f32.mrb[0].mxu0
      %v1330 = vadd.f32 0.0, %v1329
      %v1331 = vpop.f32.mrb[0].mxu0
      %1332 = vmatprep.mubr.bf16.mxu0 0
      %1333 = vmatmul.mubr.bf16.gmra.mrb[0].mxu0 %v814
      %v1334 = vpop.f32.mrb[0].mxu0
      %v1335 = vadd.f32 0.0, %v1334
      %v1336 = vpop.f32.mrb[0].mxu0
      %v1337 = vpop.f32.mrb[0].mxu0
      %v1338 = vadd.f32 0.0, %v1337
      %v1339 = vpop.f32.mrb[0].mxu0
      %1340 = vmatprep.mubr.bf16.mxu0 0
      %1341 = vmatmul.mubr.bf16.gmra.mrb[0].mxu0 %v817
      %v1342 = vpop.f32.mrb[0].mxu0
      %v1343 = vadd.f32 0.0, %v1342
      %v1344 = vpop.f32.mrb[0].mxu0
      %v1345 = vpop.f32.mrb[0].mxu0
      %v1346 = vadd.f32 0.0, %v1345
      %v1347 = vpop.f32.mrb[0].mxu0
      %1348 = vmatprep.mubr.bf16.mxu0 0
      %1349 = vmatmul.mubr.bf16.gmra.mrb[0].mxu0 %v820
      %v1350 = vpop.f32.mrb[0].mxu0
      %v1351 = vadd.f32 0.0, %v1350
      %v1352 = vpop.f32.mrb[0].mxu0
      %v1353 = vpop.f32.mrb[0].mxu0
      %v1354 = vadd.f32 0.0, %v1353
      %v1355 = vpop.f32.mrb[0].mxu0
      %1356 = vmatprep.mubr.bf16.mxu0 0
      %1357 = vmatmul.mubr.bf16.gmra.mrb[0].mxu0 %v823
      %v1358 = vpop.f32.mrb[0].mxu0
      %v1359 = vadd.f32 0.0, %v1358
      %v1360 = vpop.f32.mrb[0].mxu0
      %v1361 = vpop.f32.mrb[0].mxu0
      %v1362 = vadd.f32 0.0, %v1361
      %v1363 = vpop.f32.mrb[0].mxu0
      %1364 = vmatprep.mubr.bf16.mxu0 0
      %1365 = vmatmul.mubr.bf16.gmra.mrb[0].mxu0 %v826
      %v1366 = vpop.f32.mrb[0].mxu0
      %v1367 = vadd.f32 0.0, %v1366
      %v1368 = vpop.f32.mrb[0].mxu0
      %v1369 = vpop.f32.mrb[0].mxu0
      %v1370 = vadd.f32 0.0, %v1369
      %v1371 = vpop.f32.mrb[0].mxu0
      %1372 = vmatprep.mubr.bf16.mxu0 0
      %1373 = vmatmul.mubr.bf16.gmra.mrb[0].mxu0 %v829
      %v1374 = vpop.f32.mrb[0].mxu0
      %v1375 = vadd.f32 0.0, %v1374
      %v1376 = vpop.f32.mrb[0].mxu0
      %v1377 = vpop.f32.mrb[0].mxu0
      %v1378 = vadd.f32 0.0, %v1377
      %v1379 = vpop.f32.mrb[0].mxu0
      %1380 = vmatprep.mubr.bf16.mxu0 0
      %1381 = vmatmul.mubr.bf16.gmra.mrb[0].mxu0 %v832
      %v1382 = vpop.f32.mrb[0].mxu0
      %v1383 = vadd.f32 0.0, %v1382
      %v1384 = vpop.f32.mrb[0].mxu0
      %v1385 = vpop.f32.mrb[0].mxu0
      %v1386 = vadd.f32 0.0, %v1385
      %v1387 = vpop.f32.mrb[0].mxu0
      %1388 = vmatprep.mubr.bf16.mxu0 0
      %1389 = vmatmul.mubr.bf16.gmra.mrb[0].mxu0 %v835
      %v1390 = vpop.f32.mrb[0].mxu0
      %v1391 = vadd.f32 0.0, %v1390
      %v1392 = vpop.f32.mrb[0].mxu0
      %v1393 = vpop.f32.mrb[0].mxu0
      %v1394 = vadd.f32 0.0, %v1393
      %v1395 = vpop.f32.mrb[0].mxu0
      %1396 = vmatprep.mubr.bf16.mxu0 0
      %1397 = vmatmul.mubr.bf16.gmra.mrb[0].mxu0 %v838
      %v1398 = vpop.f32.mrb[0].mxu0
      %v1399 = vadd.f32 0.0, %v1398
      %v1400 = vpop.f32.mrb[0].mxu0
      %v1401 = vpop.f32.mrb[0].mxu0
      %v1402 = vadd.f32 0.0, %v1401
      %v1403 = vpop.f32.mrb[0].mxu0
      %1404 = vmatprep.mubr.bf16.mxu0 0
      %1405 = vmatmul.mubr.bf16.gmra.mrb[0].mxu0 %v841
      %v1406 = vpop.f32.mrb[0].mxu0
      %v1407 = vadd.f32 0.0, %v1406
      %v1408 = vpop.f32.mrb[0].mxu0
      %v1409 = vpop.f32.mrb[0].mxu0
      %v1410 = vadd.f32 0.0, %v1409
      %v1411 = vpop.f32.mrb[0].mxu0
      %1412 = vmatprep.mubr.bf16.mxu0 0
      %1413 = vmatmul.mubr.bf16.gmra.mrb[0].mxu0 %v844
      %v1414 = vpop.f32.mrb[0].mxu0
      %v1415 = vadd.f32 0.0, %v1414
      %v1416 = vpop.f32.mrb[0].mxu0
      %v1417 = vpop.f32.mrb[0].mxu0
      %v1418 = vadd.f32 0.0, %v1417
      %v1419 = vpop.f32.mrb[0].mxu0
      %1420 = vmatprep.mubr.bf16.mxu0 0
      %1421 = vmatmul.mubr.bf16.gmra.mrb[0].mxu0 %v847
      %v1422 = vpop.f32.mrb[0].mxu0
      %v1423 = vadd.f32 0.0, %v1422
      %v1424 = vpop.f32.mrb[0].mxu0
      %v1425 = vpop.f32.mrb[0].mxu0
      %v1426 = vadd.f32 0.0, %v1425
      %v1427 = vpop.f32.mrb[0].mxu0
      %1428 = vmatprep.mubr.bf16.mxu0 0
      %1429 = vmatmul.mubr.bf16.gmra.mrb[0].mxu0 %v850
      %v1430 = vpop.f32.mrb[0].mxu0
      %v1431 = vadd.f32 0.0, %v1430
      %v1432 = vpop.f32.mrb[0].mxu0
      %v1433 = vpop.f32.mrb[0].mxu0
      %v1434 = vpop.f32.mrb[0].mxu0
      %1435 = vdwg.mxu0
      %v1436 = vtanh.pop %v887
      %v1437 = vtanh.pop %v890
      %v1438 = vtanh.pop %v895
      %v1439 = vtanh.pop %v898
      %v1440 = vtanh.pop %v903
      %v1441 = vtanh.pop %v906
      %v1442 = vtanh.pop %v911
      %v1443 = vtanh.pop %v914
      %v1444 = vtanh.pop %v919
      %v1445 = vtanh.pop %v922
      %v1446 = vtanh.pop %v927
      %v1447 = vtanh.pop %v930
      %v1448 = vtanh.pop %v935
      %v1449 = vtanh.pop %v938
      %v1450 = vtanh.pop %v943
      %v1451 = vtanh.pop %v946
      %v1452 = vtanh.pop %v951
      %v1453 = vtanh.pop %v954
      %v1454 = vtanh.pop %v959
      %v1455 = vtanh.pop %v962
      %v1456 = vtanh.pop %v967
      %v1457 = vtanh.pop %v970
      %v1458 = vtanh.pop %v975
      %v1459 = vtanh.pop %v978
      %v1460 = vtanh.pop %v983
      %v1461 = vtanh.pop %v986
      %v1462 = vtanh.pop %v991
      %v1463 = vtanh.pop %v994
      %v1464 = vtanh.pop %v999
      %v1465 = vtanh.pop %v1002
      %v1466 = vtanh.pop %v1007
      %v1467 = vtanh.pop %v1010
      %v1468 = vtanh.pop %v1015
      %v1469 = vtanh.pop %v1018
      %v1470 = vtanh.pop %v1023
      %v1471 = vtanh.pop %v1026
      %v1472 = vtanh.pop %v1031
      %v1473 = vtanh.pop %v1034
      %v1474 = vtanh.pop %v1039
      %v1475 = vtanh.pop %v1042
      %v1476 = vtanh.pop %v1047
      %v1477 = vtanh.pop %v1050
      %v1478 = vtanh.pop %v1055
      %v1479 = vtanh.pop %v1058
      %v1480 = vtanh.pop %v1063
      %v1481 = vtanh.pop %v1066
      %v1482 = vtanh.pop %v1071
      %v1483 = vtanh.pop %v1074
      %v1484 = vtanh.pop %v1079
      %v1485 = vtanh.pop %v1082
      %v1486 = vtanh.pop %v1087
      %v1487 = vtanh.pop %v1090
      %v1488 = vtanh.pop %v1095
      %v1489 = vtanh.pop %v1098
      %v1490 = vtanh.pop %v1103
      %v1491 = vtanh.pop %v1106
      %v1492 = vtanh.pop %v1111
      %v1493 = vtanh.pop %v1114
      %v1494 = vtanh.pop %v1119
      %v1495 = vtanh.pop %v1122
      %v1496 = vtanh.pop %v1127
      %v1497 = vtanh.pop %v1130
      %v1498 = vtanh.pop %v1135
      %v1499 = vtanh.pop %v1138
      %v1500 = vtanh.pop %v1143
      %v1501 = vtanh.pop %v1146
      %v1502 = vtanh.pop %v1151
      %v1503 = vtanh.pop %v1154
      %v1504 = vtanh.pop %v1159
      %v1505 = vtanh.pop %v1162
      %v1506 = vtanh.pop %v1167
      %v1507 = vtanh.pop %v1170
      %v1508 = vtanh.pop %v1175
      %v1509 = vtanh.pop %v1178
      %v1510 = vtanh.pop %v1183
      %v1511 = vtanh.pop %v1186
      %v1512 = vtanh.pop %v1191
      %v1513 = vtanh.pop %v1194
      %v1514 = vtanh.pop %v1199
      %v1515 = vtanh.pop %v1202
      %v1516 = vtanh.pop %v1207
      %v1517 = vtanh.pop %v1210
      %v1518 = vtanh.pop %v1215
      %v1519 = vtanh.pop %v1218
      %v1520 = vtanh.pop %v1223
      %v1521 = vtanh.pop %v1226
      %v1522 = vtanh.pop %v1231
      %v1523 = vtanh.pop %v1234
      %v1524 = vtanh.pop %v1239
      %v1525 = vtanh.pop %v1242
      %v1526 = vtanh.pop %v1247
      %v1527 = vtanh.pop %v1250
      %v1528 = vtanh.pop %v1255
      %v1529 = vtanh.pop %v1258
      %v1530 = vtanh.pop %v1263
      %v1531 = vtanh.pop %v1266
      %v1532 = vtanh.pop %v1271
      %v1533 = vtanh.pop %v1274
      %v1534 = vtanh.pop %v1279
      %v1535 = vtanh.pop %v1282
      %v1536 = vtanh.pop %v1287
      %v1537 = vtanh.pop %v1290
      %v1538 = vtanh.pop %v1295
      %v1539 = vtanh.pop %v1298
      %v1540 = vtanh.pop %v1303
      %v1541 = vtanh.pop %v1306
      %v1542 = vtanh.pop %v1311
      %v1543 = vtanh.pop %v1314
      %v1544 = vtanh.pop %v1319
      %v1545 = vtanh.pop %v1322
      %v1546 = vtanh.pop %v1327
      %v1547 = vtanh.pop %v1330
      %v1548 = vtanh.pop %v1335
      %v1549 = vtanh.pop %v1338
      %v1550 = vtanh.pop %v1343
      %v1551 = vtanh.pop %v1346
      %v1552 = vtanh.pop %v1351
      %v1553 = vtanh.pop %v1354
      %v1554 = vtanh.pop %v1359
      %v1555 = vtanh.pop %v1362
      %v1556 = vtanh.pop %v1367
      %v1557 = vtanh.pop %v1370
      %v1558 = vtanh.pop %v1375
      %v1559 = vtanh.pop %v1378
      %v1560 = vtanh.pop %v1383
      %v1561 = vtanh.pop %v1386
      %v1562 = vtanh.pop %v1391
      %v1563 = vtanh.pop %v1394
      %v1564 = vtanh.pop %v1399
      %v1565 = vtanh.pop %v1402
      %v1566 = vtanh.pop %v1407
      %v1567 = vtanh.pop %v1410
      %v1568 = vtanh.pop %v1415
      %v1569 = vtanh.pop %v1418
      %v1570 = vtanh.pop %v1423
      %v1571 = vtanh.pop %v1426
      %v1572 = vtanh.pop %v1431
      %1573 = vst [vmem:[%s145] sm:$0xff] %v1436
      %1574 = vst [vmem:[%s145 + $0x8] sm:$0xff] %v1437
      %1575 = vst [vmem:[%s145 + $0x10] sm:$0xff] %v1438
      %1576 = vst [vmem:[%s145 + $0x18] sm:$0xff] %v1439
      %1577 = vst [vmem:[%s145 + $0x20] sm:$0xff] %v1440
      %1578 = vst [vmem:[%s145 + $0x28] sm:$0xff] %v1441
      %1579 = vst [vmem:[%s145 + $0x30] sm:$0xff] %v1442
      %1580 = vst [vmem:[%s145 + $0x38] sm:$0xff] %v1443
      %1581 = vst [vmem:[%s145 + $0x40] sm:$0xff] %v1444
      %1582 = vst [vmem:[%s145 + $0x48] sm:$0xff] %v1445
      %1583 = vst [vmem:[%s145 + $0x50] sm:$0xff] %v1446
      %1584 = vst [vmem:[%s145 + $0x58] sm:$0xff] %v1447
      %1585 = vst [vmem:[%s145 + $0x60] sm:$0xff] %v1448
      %1586 = vst [vmem:[%s145 + $0x68] sm:$0xff] %v1449
      %1587 = vst [vmem:[%s145 + $0x70] sm:$0xff] %v1450
      %1588 = vst [vmem:[%s145 + $0x78] sm:$0xff] %v1451
      %1589 = vst [vmem:[%s145 + $0x80] sm:$0xff] %v1452
      %1590 = vst [vmem:[%s145 + $0x88] sm:$0xff] %v1453
      %1591 = vst [vmem:[%s145 + $0x90] sm:$0xff] %v1454
      %1592 = vst [vmem:[%s145 + $0x98] sm:$0xff] %v1455
      %1593 = vst [vmem:[%s145 + $0xa0] sm:$0xff] %v1456
      %1594 = vst [vmem:[%s145 + $0xa8] sm:$0xff] %v1457
      %1595 = vst [vmem:[%s145 + $0xb0] sm:$0xff] %v1458
      %1596 = vst [vmem:[%s145 + $0xb8] sm:$0xff] %v1459
      %1597 = vst [vmem:[%s145 + $0xc0] sm:$0xff] %v1460
      %1598 = vst [vmem:[%s145 + $0xc8] sm:$0xff] %v1461
      %1599 = vst [vmem:[%s145 + $0xd0] sm:$0xff] %v1462
      %1600 = vst [vmem:[%s145 + $0xd8] sm:$0xff] %v1463
      %1601 = vst [vmem:[%s145 + $0xe0] sm:$0xff] %v1464
      %1602 = vst [vmem:[%s145 + $0xe8] sm:$0xff] %v1465
      %1603 = vst [vmem:[%s145 + $0xf0] sm:$0xff] %v1466
      %1604 = vst [vmem:[%s145 + $0xf8] sm:$0xff] %v1467
      %1605 = vst [vmem:[%s145 + $0x100] sm:$0xff] %v1468
      %1606 = vst [vmem:[%s145 + $0x108] sm:$0xff] %v1469
      %1607 = vst [vmem:[%s145 + $0x110] sm:$0xff] %v1470
      %1608 = vst [vmem:[%s145 + $0x118] sm:$0xff] %v1471
      %1609 = vst [vmem:[%s145 + $0x120] sm:$0xff] %v1472
      %1610 = vst [vmem:[%s145 + $0x128] sm:$0xff] %v1473
      %1611 = vst [vmem:[%s145 + $0x130] sm:$0xff] %v1474
      %1612 = vst [vmem:[%s145 + $0x138] sm:$0xff] %v1475
      %1613 = vst [vmem:[%s145 + $0x140] sm:$0xff] %v1476
      %1614 = vst [vmem:[%s145 + $0x148] sm:$0xff] %v1477
      %1615 = vst [vmem:[%s145 + $0x150] sm:$0xff] %v1478
      %1616 = vst [vmem:[%s145 + $0x158] sm:$0xff] %v1479
      %1617 = vst [vmem:[%s145 + $0x160] sm:$0xff] %v1480
      %1618 = vst [vmem:[%s145 + $0x168] sm:$0xff] %v1481
      %1619 = vst [vmem:[%s145 + $0x170] sm:$0xff] %v1482
      %1620 = vst [vmem:[%s145 + $0x178] sm:$0xff] %v1483
      %1621 = vst [vmem:[%s145 + $0x180] sm:$0xff] %v1484
      %1622 = vst [vmem:[%s145 + $0x188] sm:$0xff] %v1485
      %1623 = vst [vmem:[%s145 + $0x190] sm:$0xff] %v1486
      %1624 = vst [vmem:[%s145 + $0x198] sm:$0xff] %v1487
      %1625 = vst [vmem:[%s145 + $0x1a0] sm:$0xff] %v1488
      %1626 = vst [vmem:[%s145 + $0x1a8] sm:$0xff] %v1489
      %1627 = vst [vmem:[%s145 + $0x1b0] sm:$0xff] %v1490
      %1628 = vst [vmem:[%s145 + $0x1b8] sm:$0xff] %v1491
      %1629 = vst [vmem:[%s145 + $0x1c0] sm:$0xff] %v1492
      %1630 = vst [vmem:[%s145 + $0x1c8] sm:$0xff] %v1493
      %1631 = vst [vmem:[%s145 + $0x1d0] sm:$0xff] %v1494
      %1632 = vst [vmem:[%s145 + $0x1d8] sm:$0xff] %v1495
      %1633 = vst [vmem:[%s145 + $0x1e0] sm:$0xff] %v1496
      %1634 = vst [vmem:[%s145 + $0x1e8] sm:$0xff] %v1497
      %1635 = vst [vmem:[%s145 + $0x1f0] sm:$0xff] %v1498
      %1636 = vst [vmem:[%s145 + $0x1f8] sm:$0xff] %v1499
      %1637 = vst [vmem:[%s145 + $0x200] sm:$0xff] %v1500
      %1638 = vst [vmem:[%s145 + $0x208] sm:$0xff] %v1501
      %1639 = vst [vmem:[%s145 + $0x210] sm:$0xff] %v1502
      %1640 = vst [vmem:[%s145 + $0x218] sm:$0xff] %v1503
      %1641 = vst [vmem:[%s145 + $0x220] sm:$0xff] %v1504
      %1642 = vst [vmem:[%s145 + $0x228] sm:$0xff] %v1505
      %1643 = vst [vmem:[%s145 + $0x230] sm:$0xff] %v1506
      %1644 = vst [vmem:[%s145 + $0x238] sm:$0xff] %v1507
      %1645 = vst [vmem:[%s145 + $0x240] sm:$0xff] %v1508
      %1646 = vst [vmem:[%s145 + $0x248] sm:$0xff] %v1509
      %1647 = vst [vmem:[%s145 + $0x250] sm:$0xff] %v1510
      %1648 = vst [vmem:[%s145 + $0x258] sm:$0xff] %v1511
      %1649 = vst [vmem:[%s145 + $0x260] sm:$0xff] %v1512
      %1650 = vst [vmem:[%s145 + $0x268] sm:$0xff] %v1513
      %1651 = vst [vmem:[%s145 + $0x270] sm:$0xff] %v1514
      %1652 = vst [vmem:[%s145 + $0x278] sm:$0xff] %v1515
      %1653 = vst [vmem:[%s145 + $0x280] sm:$0xff] %v1516
      %1654 = vst [vmem:[%s145 + $0x288] sm:$0xff] %v1517
      %1655 = vst [vmem:[%s145 + $0x290] sm:$0xff] %v1518
      %1656 = vst [vmem:[%s145 + $0x298] sm:$0xff] %v1519
      %1657 = vst [vmem:[%s145 + $0x2a0] sm:$0xff] %v1520
      %1658 = vst [vmem:[%s145 + $0x2a8] sm:$0xff] %v1521
      %1659 = vst [vmem:[%s145 + $0x2b0] sm:$0xff] %v1522
      %1660 = vst [vmem:[%s145 + $0x2b8] sm:$0xff] %v1523
      %1661 = vst [vmem:[%s145 + $0x2c0] sm:$0xff] %v1524
      %1662 = vst [vmem:[%s145 + $0x2c8] sm:$0xff] %v1525
      %1663 = vst [vmem:[%s145 + $0x2d0] sm:$0xff] %v1526
      %1664 = vst [vmem:[%s145 + $0x2d8] sm:$0xff] %v1527
      %1665 = vst [vmem:[%s145 + $0x2e0] sm:$0xff] %v1528
      %1666 = vst [vmem:[%s145 + $0x2e8] sm:$0xff] %v1529
      %1667 = vst [vmem:[%s145 + $0x2f0] sm:$0xff] %v1530
      %1668 = vst [vmem:[%s145 + $0x2f8] sm:$0xff] %v1531
      %1669 = vst [vmem:[%s145 + $0x300] sm:$0xff] %v1532
      %1670 = vst [vmem:[%s145 + $0x308] sm:$0xff] %v1533
      %1671 = vst [vmem:[%s145 + $0x310] sm:$0xff] %v1534
      %1672 = vst [vmem:[%s145 + $0x318] sm:$0xff] %v1535
      %1673 = vst [vmem:[%s145 + $0x320] sm:$0xff] %v1536
      %1674 = vst [vmem:[%s145 + $0x328] sm:$0xff] %v1537
      %1675 = vst [vmem:[%s145 + $0x330] sm:$0xff] %v1538
      %1676 = vst [vmem:[%s145 + $0x338] sm:$0xff] %v1539
      %1677 = vst [vmem:[%s145 + $0x340] sm:$0xff] %v1540
      %1678 = vst [vmem:[%s145 + $0x348] sm:$0xff] %v1541
      %1679 = vst [vmem:[%s145 + $0x350] sm:$0xff] %v1542
      %1680 = vst [vmem:[%s145 + $0x358] sm:$0xff] %v1543
      %1681 = vst [vmem:[%s145 + $0x360] sm:$0xff] %v1544
      %1682 = vst [vmem:[%s145 + $0x368] sm:$0xff] %v1545
      %1683 = vst [vmem:[%s145 + $0x370] sm:$0xff] %v1546
      %1684 = vst [vmem:[%s145 + $0x378] sm:$0xff] %v1547
      %1685 = vst [vmem:[%s145 + $0x380] sm:$0xff] %v1548
      %1686 = vst [vmem:[%s145 + $0x388] sm:$0xff] %v1549
      %1687 = vst [vmem:[%s145 + $0x390] sm:$0xff] %v1550
      %1688 = vst [vmem:[%s145 + $0x398] sm:$0xff] %v1551
      %1689 = vst [vmem:[%s145 + $0x3a0] sm:$0xff] %v1552
      %1690 = vst [vmem:[%s145 + $0x3a8] sm:$0xff] %v1553
      %1691 = vst [vmem:[%s145 + $0x3b0] sm:$0xff] %v1554
      %1692 = vst [vmem:[%s145 + $0x3b8] sm:$0xff] %v1555
      %1693 = vst [vmem:[%s145 + $0x3c0] sm:$0xff] %v1556
      %1694 = vst [vmem:[%s145 + $0x3c8] sm:$0xff] %v1557
      %1695 = vst [vmem:[%s145 + $0x3d0] sm:$0xff] %v1558
      %1696 = vst [vmem:[%s145 + $0x3d8] sm:$0xff] %v1559
      %1697 = vst [vmem:[%s145 + $0x3e0] sm:$0xff] %v1560
      %1698 = vst [vmem:[%s145 + $0x3e8] sm:$0xff] %v1561
      %1699 = vst [vmem:[%s145 + $0x3f0] sm:$0xff] %v1562
      %1700 = vst [vmem:[%s145 + $0x3f8] sm:$0xff] %v1563
      %1701 = vst [vmem:[%s145 + $0x400] sm:$0xff] %v1564
      %1702 = vst [vmem:[%s145 + $0x408] sm:$0xff] %v1565
      %1703 = vst [vmem:[%s145 + $0x410] sm:$0xff] %v1566
      %1704 = vst [vmem:[%s145 + $0x418] sm:$0xff] %v1567
      %1705 = vst [vmem:[%s145 + $0x420] sm:$0xff] %v1568
      %1706 = vst [vmem:[%s145 + $0x428] sm:$0xff] %v1569
      %1707 = vst [vmem:[%s145 + $0x430] sm:$0xff] %v1570
      %1708 = vst [vmem:[%s145 + $0x438] sm:$0xff] %v1571
      %1709 = vst [vmem:[%s145 + $0x440] sm:$0xff] %v1572
      %s1710 = smul.u32 137, %s13
      %p1711 = scmp.lt.s32.totalorder %s1710, 273
      %s1712 = scalar_select %p1711, %s1710, 273
      %s1713 = smul.addr %s1712, 8
      %s1714 = scalar_lea.vmem %s2, %s1713
      // Predicated region
      $region29: #{generator_forward.9} parent=27 // pred_check
        %p1715 = pneg %p78
      $region30: #{generator_forward.9} parent=27 // pred_check_branch
        %1717 = sbr.rel (%p1715) target = $region32
      $region31: #{generator_forward.9} parent=27 // pred_region
        %s1718 = smul.u32 137, %s13
      $region32: #{generator_forward.9} parent=27 // pred_fallthru
        _
    $region28: #{generator_forward.9} parent=5 // pred_fallthru
      _
    %p1719 = scmp.le.s32.totalorder 2, %s8
    // Predicated region
    $region33: #{generator_forward.9} parent=5 // pred_check
      %p1720 = pneg %p1719
    $region34: #{generator_forward.9} parent=5 // pred_check_branch
      %1722 = sbr.rel (%p1720) target = $region36
    $region35: #{generator_forward.9} parent=5 // pred_region
      %s1723 = ssub.s32 %s8, 2
      // Predicated region
      $region37: #{generator_forward.9} parent=35 // pred_check
        %p1724 = pneg %p84
      $region38: #{generator_forward.9} parent=35 // pred_check_branch
        %1726 = sbr.rel (%p1724) target = $region40
      $region39: #{generator_forward.9} parent=35 // pred_region
        %s1727 = smul.u32 137, %s14
        %p1728 = scmp.lt.s32.totalorder %s1727, 273
        %s1729 = scalar_select %p1728, %s1727, 273
        %s1730 = smul.addr %s1729, 8
        %s1731 = scalar_lea.vmem %s2, %s1730
      $region40: #{generator_forward.9} parent=35 // pred_fallthru
        _
    $region36: #{generator_forward.9} parent=5 // pred_fallthru
      _
  $region6: #{generator_forward.9} parent=0 // loop_footer
    %s12 = sadd.s32 1, %s8
  $region7: #{generator_forward.9} parent=0 // loop_footer_branch
    %7 = sbr.rel target = $region3
  $region8: #{generator_forward.9} parent=0 // loop_exit
    _

</llo_original>
